<compile_context>
chip_gen: v7x
topology: tpu7x:2x2x1
jax: 0.10.0
libtpu: 0.0.40
codegen_flags: <defaults>
</compile_context>

<pallas_src>
import functools

import jax
import jax.numpy as jnp
import numpy as np
from jax.experimental import pallas as pl
from jax.experimental.pallas import tpu as pltpu


def _round_up(x, m):
  return ((x + m - 1) // m) * m


# ----------------------------------------------------------------------------
# Kernel 1: T-chunked recurrence (att-LSTM -> 2x SoftAttention -> lang-LSTM).
# Carries persist in VMEM scratch across grid steps.
# ----------------------------------------------------------------------------
def decoder_core_kernel(
    att_x_ref,          # (Tc, B, 4H) bf16 precomputed word+gfeat+bias gate term
    v_obj_ref,          # (B, No, A) f32 value proj (+ key bias folded in)
    v_frm_ref,          # (B, Tf, A) f32 value proj (+ key bias folded in)
    obj_ref,            # (B, No, F)  bf16
    frm_ref,            # (B, Tf, 2F) bf16
    mask_add_ref,       # (B, No) f32 additive mask (-1e9 / 0)
    w_att_hid_ref,      # (2H, 4H) bf16  fused [lang_h | att_h] att-lstm weights
    wh_key_ref,         # (H, 2A)  bf16  fused [region | frame] key weights
    r_wa_ref,           # (1, A) f32
    f_wa_ref,           # (1, A) f32
    w_lang_all_ref,     # (3F+2H, 4H) bf16 fused [obj|frm|att_h|lang_h] weights
    lang_b_ref,         # (1, 4H) f32
    h_out_ref,          # (Tc*B, H) f32 lang_h per step (output block)
    lang_h_sc, lang_c_sc, att_h_sc, att_c_sc,   # (B, H) f32 persistent carries
    *, hidden_size, att_size, steps_per_chunk, batch):
  H, A, B = hidden_size, att_size, batch
  f32, bf16 = jnp.float32, jnp.bfloat16

  @pl.when(pl.program_id(0) == 0)
  def _():
    lang_h_sc[...] = jnp.zeros_like(lang_h_sc)
    lang_c_sc[...] = jnp.zeros_like(lang_c_sc)
    att_h_sc[...] = jnp.zeros_like(att_h_sc)
    att_c_sc[...] = jnp.zeros_like(att_c_sc)

  def apply_gates(gates, c):
    # Gate columns pre-permuted in the wrapper to (i, f, o, g): one sigmoid
    # over 3H lanes + one tanh over the last H lanes (minimal EUP traffic).
    sig = jax.nn.sigmoid(gates[:, :3 * H])
    i = sig[:, 0 * H:1 * H]
    f = sig[:, 1 * H:2 * H]
    o = sig[:, 2 * H:3 * H]
    g = jnp.tanh(gates[:, 3 * H:])
    c_new = f * c + i * g
    return o * jnp.tanh(c_new), c_new

  def soft_attention(kproj, v, feats, wa, mask_add):
    # Key bias already folded into v; wa bias dropped (softmax-invariant);
    # mask applied additively (no per-step compare+select).
    inp = jnp.tanh(kproj[:, None, :] + v)                 # (B, N, A) f32
    alpha = jnp.sum(inp * wa, axis=-1)                    # (B, N)
    if mask_add is not None:
      alpha = alpha + mask_add
    alpha = jax.nn.softmax(alpha, axis=-1)
    return jnp.sum(alpha[:, :, None] * feats.astype(f32), axis=1)

  def step(t, carry):
    lang_h = lang_h_sc[...]
    att_h = att_h_sc[...]

    # ---- ATT LSTM: word/gfeat/bias term precomputed; single fused
    #      [lang_h | att_h] @ (2H,4H) bf16 matmul, f32 accumulation.
    hid = jnp.concatenate([lang_h, att_h], axis=1).astype(bf16)
    gates_a = (att_x_ref[t].astype(f32)
               + jnp.dot(hid, w_att_hid_ref[...], preferred_element_type=f32))
    att_h, att_c = apply_gates(gates_a, att_c_sc[...])
    att_h_sc[...] = att_h
    att_c_sc[...] = att_c

    # ---- fused attention key projection (region | frame).
    kproj = jnp.dot(att_h.astype(bf16), wh_key_ref[...],
                    preferred_element_type=f32)           # (B, 2A)
    obj_att = soft_attention(kproj[:, :A], v_obj_ref[...], obj_ref[...],
                             r_wa_ref[...].reshape(1, 1, A), mask_add_ref[...])
    frm_att = soft_attention(kproj[:, A:], v_frm_ref[...], frm_ref[...],
                             f_wa_ref[...].reshape(1, 1, A), None)

    # ---- LANG LSTM: single fused [obj|frm|att_h|lang_h] @ (3F+2H,4H) push.
    x_lang = jnp.concatenate([obj_att, frm_att, att_h, lang_h],
                             axis=1).astype(bf16)
    gates_l = (jnp.dot(x_lang, w_lang_all_ref[...], preferred_element_type=f32)
               + lang_b_ref[...])
    lang_h, lang_c = apply_gates(gates_l, lang_c_sc[...])
    lang_h_sc[...] = lang_h
    lang_c_sc[...] = lang_c

    h_out_ref[pl.ds(t * B, B), :] = lang_h
    return carry

  # Capped unroll; refs are read at the point of use so live ranges stay
  # per-matmul instead of spanning the whole chunk.
  jax.lax.fori_loop(0, steps_per_chunk, step, 0, unroll=True)


# ----------------------------------------------------------------------------
# Kernel 2: tiled word_restore projection: (rows, H) @ (H, Vp) + bias,
# one (row-block, vocab-block) tile per grid point, lane-dense stores.
# ----------------------------------------------------------------------------
def word_restore_kernel(h_ref, w_ref, b_ref, o_ref):
  o_ref[...] = (jnp.dot(h_ref[...], w_ref[...],
                        preferred_element_type=jnp.float32) + b_ref[...])


# ----------------------------------------------------------------------------
# Wrapper: glue (embedding gather, global feats, weight preprocessing) +
# the two pallas_calls.
# ----------------------------------------------------------------------------
def _permute_gate_cols(w):
  """PyTorch LSTM gate order (i, f, g, o) -> (i, f, o, g) along last axis."""
  i, f, g, o = jnp.split(w, 4, axis=-1)
  return jnp.concatenate([i, f, o, g], axis=-1)


def decoder_forward_pallas(params, frame_feats, object_feats, object_masks,
                           captions, start_id, hidden_size):
  f32, bf16 = jnp.float32, jnp.bfloat16
  B, Tf, _ = frame_feats.shape
  _, No, F = object_feats.shape
  T = captions.shape[1]
  V, W = params["embed"].shape
  H = hidden_size
  A = params["r_wh"].shape[0]

  frame_feats = frame_feats.astype(f32)
  object_feats = object_feats.astype(f32)
  object_masks = object_masks.astype(f32)

  # ---- GLOBAL FEATURE REPRESENTATION (plain-JAX glue) ----------------------
  global_frame = jnp.mean(frame_feats, axis=1)                              # (B, 2F)
  global_obj = jnp.sum(object_feats, axis=1) / jnp.sum(
      object_masks, axis=1, keepdims=True)                                  # (B, F)
  global_feat = jnp.concatenate([global_frame, global_obj], axis=1)         # (B, 3F)

  # ---- word embeddings per step (gather = plain-JAX glue) ------------------
  embed = params["embed"]
  start_emb = jnp.broadcast_to(embed[start_id][None, :], (B, W))
  cap_emb = embed[captions[:, :-1]]                                         # (B, T-1, W)
  words_seq = jnp.concatenate([start_emb[:, None, :], cap_emb], axis=1)     # (B, T, W)
  words_seq = jnp.transpose(words_seq, (1, 0, 2)).astype(f32)               # (T, B, W)

  # ---- gate-column permutation (i,f,g,o)->(i,f,o,g) + weight fusion --------
  att_wih_t = _permute_gate_cols(params["att_wih"].T)      # (H+W+3F, 4H)
  att_whh_t = _permute_gate_cols(params["att_whh"].T)      # (H, 4H)
  att_b = _permute_gate_cols(params["att_b"])              # (1, 4H)
  lang_wih_t = _permute_gate_cols(params["lang_wih"].T)    # (3F+H, 4H)
  lang_whh_t = _permute_gate_cols(params["lang_whh"].T)    # (H, 4H)
  lang_b = _permute_gate_cols(params["lang_b"])            # (1, 4H)

  # att_lstm input = [lang_h | word | global_feat]
  w_att_lh = att_wih_t[:H]
  w_att_wd = att_wih_t[H:H + W]
  w_att_gf = att_wih_t[H + W:]
  w_att_hid = jnp.concatenate([w_att_lh, att_whh_t], axis=0)       # (2H, 4H)
  # lang_lstm input = [obj_att | frame_att | att_h], recurrent = lang_h
  w_lang_all = jnp.concatenate([lang_wih_t, lang_whh_t], axis=0)   # (3F+2H, 4H)

  # ---- hoisted time-invariant projections ----------------------------------
  att_const = jnp.dot(global_feat, w_att_gf) + att_b                        # (B, 4H)
  att_x = jnp.einsum("tbw,wg->tbg", words_seq, w_att_wd) + att_const[None]  # (T, B, 4H)

  # SoftAttention value projections with the key bias folded in (so the
  # kernel's key projection is bias-free).
  v_obj = (jnp.einsum("bnf,fa->bna", object_feats, params["r_wv"].T)
           + params["r_bv"] + params["r_bh"])
  v_frm = (jnp.einsum("bnf,fa->bna", frame_feats, params["f_wv"].T)
           + params["f_bv"] + params["f_bh"])

  # fused attention key projection [region | frame].
  wh_key = jnp.concatenate([params["r_wh"].T, params["f_wh"].T], axis=1)    # (H, 2A)

  # additive mask (softmax invariant to the dropped wa biases).
  mask_add = jnp.where(object_masks == 0, -1e9, 0.0).astype(f32)            # (B, No)

  # ---- kernel 1: T-chunked recurrence ---------------------------------------
  chunk = min(4, T)
  Tp = _round_up(T, chunk)
  num_chunks = Tp // chunk
  att_x_p = jnp.zeros((Tp, B, 4 * H), f32).at[:T].set(att_x).astype(bf16)

  core = functools.partial(decoder_core_kernel, hidden_size=H, att_size=A,
                           steps_per_chunk=chunk, batch=B)
  const3 = lambda c: (0, 0, 0)
  const2 = lambda c: (0, 0)
  h_all = pl.pallas_call(
      core,
      out_shape=jax.ShapeDtypeStruct((Tp * B, H), f32),
      grid_spec=pltpu.PrefetchScalarGridSpec(
          num_scalar_prefetch=0,
          grid=(num_chunks,),
          in_specs=[
              pl.BlockSpec((chunk, B, 4 * H), lambda c: (c, 0, 0)),   # att_x stream
              pl.BlockSpec((B, No, A), const3),                       # v_obj
              pl.BlockSpec((B, Tf, A), const3),                       # v_frm
              pl.BlockSpec((B, No, F), const3),                       # obj feats
              pl.BlockSpec((B, Tf, 2 * F), const3),                   # frame feats
              pl.BlockSpec((B, No), const2),                          # mask_add
              pl.BlockSpec((2 * H, 4 * H), const2),                   # w_att_hid
              pl.BlockSpec((H, 2 * A), const2),                       # wh_key
              pl.BlockSpec((1, A), const2),                           # r_wa
              pl.BlockSpec((1, A), const2),                           # f_wa
              pl.BlockSpec((3 * F + 2 * H, 4 * H), const2),           # w_lang_all
              pl.BlockSpec((1, 4 * H), const2),                       # lang_b
          ],
          out_specs=pl.BlockSpec((chunk * B, H), lambda c: (c, 0)),
          scratch_shapes=[
              pltpu.VMEM((B, H), f32),   # lang_h
              pltpu.VMEM((B, H), f32),   # lang_c
              pltpu.VMEM((B, H), f32),   # att_h
              pltpu.VMEM((B, H), f32),   # att_c
          ],
      ),
      compiler_params=pltpu.CompilerParams(
          dimension_semantics=("arbitrary",)),
  )(att_x_p,
    v_obj.astype(f32), v_frm.astype(f32),
    object_feats.astype(bf16), frame_feats.astype(bf16),
    mask_add,
    w_att_hid.astype(bf16), wh_key.astype(bf16),
    params["r_wa"].astype(f32), params["f_wa"].astype(f32),
    w_lang_all.astype(bf16), lang_b.astype(f32))

  # ---- kernel 2: tiled, lane-dense vocab projection (bf16 operands) --------
  rows = T * B
  rb = min(256, _round_up(rows, 8))          # row block (<=256, VMEM-friendly)
  rows_p = _round_up(rows, rb)
  vb = min(512, _round_up(V, 128))           # vocab block (lane-dense)
  Vp = _round_up(V, vb)

  h_p = jnp.zeros((rows_p, H), bf16).at[:rows].set(h_all[:rows].astype(bf16))
  wres_p = jnp.zeros((H, Vp), bf16).at[:, :V].set(params["wres"].T.astype(bf16))
  bres_p = jnp.zeros((1, Vp), f32).at[:, :V].set(params["bres"].astype(f32))

  cost = pl.CostEstimate(
      flops=2 * rows_p * H * Vp, transcendentals=0,
      bytes_accessed=rows_p * H * 2 + H * Vp * 2 + Vp * 4 + rows_p * Vp * 4)

  logits_p = pl.pallas_call(
      word_restore_kernel,
      out_shape=jax.ShapeDtypeStruct((rows_p, Vp), f32),
      grid_spec=pltpu.PrefetchScalarGridSpec(
          num_scalar_prefetch=0,
          grid=(rows_p // rb, Vp // vb),
          in_specs=[
              pl.BlockSpec((rb, H), lambda i, j: (i, 0)),
              pl.BlockSpec((H, vb), lambda i, j: (0, j)),
              pl.BlockSpec((1, vb), lambda i, j: (0, j)),
          ],
          out_specs=pl.BlockSpec((rb, vb), lambda i, j: (i, j)),
      ),
      compiler_params=pltpu.CompilerParams(
          dimension_semantics=("parallel", "parallel")),
      cost_estimate=cost,
  )(h_p, wres_p, bres_p)

  logits = logits_p[:rows, :V].reshape(T, B, V)
  # torch.stack(outputs, dim=1) -> (B, T, V)
  return jnp.transpose(logits, (1, 0, 2))


# ----------------------------------------------------------------------------
# Pure-JAX reference (mirrors the PyTorch forward) for a correctness check.
# ----------------------------------------------------------------------------
def decoder_forward_ref(params, frame_feats, object_feats, object_masks,
                        captions, start_id, hidden_size):
  B = frame_feats.shape[0]
  T = captions.shape[1]
  H = hidden_size
  embed = params["embed"]

  def lstm_cell(x, h, c, wih, whh, b):
    gates = x @ wih.T + h @ whh.T + b
    i, f, g, o = jnp.split(gates, 4, axis=1)
    i, f, o = jax.nn.sigmoid(i), jax.nn.sigmoid(f), jax.nn.sigmoid(o)
    g = jnp.tanh(g)
    c_new = f * c + i * g
    return o * jnp.tanh(c_new), c_new

  def soft_attention(feats, key, wh, bh, wv, bv, wa, ba, mask=None):
    v = feats @ wv.T + bv
    kproj = key @ wh.T + bh
    inp = jnp.tanh(kproj[:, None, :] + v)
    alpha = jnp.squeeze(inp @ wa.T, -1) + ba[0, 0]
    if mask is not None:
      alpha = jnp.where(mask == 0, -1e9, alpha)
    alpha = jax.nn.softmax(alpha, axis=-1)
    return jnp.einsum("bn,bnf->bf", alpha, feats)

  global_frame = jnp.mean(frame_feats, axis=1)
  global_obj = jnp.sum(object_feats, axis=1) / jnp.sum(
      object_masks, axis=1, keepdims=True)
  global_feat = jnp.concatenate([global_frame, global_obj], axis=1)

  word = jnp.broadcast_to(embed[start_id][None, :], (B, embed.shape[1]))
  lang_h = lang_c = att_h = att_c = jnp.zeros((B, H), jnp.float32)

  outs = []
  for i in range(T):
    x_att = jnp.concatenate([lang_h, word, global_feat], axis=1)
    att_h, att_c = lstm_cell(x_att, att_h, att_c,
                             params["att_wih"], params["att_whh"],
                             params["att_b"])
    obj_att = soft_attention(object_feats, att_h, params["r_wh"],
                             params["r_bh"], params["r_wv"], params["r_bv"],
                             params["r_wa"], params["r_ba"], object_masks)
    frame_att = soft_attention(frame_feats, att_h, params["f_wh"],
                               params["f_bh"], params["f_wv"], params["f_bv"],
                               params["f_wa"], params["f_ba"], None)
    feats = jnp.concatenate([obj_att, frame_att], axis=1)
    x_lang = jnp.concatenate([feats, att_h], axis=1)
    lang_h, lang_c = lstm_cell(x_lang, lang_h, lang_c,
                               params["lang_wih"], params["lang_whh"],
                               params["lang_b"])
    logits = lang_h @ params["wres"].T + params["bres"]
    outs.append(logits)
    word = embed[captions[:, i]]
  return jnp.stack(outs, axis=1)


# ----------------------------------------------------------------------------
# Main
# ----------------------------------------------------------------------------
if __name__ == "__main__":
  # Small, forward-consistent sizes.
  B = 2                     # batch
  F = 32                    # opt.feat_projected_size
  H = 32                    # opt.hidden_size
  W = 32                    # opt.word_size
  A = 32                    # opt.att_size
  Tf = 8                    # number of frames     -> frame_feats (B, Tf, 2F)
  No = 6                    # number of objects    -> object_feats (B, No, F)
  V = 100                   # vocab size
  T = 5                     # opt.max_words
  START_ID = 1

  key = jax.random.PRNGKey(0)
  ks = jax.random.split(key, 32)

  def u(k, shape, fan_in):
    bound = 1.0 / np.sqrt(fan_in)
    return jax.random.uniform(k, shape, jnp.float32, -bound, bound)

  d_att = W + H + 3 * F     # att_lstm input size
  d_lang = H + 3 * F        # lang_lstm input size

  params = {
      "embed":    jax.random.normal(ks[0], (V, W), jnp.float32) * 0.1,
      "att_wih":  u(ks[1], (4 * H, d_att), d_att),
      "att_whh":  u(ks[2], (4 * H, H), H),
      "att_b":    u(ks[3], (1, 4 * H), H),       # b_ih + b_hh folded into one
      "lang_wih": u(ks[4], (4 * H, d_lang), d_lang),
      "lang_whh": u(ks[5], (4 * H, H), H),
      "lang_b":   u(ks[6], (1, 4 * H), H),
      # region SoftAttention (feat_size = F)
      "r_wh": u(ks[7], (A, H), H),   "r_bh": u(ks[8], (1, A), H),
      "r_wv": u(ks[9], (A, F), F),   "r_bv": u(ks[10], (1, A), F),
      "r_wa": u(ks[11], (1, A), A),  "r_ba": u(ks[12], (1, 1), A),
      # frame SoftAttention (feat_size = 2F)
      "f_wh": u(ks[13], (A, H), H),      "f_bh": u(ks[14], (1, A), H),
      "f_wv": u(ks[15], (A, 2 * F), 2 * F), "f_bv": u(ks[16], (1, A), 2 * F),
      "f_wa": u(ks[17], (1, A), A),      "f_ba": u(ks[18], (1, 1), A),
      # word_restore
      "wres": u(ks[19], (V, H), H),  "bres": u(ks[20], (1, V), H),
  }

  frame_feats = jax.random.normal(ks[21], (B, Tf, 2 * F), jnp.float32)
  object_feats = jax.random.normal(ks[22], (B, No, F), jnp.float32)
  object_masks = (jax.random.uniform(ks[23], (B, No)) > 0.3).astype(jnp.float32)
  object_masks = object_masks.at[:, 0].set(1.0)   # guarantee >=1 valid object
  captions = jax.random.randint(ks[24], (B, T), 2, V, dtype=jnp.int32)

  out = decoder_forward_pallas(params, frame_feats, object_feats, object_masks,
                               captions, START_ID, H)
  out = jax.block_until_ready(out)

  ref = decoder_forward_ref(params, frame_feats, object_feats, object_masks,
                            captions, START_ID, H)
  ref = jax.block_until_ready(ref)

  # Tolerance covers bf16 MXU operands (f32 accumulation) + f32 reassociation
  # from the fused matmuls; still far below any structural-error magnitude.
  np.testing.assert_allclose(np.asarray(out), np.asarray(ref),
                             rtol=3e-2, atol=3e-2)
  print("KERNEL_OK")
</pallas_src>

<mosaic_0001>
module attributes {stable_mosaic.version = 11 : i64} {
  func.func @decoder_core_kernel(%arg0: i32, %arg1: memref<4x2x128xbf16, #tpu.memory_space<vmem>>, %arg2: memref<2x6x32xf32, #tpu.memory_space<vmem>>, %arg3: memref<2x8x32xf32, #tpu.memory_space<vmem>>, %arg4: memref<2x6x32xbf16, #tpu.memory_space<vmem>>, %arg5: memref<2x8x64xbf16, #tpu.memory_space<vmem>>, %arg6: memref<2x6xf32, #tpu.memory_space<vmem>>, %arg7: memref<64x128xbf16, #tpu.memory_space<vmem>>, %arg8: memref<32x64xbf16, #tpu.memory_space<vmem>>, %arg9: memref<1x32xf32, #tpu.memory_space<vmem>>, %arg10: memref<1x32xf32, #tpu.memory_space<vmem>>, %arg11: memref<160x128xbf16, #tpu.memory_space<vmem>>, %arg12: memref<1x128xf32, #tpu.memory_space<vmem>>, %arg13: memref<8x32xf32, #tpu.memory_space<vmem>>, %arg14: memref<2x32xf32, #tpu.memory_space<vmem>>, %arg15: memref<2x32xf32, #tpu.memory_space<vmem>>, %arg16: memref<2x32xf32, #tpu.memory_space<vmem>>, %arg17: memref<2x32xf32, #tpu.memory_space<vmem>>) attributes {dimension_semantics = [#tpu.dimension_semantics<arbitrary>], iteration_bounds = array<i64: 2>, scalar_prefetch = 0 : i64, scratch_operands = 4 : i64, tpu.core_type = #tpu.core_type<tc>, window_params = [{transform_indices = @transform_0, window_bounds = array<i64: 4, 2, 128>}, {pipeline_mode = #tpu.pipeline_mode<synchronous>, transform_indices = @transform_1, window_bounds = array<i64: 2, 6, 32>}, {pipeline_mode = #tpu.pipeline_mode<synchronous>, transform_indices = @transform_2, window_bounds = array<i64: 2, 8, 32>}, {pipeline_mode = #tpu.pipeline_mode<synchronous>, transform_indices = @transform_3, window_bounds = array<i64: 2, 6, 32>}, {pipeline_mode = #tpu.pipeline_mode<synchronous>, transform_indices = @transform_4, window_bounds = array<i64: 2, 8, 64>}, {pipeline_mode = #tpu.pipeline_mode<synchronous>, transform_indices = @transform_5, window_bounds = array<i64: 2, 6>}, {pipeline_mode = #tpu.pipeline_mode<synchronous>, transform_indices = @transform_6, window_bounds = array<i64: 64, 128>}, {pipeline_mode = #tpu.pipeline_mode<synchronous>, transform_indices = @transform_7, window_bounds = array<i64: 32, 64>}, {pipeline_mode = #tpu.pipeline_mode<synchronous>, transform_indices = @transform_8, window_bounds = array<i64: 1, 32>}, {pipeline_mode = #tpu.pipeline_mode<synchronous>, transform_indices = @transform_9, window_bounds = array<i64: 1, 32>}, {pipeline_mode = #tpu.pipeline_mode<synchronous>, transform_indices = @transform_10, window_bounds = array<i64: 160, 128>}, {pipeline_mode = #tpu.pipeline_mode<synchronous>, transform_indices = @transform_11, window_bounds = array<i64: 1, 128>}, {transform_indices = @transform_12, window_bounds = array<i64: 8, 32>}]} {
    %c0_i32 = arith.constant 0 : i32
    %0 = arith.cmpi eq, %arg0, %c0_i32 : i32
    %1 = arith.extui %0 : i1 to i32
    %c0_i32_0 = arith.constant 0 : i32
    %2 = arith.cmpi ne, %1, %c0_i32_0 : i32
    scf.if %2 {
      %cst_244 = arith.constant 0.000000e+00 : f32
      %483 = vector.broadcast %cst_244 : f32 to vector<2x32xf32>
      %c0_245 = arith.constant 0 : index
      %c0_246 = arith.constant 0 : index
      %484 = vector.load %arg14[%c0_245, %c0_246] : memref<2x32xf32, #tpu.memory_space<vmem>>, vector<2x32xf32>
      tpu.vector_store %arg14[%c0_245, %c0_246], %483 {strides = array<i32>} : memref<2x32xf32, #tpu.memory_space<vmem>>, vector<2x32xf32>,
      %cst_247 = arith.constant 0.000000e+00 : f32
      %485 = vector.broadcast %cst_247 : f32 to vector<2x32xf32>
      %c0_248 = arith.constant 0 : index
      %c0_249 = arith.constant 0 : index
      %486 = vector.load %arg15[%c0_248, %c0_249] : memref<2x32xf32, #tpu.memory_space<vmem>>, vector<2x32xf32>
      tpu.vector_store %arg15[%c0_248, %c0_249], %485 {strides = array<i32>} : memref<2x32xf32, #tpu.memory_space<vmem>>, vector<2x32xf32>,
      %cst_250 = arith.constant 0.000000e+00 : f32
      %487 = vector.broadcast %cst_250 : f32 to vector<2x32xf32>
      %c0_251 = arith.constant 0 : index
      %c0_252 = arith.constant 0 : index
      %488 = vector.load %arg16[%c0_251, %c0_252] : memref<2x32xf32, #tpu.memory_space<vmem>>, vector<2x32xf32>
      tpu.vector_store %arg16[%c0_251, %c0_252], %487 {strides = array<i32>} : memref<2x32xf32, #tpu.memory_space<vmem>>, vector<2x32xf32>,
      %cst_253 = arith.constant 0.000000e+00 : f32
      %489 = vector.broadcast %cst_253 : f32 to vector<2x32xf32>
      %c0_254 = arith.constant 0 : index
      %c0_255 = arith.constant 0 : index
      %490 = vector.load %arg17[%c0_254, %c0_255] : memref<2x32xf32, #tpu.memory_space<vmem>>, vector<2x32xf32>
      tpu.vector_store %arg17[%c0_254, %c0_255], %489 {strides = array<i32>} : memref<2x32xf32, #tpu.memory_space<vmem>>, vector<2x32xf32>,
    } else {
    }
    %c0_i32_1 = arith.constant 0 : i32
    %c0 = arith.constant 0 : index
    %c0_2 = arith.constant 0 : index
    %3 = vector.load %arg14[%c0, %c0_2] : memref<2x32xf32, #tpu.memory_space<vmem>>, vector<2x32xf32>
    %c0_3 = arith.constant 0 : index
    %c0_4 = arith.constant 0 : index
    %4 = vector.load %arg16[%c0_3, %c0_4] : memref<2x32xf32, #tpu.memory_space<vmem>>, vector<2x32xf32>
    %5 = tpu.concatenate %3, %4 in 1 : vector<2x32xf32>, vector<2x32xf32> -> vector<2x64xf32>
    %6 = arith.truncf %5 : vector<2x64xf32> to vector<2x64xbf16>
    %7 = arith.index_cast %c0_i32_1 : i32 to index
    %c0_5 = arith.constant 0 : index
    %c0_6 = arith.constant 0 : index
    %8 = vector.load %arg1[%7, %c0_5, %c0_6] : memref<4x2x128xbf16, #tpu.memory_space<vmem>>, vector<1x2x128xbf16>
    %9 = vector.shape_cast %8 : vector<1x2x128xbf16> to vector<2x128xbf16>
    %10 = arith.extf %9 : vector<2x128xbf16> to vector<2x128xf32>
    %c0_7 = arith.constant 0 : index
    %c0_8 = arith.constant 0 : index
    %11 = vector.load %arg7[%c0_7, %c0_8] : memref<64x128xbf16, #tpu.memory_space<vmem>>, vector<64x128xbf16>
    %cst = arith.constant dense<0.000000e+00> : vector<2x128xf32>
    %12 = tpu.matmul %6, %11, %cst {dimension_numbers = #tpu.dot_dimension_numbers<[1], [0], [0], [1], [0, 0, 1, 1], [], []>} : vector<2x64xbf16>, vector<64x128xbf16>, vector<2x128xf32> -> vector<2x128xf32>
    %13 = arith.addf %10, %12 : vector<2x128xf32>
    %c0_9 = arith.constant 0 : index
    %c0_10 = arith.constant 0 : index
    %14 = vector.load %arg17[%c0_9, %c0_10] : memref<2x32xf32, #tpu.memory_space<vmem>>, vector<2x32xf32>
    %15 = vector.extract_strided_slice %13 {offsets = [0, 0], sizes = [2, 96], strides = [1, 1]} : vector<2x128xf32> to vector<2x96xf32>
    %16 = arith.negf %15 : vector<2x96xf32>
    %17 = math.exp %16 : vector<2x96xf32>
    %cst_11 = arith.constant 1.000000e+00 : f32
    %18 = vector.broadcast %cst_11 : f32 to vector<2x96xf32>
    %19 = arith.addf %18, %17 : vector<2x96xf32>
    %20 = arith.divf %18, %19 : vector<2x96xf32>
    %21 = vector.extract_strided_slice %20 {offsets = [0, 0], sizes = [2, 32], strides = [1, 1]} : vector<2x96xf32> to vector<2x32xf32>
    %22 = vector.extract_strided_slice %20 {offsets = [0, 32], sizes = [2, 32], strides = [1, 1]} : vector<2x96xf32> to vector<2x32xf32>
    %23 = vector.extract_strided_slice %20 {offsets = [0, 64], sizes = [2, 32], strides = [1, 1]} : vector<2x96xf32> to vector<2x32xf32>
    %24 = vector.extract_strided_slice %13 {offsets = [0, 96], sizes = [2, 32], strides = [1, 1]} : vector<2x128xf32> to vector<2x32xf32>
    %25 = math.tanh %24 : vector<2x32xf32>
    %26 = arith.mulf %22, %14 : vector<2x32xf32>
    %27 = arith.mulf %21, %25 : vector<2x32xf32>
    %28 = arith.addf %26, %27 : vector<2x32xf32>
    %29 = math.tanh %28 : vector<2x32xf32>
    %30 = arith.mulf %23, %29 : vector<2x32xf32>
    %c0_12 = arith.constant 0 : index
    %c0_13 = arith.constant 0 : index
    %31 = vector.load %arg16[%c0_12, %c0_13] : memref<2x32xf32, #tpu.memory_space<vmem>>, vector<2x32xf32>
    tpu.vector_store %arg16[%c0_12, %c0_13], %30 {strides = array<i32>} : memref<2x32xf32, #tpu.memory_space<vmem>>, vector<2x32xf32>,
    %c0_14 = arith.constant 0 : index
    %c0_15 = arith.constant 0 : index
    %32 = vector.load %arg17[%c0_14, %c0_15] : memref<2x32xf32, #tpu.memory_space<vmem>>, vector<2x32xf32>
    tpu.vector_store %arg17[%c0_14, %c0_15], %28 {strides = array<i32>} : memref<2x32xf32, #tpu.memory_space<vmem>>, vector<2x32xf32>,
    %33 = arith.truncf %30 : vector<2x32xf32> to vector<2x32xbf16>
    %c0_16 = arith.constant 0 : index
    %c0_17 = arith.constant 0 : index
    %34 = vector.load %arg8[%c0_16, %c0_17] : memref<32x64xbf16, #tpu.memory_space<vmem>>, vector<32x64xbf16>
    %cst_18 = arith.constant dense<0.000000e+00> : vector<2x64xf32>
    %35 = tpu.matmul %33, %34, %cst_18 {dimension_numbers = #tpu.dot_dimension_numbers<[1], [0], [0], [1], [0, 0, 1, 1], [], []>} : vector<2x32xbf16>, vector<32x64xbf16>, vector<2x64xf32> -> vector<2x64xf32>
    %36 = vector.extract_strided_slice %35 {offsets = [0, 0], sizes = [2, 32], strides = [1, 1]} : vector<2x64xf32> to vector<2x32xf32>
    %c0_19 = arith.constant 0 : index
    %c0_20 = arith.constant 0 : index
    %c0_21 = arith.constant 0 : index
    %37 = vector.load %arg2[%c0_19, %c0_20, %c0_21] : memref<2x6x32xf32, #tpu.memory_space<vmem>>, vector<2x6x32xf32>
    %c0_22 = arith.constant 0 : index
    %c0_23 = arith.constant 0 : index
    %c0_24 = arith.constant 0 : index
    %38 = vector.load %arg4[%c0_22, %c0_23, %c0_24] : memref<2x6x32xbf16, #tpu.memory_space<vmem>>, vector<2x6x32xbf16>
    %c0_25 = arith.constant 0 : index
    %c0_26 = arith.constant 0 : index
    %39 = vector.load %arg9[%c0_25, %c0_26] : memref<1x32xf32, #tpu.memory_space<vmem>>, vector<1x32xf32>
    %40 = vector.shape_cast %39 : vector<1x32xf32> to vector<1x1x32xf32>
    %c0_27 = arith.constant 0 : index
    %c0_28 = arith.constant 0 : index
    %41 = vector.load %arg6[%c0_27, %c0_28] : memref<2x6xf32, #tpu.memory_space<vmem>>, vector<2x6xf32>
    %42 = vector.shape_cast %36 : vector<2x32xf32> to vector<2x1x32xf32>
    %43 = vector.broadcast %42 : vector<2x1x32xf32> to vector<2x6x32xf32>
    %44 = arith.addf %43, %37 : vector<2x6x32xf32>
    %45 = math.tanh %44 : vector<2x6x32xf32>
    %46 = vector.broadcast %40 : vector<1x1x32xf32> to vector<2x6x32xf32>
    %47 = arith.mulf %45, %46 : vector<2x6x32xf32>
    %cst_29 = arith.constant dense<0.000000e+00> : vector<2x6xf32>
    %48 = vector.multi_reduction <add>, %47, %cst_29 [2] : vector<2x6x32xf32> to vector<2x6xf32>
    %49 = arith.addf %48, %41 : vector<2x6xf32>
    %cst_30 = arith.constant dense<0xFF800000> : vector<2xf32>
    %50 = vector.multi_reduction <maximumf>, %49, %cst_30 [1] : vector<2x6xf32> to vector<2xf32>
    %cst_31 = arith.constant 0xFF800000 : f32
    %51 = vector.broadcast %cst_31 : f32 to vector<2xf32>
    %52 = arith.maximumf %51, %50 : vector<2xf32>
    %53 = vector.shape_cast %52 : vector<2xf32> to vector<2x1xf32>
    %54 = vector.broadcast %53 : vector<2x1xf32> to vector<2x6xf32>
    %55 = arith.subf %49, %54 : vector<2x6xf32>
    %56 = math.exp %55 : vector<2x6xf32>
    %cst_32 = arith.constant dense<0.000000e+00> : vector<2xf32>
    %57 = vector.multi_reduction <add>, %56, %cst_32 [1] : vector<2x6xf32> to vector<2xf32>
    %58 = vector.shape_cast %57 : vector<2xf32> to vector<2x1xf32>
    %59 = vector.broadcast %58 : vector<2x1xf32> to vector<2x6xf32>
    %60 = arith.divf %56, %59 : vector<2x6xf32>
    %61 = vector.shape_cast %60 : vector<2x6xf32> to vector<2x6x1xf32>
    %62 = arith.extf %38 : vector<2x6x32xbf16> to vector<2x6x32xf32>
    %63 = vector.broadcast %61 : vector<2x6x1xf32> to vector<2x6x32xf32>
    %64 = arith.mulf %63, %62 : vector<2x6x32xf32>
    %cst_33 = arith.constant dense<0.000000e+00> : vector<2x32xf32>
    %65 = vector.multi_reduction <add>, %64, %cst_33 [1] : vector<2x6x32xf32> to vector<2x32xf32>
    %66 = vector.extract_strided_slice %35 {offsets = [0, 32], sizes = [2, 32], strides = [1, 1]} : vector<2x64xf32> to vector<2x32xf32>
    %c0_34 = arith.constant 0 : index
    %c0_35 = arith.constant 0 : index
    %c0_36 = arith.constant 0 : index
    %67 = vector.load %arg3[%c0_34, %c0_35, %c0_36] : memref<2x8x32xf32, #tpu.memory_space<vmem>>, vector<2x8x32xf32>
    %c0_37 = arith.constant 0 : index
    %c0_38 = arith.constant 0 : index
    %c0_39 = arith.constant 0 : index
    %68 = vector.load %arg5[%c0_37, %c0_38, %c0_39] : memref<2x8x64xbf16, #tpu.memory_space<vmem>>, vector<2x8x64xbf16>
    %c0_40 = arith.constant 0 : index
    %c0_41 = arith.constant 0 : index
    %69 = vector.load %arg10[%c0_40, %c0_41] : memref<1x32xf32, #tpu.memory_space<vmem>>, vector<1x32xf32>
    %70 = vector.shape_cast %69 : vector<1x32xf32> to vector<1x1x32xf32>
    %71 = vector.shape_cast %66 : vector<2x32xf32> to vector<2x1x32xf32>
    %72 = vector.broadcast %71 : vector<2x1x32xf32> to vector<2x8x32xf32>
    %73 = arith.addf %72, %67 : vector<2x8x32xf32>
    %74 = math.tanh %73 : vector<2x8x32xf32>
    %75 = vector.broadcast %70 : vector<1x1x32xf32> to vector<2x8x32xf32>
    %76 = arith.mulf %74, %75 : vector<2x8x32xf32>
    %cst_42 = arith.constant dense<0.000000e+00> : vector<2x8xf32>
    %77 = vector.multi_reduction <add>, %76, %cst_42 [2] : vector<2x8x32xf32> to vector<2x8xf32>
    %cst_43 = arith.constant dense<0xFF800000> : vector<2xf32>
    %78 = vector.multi_reduction <maximumf>, %77, %cst_43 [1] : vector<2x8xf32> to vector<2xf32>
    %cst_44 = arith.constant 0xFF800000 : f32
    %79 = vector.broadcast %cst_44 : f32 to vector<2xf32>
    %80 = arith.maximumf %79, %78 : vector<2xf32>
    %81 = vector.shape_cast %80 : vector<2xf32> to vector<2x1xf32>
    %82 = vector.broadcast %81 : vector<2x1xf32> to vector<2x8xf32>
    %83 = arith.subf %77, %82 : vector<2x8xf32>
    %84 = math.exp %83 : vector<2x8xf32>
    %cst_45 = arith.constant dense<0.000000e+00> : vector<2xf32>
    %85 = vector.multi_reduction <add>, %84, %cst_45 [1] : vector<2x8xf32> to vector<2xf32>
    %86 = vector.shape_cast %85 : vector<2xf32> to vector<2x1xf32>
    %87 = vector.broadcast %86 : vector<2x1xf32> to vector<2x8xf32>
    %88 = arith.divf %84, %87 : vector<2x8xf32>
    %89 = vector.shape_cast %88 : vector<2x8xf32> to vector<2x8x1xf32>
    %90 = arith.extf %68 : vector<2x8x64xbf16> to vector<2x8x64xf32>
    %91 = vector.broadcast %89 : vector<2x8x1xf32> to vector<2x8x64xf32>
    %92 = arith.mulf %91, %90 : vector<2x8x64xf32>
    %cst_46 = arith.constant dense<0.000000e+00> : vector<2x64xf32>
    %93 = vector.multi_reduction <add>, %92, %cst_46 [1] : vector<2x8x64xf32> to vector<2x64xf32>
    %94 = tpu.concatenate %65, %93, %30, %3 in 1 : vector<2x32xf32>, vector<2x64xf32>, vector<2x32xf32>, vector<2x32xf32> -> vector<2x160xf32>
    %95 = arith.truncf %94 : vector<2x160xf32> to vector<2x160xbf16>
    %c0_47 = arith.constant 0 : index
    %c0_48 = arith.constant 0 : index
    %96 = vector.load %arg11[%c0_47, %c0_48] : memref<160x128xbf16, #tpu.memory_space<vmem>>, vector<160x128xbf16>
    %cst_49 = arith.constant dense<0.000000e+00> : vector<2x128xf32>
    %97 = tpu.matmul %95, %96, %cst_49 {dimension_numbers = #tpu.dot_dimension_numbers<[1], [0], [0], [1], [0, 0, 1, 1], [], []>} : vector<2x160xbf16>, vector<160x128xbf16>, vector<2x128xf32> -> vector<2x128xf32>
    %c0_50 = arith.constant 0 : index
    %c0_51 = arith.constant 0 : index
    %98 = vector.load %arg12[%c0_50, %c0_51] : memref<1x128xf32, #tpu.memory_space<vmem>>, vector<1x128xf32>
    %99 = vector.broadcast %98 : vector<1x128xf32> to vector<2x128xf32>
    %100 = arith.addf %97, %99 : vector<2x128xf32>
    %c0_52 = arith.constant 0 : index
    %c0_53 = arith.constant 0 : index
    %101 = vector.load %arg15[%c0_52, %c0_53] : memref<2x32xf32, #tpu.memory_space<vmem>>, vector<2x32xf32>
    %102 = vector.extract_strided_slice %100 {offsets = [0, 0], sizes = [2, 96], strides = [1, 1]} : vector<2x128xf32> to vector<2x96xf32>
    %103 = arith.negf %102 : vector<2x96xf32>
    %104 = math.exp %103 : vector<2x96xf32>
    %cst_54 = arith.constant 1.000000e+00 : f32
    %105 = vector.broadcast %cst_54 : f32 to vector<2x96xf32>
    %106 = arith.addf %105, %104 : vector<2x96xf32>
    %107 = arith.divf %105, %106 : vector<2x96xf32>
    %108 = vector.extract_strided_slice %107 {offsets = [0, 0], sizes = [2, 32], strides = [1, 1]} : vector<2x96xf32> to vector<2x32xf32>
    %109 = vector.extract_strided_slice %107 {offsets = [0, 32], sizes = [2, 32], strides = [1, 1]} : vector<2x96xf32> to vector<2x32xf32>
    %110 = vector.extract_strided_slice %107 {offsets = [0, 64], sizes = [2, 32], strides = [1, 1]} : vector<2x96xf32> to vector<2x32xf32>
    %111 = vector.extract_strided_slice %100 {offsets = [0, 96], sizes = [2, 32], strides = [1, 1]} : vector<2x128xf32> to vector<2x32xf32>
    %112 = math.tanh %111 : vector<2x32xf32>
    %113 = arith.mulf %109, %101 : vector<2x32xf32>
    %114 = arith.mulf %108, %112 : vector<2x32xf32>
    %115 = arith.addf %113, %114 : vector<2x32xf32>
    %116 = math.tanh %115 : vector<2x32xf32>
    %117 = arith.mulf %110, %116 : vector<2x32xf32>
    %c0_55 = arith.constant 0 : index
    %c0_56 = arith.constant 0 : index
    %118 = vector.load %arg14[%c0_55, %c0_56] : memref<2x32xf32, #tpu.memory_space<vmem>>, vector<2x32xf32>
    tpu.vector_store %arg14[%c0_55, %c0_56], %117 {strides = array<i32>} : memref<2x32xf32, #tpu.memory_space<vmem>>, vector<2x32xf32>,
    %c0_57 = arith.constant 0 : index
    %c0_58 = arith.constant 0 : index
    %119 = vector.load %arg15[%c0_57, %c0_58] : memref<2x32xf32, #tpu.memory_space<vmem>>, vector<2x32xf32>
    tpu.vector_store %arg15[%c0_57, %c0_58], %115 {strides = array<i32>} : memref<2x32xf32, #tpu.memory_space<vmem>>, vector<2x32xf32>,
    %c2_i32 = arith.constant 2 : i32
    %120 = arith.muli %c0_i32_1, %c2_i32 : i32
    %121 = arith.index_cast %120 : i32 to index
    %c0_59 = arith.constant 0 : index
    %122 = vector.load %arg13[%121, %c0_59] : memref<8x32xf32, #tpu.memory_space<vmem>>, vector<2x32xf32>
    tpu.vector_store %arg13[%121, %c0_59], %117 {strides = array<i32>} : memref<8x32xf32, #tpu.memory_space<vmem>>, vector<2x32xf32>,
    %c1_i32 = arith.constant 1 : i32
    %c0_60 = arith.constant 0 : index
    %c0_61 = arith.constant 0 : index
    %123 = vector.load %arg14[%c0_60, %c0_61] : memref<2x32xf32, #tpu.memory_space<vmem>>, vector<2x32xf32>
    %c0_62 = arith.constant 0 : index
    %c0_63 = arith.constant 0 : index
    %124 = vector.load %arg16[%c0_62, %c0_63] : memref<2x32xf32, #tpu.memory_space<vmem>>, vector<2x32xf32>
    %125 = tpu.concatenate %123, %124 in 1 : vector<2x32xf32>, vector<2x32xf32> -> vector<2x64xf32>
    %126 = arith.truncf %125 : vector<2x64xf32> to vector<2x64xbf16>
    %127 = arith.index_cast %c1_i32 : i32 to index
    %c0_64 = arith.constant 0 : index
    %c0_65 = arith.constant 0 : index
    %128 = vector.load %arg1[%127, %c0_64, %c0_65] : memref<4x2x128xbf16, #tpu.memory_space<vmem>>, vector<1x2x128xbf16>
    %129 = vector.shape_cast %128 : vector<1x2x128xbf16> to vector<2x128xbf16>
    %130 = arith.extf %129 : vector<2x128xbf16> to vector<2x128xf32>
    %c0_66 = arith.constant 0 : index
    %c0_67 = arith.constant 0 : index
    %131 = vector.load %arg7[%c0_66, %c0_67] : memref<64x128xbf16, #tpu.memory_space<vmem>>, vector<64x128xbf16>
    %cst_68 = arith.constant dense<0.000000e+00> : vector<2x128xf32>
    %132 = tpu.matmul %126, %131, %cst_68 {dimension_numbers = #tpu.dot_dimension_numbers<[1], [0], [0], [1], [0, 0, 1, 1], [], []>} : vector<2x64xbf16>, vector<64x128xbf16>, vector<2x128xf32> -> vector<2x128xf32>
    %133 = arith.addf %130, %132 : vector<2x128xf32>
    %c0_69 = arith.constant 0 : index
    %c0_70 = arith.constant 0 : index
    %134 = vector.load %arg17[%c0_69, %c0_70] : memref<2x32xf32, #tpu.memory_space<vmem>>, vector<2x32xf32>
    %135 = vector.extract_strided_slice %133 {offsets = [0, 0], sizes = [2, 96], strides = [1, 1]} : vector<2x128xf32> to vector<2x96xf32>
    %136 = arith.negf %135 : vector<2x96xf32>
    %137 = math.exp %136 : vector<2x96xf32>
    %cst_71 = arith.constant 1.000000e+00 : f32
    %138 = vector.broadcast %cst_71 : f32 to vector<2x96xf32>
    %139 = arith.addf %138, %137 : vector<2x96xf32>
    %140 = arith.divf %138, %139 : vector<2x96xf32>
    %141 = vector.extract_strided_slice %140 {offsets = [0, 0], sizes = [2, 32], strides = [1, 1]} : vector<2x96xf32> to vector<2x32xf32>
    %142 = vector.extract_strided_slice %140 {offsets = [0, 32], sizes = [2, 32], strides = [1, 1]} : vector<2x96xf32> to vector<2x32xf32>
    %143 = vector.extract_strided_slice %140 {offsets = [0, 64], sizes = [2, 32], strides = [1, 1]} : vector<2x96xf32> to vector<2x32xf32>
    %144 = vector.extract_strided_slice %133 {offsets = [0, 96], sizes = [2, 32], strides = [1, 1]} : vector<2x128xf32> to vector<2x32xf32>
    %145 = math.tanh %144 : vector<2x32xf32>
    %146 = arith.mulf %142, %134 : vector<2x32xf32>
    %147 = arith.mulf %141, %145 : vector<2x32xf32>
    %148 = arith.addf %146, %147 : vector<2x32xf32>
    %149 = math.tanh %148 : vector<2x32xf32>
    %150 = arith.mulf %143, %149 : vector<2x32xf32>
    %c0_72 = arith.constant 0 : index
    %c0_73 = arith.constant 0 : index
    %151 = vector.load %arg16[%c0_72, %c0_73] : memref<2x32xf32, #tpu.memory_space<vmem>>, vector<2x32xf32>
    tpu.vector_store %arg16[%c0_72, %c0_73], %150 {strides = array<i32>} : memref<2x32xf32, #tpu.memory_space<vmem>>, vector<2x32xf32>,
    %c0_74 = arith.constant 0 : index
    %c0_75 = arith.constant 0 : index
    %152 = vector.load %arg17[%c0_74, %c0_75] : memref<2x32xf32, #tpu.memory_space<vmem>>, vector<2x32xf32>
    tpu.vector_store %arg17[%c0_74, %c0_75], %148 {strides = array<i32>} : memref<2x32xf32, #tpu.memory_space<vmem>>, vector<2x32xf32>,
    %153 = arith.truncf %150 : vector<2x32xf32> to vector<2x32xbf16>
    %c0_76 = arith.constant 0 : index
    %c0_77 = arith.constant 0 : index
    %154 = vector.load %arg8[%c0_76, %c0_77] : memref<32x64xbf16, #tpu.memory_space<vmem>>, vector<32x64xbf16>
    %cst_78 = arith.constant dense<0.000000e+00> : vector<2x64xf32>
    %155 = tpu.matmul %153, %154, %cst_78 {dimension_numbers = #tpu.dot_dimension_numbers<[1], [0], [0], [1], [0, 0, 1, 1], [], []>} : vector<2x32xbf16>, vector<32x64xbf16>, vector<2x64xf32> -> vector<2x64xf32>
    %156 = vector.extract_strided_slice %155 {offsets = [0, 0], sizes = [2, 32], strides = [1, 1]} : vector<2x64xf32> to vector<2x32xf32>
    %c0_79 = arith.constant 0 : index
    %c0_80 = arith.constant 0 : index
    %c0_81 = arith.constant 0 : index
    %157 = vector.load %arg2[%c0_79, %c0_80, %c0_81] : memref<2x6x32xf32, #tpu.memory_space<vmem>>, vector<2x6x32xf32>
    %c0_82 = arith.constant 0 : index
    %c0_83 = arith.constant 0 : index
    %c0_84 = arith.constant 0 : index
    %158 = vector.load %arg4[%c0_82, %c0_83, %c0_84] : memref<2x6x32xbf16, #tpu.memory_space<vmem>>, vector<2x6x32xbf16>
    %c0_85 = arith.constant 0 : index
    %c0_86 = arith.constant 0 : index
    %159 = vector.load %arg9[%c0_85, %c0_86] : memref<1x32xf32, #tpu.memory_space<vmem>>, vector<1x32xf32>
    %160 = vector.shape_cast %159 : vector<1x32xf32> to vector<1x1x32xf32>
    %c0_87 = arith.constant 0 : index
    %c0_88 = arith.constant 0 : index
    %161 = vector.load %arg6[%c0_87, %c0_88] : memref<2x6xf32, #tpu.memory_space<vmem>>, vector<2x6xf32>
    %162 = vector.shape_cast %156 : vector<2x32xf32> to vector<2x1x32xf32>
    %163 = vector.broadcast %162 : vector<2x1x32xf32> to vector<2x6x32xf32>
    %164 = arith.addf %163, %157 : vector<2x6x32xf32>
    %165 = math.tanh %164 : vector<2x6x32xf32>
    %166 = vector.broadcast %160 : vector<1x1x32xf32> to vector<2x6x32xf32>
    %167 = arith.mulf %165, %166 : vector<2x6x32xf32>
    %cst_89 = arith.constant dense<0.000000e+00> : vector<2x6xf32>
    %168 = vector.multi_reduction <add>, %167, %cst_89 [2] : vector<2x6x32xf32> to vector<2x6xf32>
    %169 = arith.addf %168, %161 : vector<2x6xf32>
    %cst_90 = arith.constant dense<0xFF800000> : vector<2xf32>
    %170 = vector.multi_reduction <maximumf>, %169, %cst_90 [1] : vector<2x6xf32> to vector<2xf32>
    %cst_91 = arith.constant 0xFF800000 : f32
    %171 = vector.broadcast %cst_91 : f32 to vector<2xf32>
    %172 = arith.maximumf %171, %170 : vector<2xf32>
    %173 = vector.shape_cast %172 : vector<2xf32> to vector<2x1xf32>
    %174 = vector.broadcast %173 : vector<2x1xf32> to vector<2x6xf32>
    %175 = arith.subf %169, %174 : vector<2x6xf32>
    %176 = math.exp %175 : vector<2x6xf32>
    %cst_92 = arith.constant dense<0.000000e+00> : vector<2xf32>
    %177 = vector.multi_reduction <add>, %176, %cst_92 [1] : vector<2x6xf32> to vector<2xf32>
    %178 = vector.shape_cast %177 : vector<2xf32> to vector<2x1xf32>
    %179 = vector.broadcast %178 : vector<2x1xf32> to vector<2x6xf32>
    %180 = arith.divf %176, %179 : vector<2x6xf32>
    %181 = vector.shape_cast %180 : vector<2x6xf32> to vector<2x6x1xf32>
    %182 = arith.extf %158 : vector<2x6x32xbf16> to vector<2x6x32xf32>
    %183 = vector.broadcast %181 : vector<2x6x1xf32> to vector<2x6x32xf32>
    %184 = arith.mulf %183, %182 : vector<2x6x32xf32>
    %cst_93 = arith.constant dense<0.000000e+00> : vector<2x32xf32>
    %185 = vector.multi_reduction <add>, %184, %cst_93 [1] : vector<2x6x32xf32> to vector<2x32xf32>
    %186 = vector.extract_strided_slice %155 {offsets = [0, 32], sizes = [2, 32], strides = [1, 1]} : vector<2x64xf32> to vector<2x32xf32>
    %c0_94 = arith.constant 0 : index
    %c0_95 = arith.constant 0 : index
    %c0_96 = arith.constant 0 : index
    %187 = vector.load %arg3[%c0_94, %c0_95, %c0_96] : memref<2x8x32xf32, #tpu.memory_space<vmem>>, vector<2x8x32xf32>
    %c0_97 = arith.constant 0 : index
    %c0_98 = arith.constant 0 : index
    %c0_99 = arith.constant 0 : index
    %188 = vector.load %arg5[%c0_97, %c0_98, %c0_99] : memref<2x8x64xbf16, #tpu.memory_space<vmem>>, vector<2x8x64xbf16>
    %c0_100 = arith.constant 0 : index
    %c0_101 = arith.constant 0 : index
    %189 = vector.load %arg10[%c0_100, %c0_101] : memref<1x32xf32, #tpu.memory_space<vmem>>, vector<1x32xf32>
    %190 = vector.shape_cast %189 : vector<1x32xf32> to vector<1x1x32xf32>
    %191 = vector.shape_cast %186 : vector<2x32xf32> to vector<2x1x32xf32>
    %192 = vector.broadcast %191 : vector<2x1x32xf32> to vector<2x8x32xf32>
    %193 = arith.addf %192, %187 : vector<2x8x32xf32>
    %194 = math.tanh %193 : vector<2x8x32xf32>
    %195 = vector.broadcast %190 : vector<1x1x32xf32> to vector<2x8x32xf32>
    %196 = arith.mulf %194, %195 : vector<2x8x32xf32>
    %cst_102 = arith.constant dense<0.000000e+00> : vector<2x8xf32>
    %197 = vector.multi_reduction <add>, %196, %cst_102 [2] : vector<2x8x32xf32> to vector<2x8xf32>
    %cst_103 = arith.constant dense<0xFF800000> : vector<2xf32>
    %198 = vector.multi_reduction <maximumf>, %197, %cst_103 [1] : vector<2x8xf32> to vector<2xf32>
    %cst_104 = arith.constant 0xFF800000 : f32
    %199 = vector.broadcast %cst_104 : f32 to vector<2xf32>
    %200 = arith.maximumf %199, %198 : vector<2xf32>
    %201 = vector.shape_cast %200 : vector<2xf32> to vector<2x1xf32>
    %202 = vector.broadcast %201 : vector<2x1xf32> to vector<2x8xf32>
    %203 = arith.subf %197, %202 : vector<2x8xf32>
    %204 = math.exp %203 : vector<2x8xf32>
    %cst_105 = arith.constant dense<0.000000e+00> : vector<2xf32>
    %205 = vector.multi_reduction <add>, %204, %cst_105 [1] : vector<2x8xf32> to vector<2xf32>
    %206 = vector.shape_cast %205 : vector<2xf32> to vector<2x1xf32>
    %207 = vector.broadcast %206 : vector<2x1xf32> to vector<2x8xf32>
    %208 = arith.divf %204, %207 : vector<2x8xf32>
    %209 = vector.shape_cast %208 : vector<2x8xf32> to vector<2x8x1xf32>
    %210 = arith.extf %188 : vector<2x8x64xbf16> to vector<2x8x64xf32>
    %211 = vector.broadcast %209 : vector<2x8x1xf32> to vector<2x8x64xf32>
    %212 = arith.mulf %211, %210 : vector<2x8x64xf32>
    %cst_106 = arith.constant dense<0.000000e+00> : vector<2x64xf32>
    %213 = vector.multi_reduction <add>, %212, %cst_106 [1] : vector<2x8x64xf32> to vector<2x64xf32>
    %214 = tpu.concatenate %185, %213, %150, %123 in 1 : vector<2x32xf32>, vector<2x64xf32>, vector<2x32xf32>, vector<2x32xf32> -> vector<2x160xf32>
    %215 = arith.truncf %214 : vector<2x160xf32> to vector<2x160xbf16>
    %c0_107 = arith.constant 0 : index
    %c0_108 = arith.constant 0 : index
    %216 = vector.load %arg11[%c0_107, %c0_108] : memref<160x128xbf16, #tpu.memory_space<vmem>>, vector<160x128xbf16>
    %cst_109 = arith.constant dense<0.000000e+00> : vector<2x128xf32>
    %217 = tpu.matmul %215, %216, %cst_109 {dimension_numbers = #tpu.dot_dimension_numbers<[1], [0], [0], [1], [0, 0, 1, 1], [], []>} : vector<2x160xbf16>, vector<160x128xbf16>, vector<2x128xf32> -> vector<2x128xf32>
    %c0_110 = arith.constant 0 : index
    %c0_111 = arith.constant 0 : index
    %218 = vector.load %arg12[%c0_110, %c0_111] : memref<1x128xf32, #tpu.memory_space<vmem>>, vector<1x128xf32>
    %219 = vector.broadcast %218 : vector<1x128xf32> to vector<2x128xf32>
    %220 = arith.addf %217, %219 : vector<2x128xf32>
    %c0_112 = arith.constant 0 : index
    %c0_113 = arith.constant 0 : index
    %221 = vector.load %arg15[%c0_112, %c0_113] : memref<2x32xf32, #tpu.memory_space<vmem>>, vector<2x32xf32>
    %222 = vector.extract_strided_slice %220 {offsets = [0, 0], sizes = [2, 96], strides = [1, 1]} : vector<2x128xf32> to vector<2x96xf32>
    %223 = arith.negf %222 : vector<2x96xf32>
    %224 = math.exp %223 : vector<2x96xf32>
    %cst_114 = arith.constant 1.000000e+00 : f32
    %225 = vector.broadcast %cst_114 : f32 to vector<2x96xf32>
    %226 = arith.addf %225, %224 : vector<2x96xf32>
    %227 = arith.divf %225, %226 : vector<2x96xf32>
    %228 = vector.extract_strided_slice %227 {offsets = [0, 0], sizes = [2, 32], strides = [1, 1]} : vector<2x96xf32> to vector<2x32xf32>
    %229 = vector.extract_strided_slice %227 {offsets = [0, 32], sizes = [2, 32], strides = [1, 1]} : vector<2x96xf32> to vector<2x32xf32>
    %230 = vector.extract_strided_slice %227 {offsets = [0, 64], sizes = [2, 32], strides = [1, 1]} : vector<2x96xf32> to vector<2x32xf32>
    %231 = vector.extract_strided_slice %220 {offsets = [0, 96], sizes = [2, 32], strides = [1, 1]} : vector<2x128xf32> to vector<2x32xf32>
    %232 = math.tanh %231 : vector<2x32xf32>
    %233 = arith.mulf %229, %221 : vector<2x32xf32>
    %234 = arith.mulf %228, %232 : vector<2x32xf32>
    %235 = arith.addf %233, %234 : vector<2x32xf32>
    %236 = math.tanh %235 : vector<2x32xf32>
    %237 = arith.mulf %230, %236 : vector<2x32xf32>
    %c0_115 = arith.constant 0 : index
    %c0_116 = arith.constant 0 : index
    %238 = vector.load %arg14[%c0_115, %c0_116] : memref<2x32xf32, #tpu.memory_space<vmem>>, vector<2x32xf32>
    tpu.vector_store %arg14[%c0_115, %c0_116], %237 {strides = array<i32>} : memref<2x32xf32, #tpu.memory_space<vmem>>, vector<2x32xf32>,
    %c0_117 = arith.constant 0 : index
    %c0_118 = arith.constant 0 : index
    %239 = vector.load %arg15[%c0_117, %c0_118] : memref<2x32xf32, #tpu.memory_space<vmem>>, vector<2x32xf32>
    tpu.vector_store %arg15[%c0_117, %c0_118], %235 {strides = array<i32>} : memref<2x32xf32, #tpu.memory_space<vmem>>, vector<2x32xf32>,
    %c2_i32_119 = arith.constant 2 : i32
    %240 = arith.muli %c1_i32, %c2_i32_119 : i32
    %241 = arith.index_cast %240 : i32 to index
    %c0_120 = arith.constant 0 : index
    %242 = vector.load %arg13[%241, %c0_120] : memref<8x32xf32, #tpu.memory_space<vmem>>, vector<2x32xf32>
    tpu.vector_store %arg13[%241, %c0_120], %237 {strides = array<i32>} : memref<8x32xf32, #tpu.memory_space<vmem>>, vector<2x32xf32>,
    %c2_i32_121 = arith.constant 2 : i32
    %c0_122 = arith.constant 0 : index
    %c0_123 = arith.constant 0 : index
    %243 = vector.load %arg14[%c0_122, %c0_123] : memref<2x32xf32, #tpu.memory_space<vmem>>, vector<2x32xf32>
    %c0_124 = arith.constant 0 : index
    %c0_125 = arith.constant 0 : index
    %244 = vector.load %arg16[%c0_124, %c0_125] : memref<2x32xf32, #tpu.memory_space<vmem>>, vector<2x32xf32>
    %245 = tpu.concatenate %243, %244 in 1 : vector<2x32xf32>, vector<2x32xf32> -> vector<2x64xf32>
    %246 = arith.truncf %245 : vector<2x64xf32> to vector<2x64xbf16>
    %247 = arith.index_cast %c2_i32_121 : i32 to index
    %c0_126 = arith.constant 0 : index
    %c0_127 = arith.constant 0 : index
    %248 = vector.load %arg1[%247, %c0_126, %c0_127] : memref<4x2x128xbf16, #tpu.memory_space<vmem>>, vector<1x2x128xbf16>
    %249 = vector.shape_cast %248 : vector<1x2x128xbf16> to vector<2x128xbf16>
    %250 = arith.extf %249 : vector<2x128xbf16> to vector<2x128xf32>
    %c0_128 = arith.constant 0 : index
    %c0_129 = arith.constant 0 : index
    %251 = vector.load %arg7[%c0_128, %c0_129] : memref<64x128xbf16, #tpu.memory_space<vmem>>, vector<64x128xbf16>
    %cst_130 = arith.constant dense<0.000000e+00> : vector<2x128xf32>
    %252 = tpu.matmul %246, %251, %cst_130 {dimension_numbers = #tpu.dot_dimension_numbers<[1], [0], [0], [1], [0, 0, 1, 1], [], []>} : vector<2x64xbf16>, vector<64x128xbf16>, vector<2x128xf32> -> vector<2x128xf32>
    %253 = arith.addf %250, %252 : vector<2x128xf32>
    %c0_131 = arith.constant 0 : index
    %c0_132 = arith.constant 0 : index
    %254 = vector.load %arg17[%c0_131, %c0_132] : memref<2x32xf32, #tpu.memory_space<vmem>>, vector<2x32xf32>
    %255 = vector.extract_strided_slice %253 {offsets = [0, 0], sizes = [2, 96], strides = [1, 1]} : vector<2x128xf32> to vector<2x96xf32>
    %256 = arith.negf %255 : vector<2x96xf32>
    %257 = math.exp %256 : vector<2x96xf32>
    %cst_133 = arith.constant 1.000000e+00 : f32
    %258 = vector.broadcast %cst_133 : f32 to vector<2x96xf32>
    %259 = arith.addf %258, %257 : vector<2x96xf32>
    %260 = arith.divf %258, %259 : vector<2x96xf32>
    %261 = vector.extract_strided_slice %260 {offsets = [0, 0], sizes = [2, 32], strides = [1, 1]} : vector<2x96xf32> to vector<2x32xf32>
    %262 = vector.extract_strided_slice %260 {offsets = [0, 32], sizes = [2, 32], strides = [1, 1]} : vector<2x96xf32> to vector<2x32xf32>
    %263 = vector.extract_strided_slice %260 {offsets = [0, 64], sizes = [2, 32], strides = [1, 1]} : vector<2x96xf32> to vector<2x32xf32>
    %264 = vector.extract_strided_slice %253 {offsets = [0, 96], sizes = [2, 32], strides = [1, 1]} : vector<2x128xf32> to vector<2x32xf32>
    %265 = math.tanh %264 : vector<2x32xf32>
    %266 = arith.mulf %262, %254 : vector<2x32xf32>
    %267 = arith.mulf %261, %265 : vector<2x32xf32>
    %268 = arith.addf %266, %267 : vector<2x32xf32>
    %269 = math.tanh %268 : vector<2x32xf32>
    %270 = arith.mulf %263, %269 : vector<2x32xf32>
    %c0_134 = arith.constant 0 : index
    %c0_135 = arith.constant 0 : index
    %271 = vector.load %arg16[%c0_134, %c0_135] : memref<2x32xf32, #tpu.memory_space<vmem>>, vector<2x32xf32>
    tpu.vector_store %arg16[%c0_134, %c0_135], %270 {strides = array<i32>} : memref<2x32xf32, #tpu.memory_space<vmem>>, vector<2x32xf32>,
    %c0_136 = arith.constant 0 : index
    %c0_137 = arith.constant 0 : index
    %272 = vector.load %arg17[%c0_136, %c0_137] : memref<2x32xf32, #tpu.memory_space<vmem>>, vector<2x32xf32>
    tpu.vector_store %arg17[%c0_136, %c0_137], %268 {strides = array<i32>} : memref<2x32xf32, #tpu.memory_space<vmem>>, vector<2x32xf32>,
    %273 = arith.truncf %270 : vector<2x32xf32> to vector<2x32xbf16>
    %c0_138 = arith.constant 0 : index
    %c0_139 = arith.constant 0 : index
    %274 = vector.load %arg8[%c0_138, %c0_139] : memref<32x64xbf16, #tpu.memory_space<vmem>>, vector<32x64xbf16>
    %cst_140 = arith.constant dense<0.000000e+00> : vector<2x64xf32>
    %275 = tpu.matmul %273, %274, %cst_140 {dimension_numbers = #tpu.dot_dimension_numbers<[1], [0], [0], [1], [0, 0, 1, 1], [], []>} : vector<2x32xbf16>, vector<32x64xbf16>, vector<2x64xf32> -> vector<2x64xf32>
    %276 = vector.extract_strided_slice %275 {offsets = [0, 0], sizes = [2, 32], strides = [1, 1]} : vector<2x64xf32> to vector<2x32xf32>
    %c0_141 = arith.constant 0 : index
    %c0_142 = arith.constant 0 : index
    %c0_143 = arith.constant 0 : index
    %277 = vector.load %arg2[%c0_141, %c0_142, %c0_143] : memref<2x6x32xf32, #tpu.memory_space<vmem>>, vector<2x6x32xf32>
    %c0_144 = arith.constant 0 : index
    %c0_145 = arith.constant 0 : index
    %c0_146 = arith.constant 0 : index
    %278 = vector.load %arg4[%c0_144, %c0_145, %c0_146] : memref<2x6x32xbf16, #tpu.memory_space<vmem>>, vector<2x6x32xbf16>
    %c0_147 = arith.constant 0 : index
    %c0_148 = arith.constant 0 : index
    %279 = vector.load %arg9[%c0_147, %c0_148] : memref<1x32xf32, #tpu.memory_space<vmem>>, vector<1x32xf32>
    %280 = vector.shape_cast %279 : vector<1x32xf32> to vector<1x1x32xf32>
    %c0_149 = arith.constant 0 : index
    %c0_150 = arith.constant 0 : index
    %281 = vector.load %arg6[%c0_149, %c0_150] : memref<2x6xf32, #tpu.memory_space<vmem>>, vector<2x6xf32>
    %282 = vector.shape_cast %276 : vector<2x32xf32> to vector<2x1x32xf32>
    %283 = vector.broadcast %282 : vector<2x1x32xf32> to vector<2x6x32xf32>
    %284 = arith.addf %283, %277 : vector<2x6x32xf32>
    %285 = math.tanh %284 : vector<2x6x32xf32>
    %286 = vector.broadcast %280 : vector<1x1x32xf32> to vector<2x6x32xf32>
    %287 = arith.mulf %285, %286 : vector<2x6x32xf32>
    %cst_151 = arith.constant dense<0.000000e+00> : vector<2x6xf32>
    %288 = vector.multi_reduction <add>, %287, %cst_151 [2] : vector<2x6x32xf32> to vector<2x6xf32>
    %289 = arith.addf %288, %281 : vector<2x6xf32>
    %cst_152 = arith.constant dense<0xFF800000> : vector<2xf32>
    %290 = vector.multi_reduction <maximumf>, %289, %cst_152 [1] : vector<2x6xf32> to vector<2xf32>
    %cst_153 = arith.constant 0xFF800000 : f32
    %291 = vector.broadcast %cst_153 : f32 to vector<2xf32>
    %292 = arith.maximumf %291, %290 : vector<2xf32>
    %293 = vector.shape_cast %292 : vector<2xf32> to vector<2x1xf32>
    %294 = vector.broadcast %293 : vector<2x1xf32> to vector<2x6xf32>
    %295 = arith.subf %289, %294 : vector<2x6xf32>
    %296 = math.exp %295 : vector<2x6xf32>
    %cst_154 = arith.constant dense<0.000000e+00> : vector<2xf32>
    %297 = vector.multi_reduction <add>, %296, %cst_154 [1] : vector<2x6xf32> to vector<2xf32>
    %298 = vector.shape_cast %297 : vector<2xf32> to vector<2x1xf32>
    %299 = vector.broadcast %298 : vector<2x1xf32> to vector<2x6xf32>
    %300 = arith.divf %296, %299 : vector<2x6xf32>
    %301 = vector.shape_cast %300 : vector<2x6xf32> to vector<2x6x1xf32>
    %302 = arith.extf %278 : vector<2x6x32xbf16> to vector<2x6x32xf32>
    %303 = vector.broadcast %301 : vector<2x6x1xf32> to vector<2x6x32xf32>
    %304 = arith.mulf %303, %302 : vector<2x6x32xf32>
    %cst_155 = arith.constant dense<0.000000e+00> : vector<2x32xf32>
    %305 = vector.multi_reduction <add>, %304, %cst_155 [1] : vector<2x6x32xf32> to vector<2x32xf32>
    %306 = vector.extract_strided_slice %275 {offsets = [0, 32], sizes = [2, 32], strides = [1, 1]} : vector<2x64xf32> to vector<2x32xf32>
    %c0_156 = arith.constant 0 : index
    %c0_157 = arith.constant 0 : index
    %c0_158 = arith.constant 0 : index
    %307 = vector.load %arg3[%c0_156, %c0_157, %c0_158] : memref<2x8x32xf32, #tpu.memory_space<vmem>>, vector<2x8x32xf32>
    %c0_159 = arith.constant 0 : index
    %c0_160 = arith.constant 0 : index
    %c0_161 = arith.constant 0 : index
    %308 = vector.load %arg5[%c0_159, %c0_160, %c0_161] : memref<2x8x64xbf16, #tpu.memory_space<vmem>>, vector<2x8x64xbf16>
    %c0_162 = arith.constant 0 : index
    %c0_163 = arith.constant 0 : index
    %309 = vector.load %arg10[%c0_162, %c0_163] : memref<1x32xf32, #tpu.memory_space<vmem>>, vector<1x32xf32>
    %310 = vector.shape_cast %309 : vector<1x32xf32> to vector<1x1x32xf32>
    %311 = vector.shape_cast %306 : vector<2x32xf32> to vector<2x1x32xf32>
    %312 = vector.broadcast %311 : vector<2x1x32xf32> to vector<2x8x32xf32>
    %313 = arith.addf %312, %307 : vector<2x8x32xf32>
    %314 = math.tanh %313 : vector<2x8x32xf32>
    %315 = vector.broadcast %310 : vector<1x1x32xf32> to vector<2x8x32xf32>
    %316 = arith.mulf %314, %315 : vector<2x8x32xf32>
    %cst_164 = arith.constant dense<0.000000e+00> : vector<2x8xf32>
    %317 = vector.multi_reduction <add>, %316, %cst_164 [2] : vector<2x8x32xf32> to vector<2x8xf32>
    %cst_165 = arith.constant dense<0xFF800000> : vector<2xf32>
    %318 = vector.multi_reduction <maximumf>, %317, %cst_165 [1] : vector<2x8xf32> to vector<2xf32>
    %cst_166 = arith.constant 0xFF800000 : f32
    %319 = vector.broadcast %cst_166 : f32 to vector<2xf32>
    %320 = arith.maximumf %319, %318 : vector<2xf32>
    %321 = vector.shape_cast %320 : vector<2xf32> to vector<2x1xf32>
    %322 = vector.broadcast %321 : vector<2x1xf32> to vector<2x8xf32>
    %323 = arith.subf %317, %322 : vector<2x8xf32>
    %324 = math.exp %323 : vector<2x8xf32>
    %cst_167 = arith.constant dense<0.000000e+00> : vector<2xf32>
    %325 = vector.multi_reduction <add>, %324, %cst_167 [1] : vector<2x8xf32> to vector<2xf32>
    %326 = vector.shape_cast %325 : vector<2xf32> to vector<2x1xf32>
    %327 = vector.broadcast %326 : vector<2x1xf32> to vector<2x8xf32>
    %328 = arith.divf %324, %327 : vector<2x8xf32>
    %329 = vector.shape_cast %328 : vector<2x8xf32> to vector<2x8x1xf32>
    %330 = arith.extf %308 : vector<2x8x64xbf16> to vector<2x8x64xf32>
    %331 = vector.broadcast %329 : vector<2x8x1xf32> to vector<2x8x64xf32>
    %332 = arith.mulf %331, %330 : vector<2x8x64xf32>
    %cst_168 = arith.constant dense<0.000000e+00> : vector<2x64xf32>
    %333 = vector.multi_reduction <add>, %332, %cst_168 [1] : vector<2x8x64xf32> to vector<2x64xf32>
    %334 = tpu.concatenate %305, %333, %270, %243 in 1 : vector<2x32xf32>, vector<2x64xf32>, vector<2x32xf32>, vector<2x32xf32> -> vector<2x160xf32>
    %335 = arith.truncf %334 : vector<2x160xf32> to vector<2x160xbf16>
    %c0_169 = arith.constant 0 : index
    %c0_170 = arith.constant 0 : index
    %336 = vector.load %arg11[%c0_169, %c0_170] : memref<160x128xbf16, #tpu.memory_space<vmem>>, vector<160x128xbf16>
    %cst_171 = arith.constant dense<0.000000e+00> : vector<2x128xf32>
    %337 = tpu.matmul %335, %336, %cst_171 {dimension_numbers = #tpu.dot_dimension_numbers<[1], [0], [0], [1], [0, 0, 1, 1], [], []>} : vector<2x160xbf16>, vector<160x128xbf16>, vector<2x128xf32> -> vector<2x128xf32>
    %c0_172 = arith.constant 0 : index
    %c0_173 = arith.constant 0 : index
    %338 = vector.load %arg12[%c0_172, %c0_173] : memref<1x128xf32, #tpu.memory_space<vmem>>, vector<1x128xf32>
    %339 = vector.broadcast %338 : vector<1x128xf32> to vector<2x128xf32>
    %340 = arith.addf %337, %339 : vector<2x128xf32>
    %c0_174 = arith.constant 0 : index
    %c0_175 = arith.constant 0 : index
    %341 = vector.load %arg15[%c0_174, %c0_175] : memref<2x32xf32, #tpu.memory_space<vmem>>, vector<2x32xf32>
    %342 = vector.extract_strided_slice %340 {offsets = [0, 0], sizes = [2, 96], strides = [1, 1]} : vector<2x128xf32> to vector<2x96xf32>
    %343 = arith.negf %342 : vector<2x96xf32>
    %344 = math.exp %343 : vector<2x96xf32>
    %cst_176 = arith.constant 1.000000e+00 : f32
    %345 = vector.broadcast %cst_176 : f32 to vector<2x96xf32>
    %346 = arith.addf %345, %344 : vector<2x96xf32>
    %347 = arith.divf %345, %346 : vector<2x96xf32>
    %348 = vector.extract_strided_slice %347 {offsets = [0, 0], sizes = [2, 32], strides = [1, 1]} : vector<2x96xf32> to vector<2x32xf32>
    %349 = vector.extract_strided_slice %347 {offsets = [0, 32], sizes = [2, 32], strides = [1, 1]} : vector<2x96xf32> to vector<2x32xf32>
    %350 = vector.extract_strided_slice %347 {offsets = [0, 64], sizes = [2, 32], strides = [1, 1]} : vector<2x96xf32> to vector<2x32xf32>
    %351 = vector.extract_strided_slice %340 {offsets = [0, 96], sizes = [2, 32], strides = [1, 1]} : vector<2x128xf32> to vector<2x32xf32>
    %352 = math.tanh %351 : vector<2x32xf32>
    %353 = arith.mulf %349, %341 : vector<2x32xf32>
    %354 = arith.mulf %348, %352 : vector<2x32xf32>
    %355 = arith.addf %353, %354 : vector<2x32xf32>
    %356 = math.tanh %355 : vector<2x32xf32>
    %357 = arith.mulf %350, %356 : vector<2x32xf32>
    %c0_177 = arith.constant 0 : index
    %c0_178 = arith.constant 0 : index
    %358 = vector.load %arg14[%c0_177, %c0_178] : memref<2x32xf32, #tpu.memory_space<vmem>>, vector<2x32xf32>
    tpu.vector_store %arg14[%c0_177, %c0_178], %357 {strides = array<i32>} : memref<2x32xf32, #tpu.memory_space<vmem>>, vector<2x32xf32>,
    %c0_179 = arith.constant 0 : index
    %c0_180 = arith.constant 0 : index
    %359 = vector.load %arg15[%c0_179, %c0_180] : memref<2x32xf32, #tpu.memory_space<vmem>>, vector<2x32xf32>
    tpu.vector_store %arg15[%c0_179, %c0_180], %355 {strides = array<i32>} : memref<2x32xf32, #tpu.memory_space<vmem>>, vector<2x32xf32>,
    %c2_i32_181 = arith.constant 2 : i32
    %360 = arith.muli %c2_i32_121, %c2_i32_181 : i32
    %361 = arith.index_cast %360 : i32 to index
    %c0_182 = arith.constant 0 : index
    %362 = vector.load %arg13[%361, %c0_182] : memref<8x32xf32, #tpu.memory_space<vmem>>, vector<2x32xf32>
    tpu.vector_store %arg13[%361, %c0_182], %357 {strides = array<i32>} : memref<8x32xf32, #tpu.memory_space<vmem>>, vector<2x32xf32>,
    %c3_i32 = arith.constant 3 : i32
    %c0_183 = arith.constant 0 : index
    %c0_184 = arith.constant 0 : index
    %363 = vector.load %arg14[%c0_183, %c0_184] : memref<2x32xf32, #tpu.memory_space<vmem>>, vector<2x32xf32>
    %c0_185 = arith.constant 0 : index
    %c0_186 = arith.constant 0 : index
    %364 = vector.load %arg16[%c0_185, %c0_186] : memref<2x32xf32, #tpu.memory_space<vmem>>, vector<2x32xf32>
    %365 = tpu.concatenate %363, %364 in 1 : vector<2x32xf32>, vector<2x32xf32> -> vector<2x64xf32>
    %366 = arith.truncf %365 : vector<2x64xf32> to vector<2x64xbf16>
    %367 = arith.index_cast %c3_i32 : i32 to index
    %c0_187 = arith.constant 0 : index
    %c0_188 = arith.constant 0 : index
    %368 = vector.load %arg1[%367, %c0_187, %c0_188] : memref<4x2x128xbf16, #tpu.memory_space<vmem>>, vector<1x2x128xbf16>
    %369 = vector.shape_cast %368 : vector<1x2x128xbf16> to vector<2x128xbf16>
    %370 = arith.extf %369 : vector<2x128xbf16> to vector<2x128xf32>
    %c0_189 = arith.constant 0 : index
    %c0_190 = arith.constant 0 : index
    %371 = vector.load %arg7[%c0_189, %c0_190] : memref<64x128xbf16, #tpu.memory_space<vmem>>, vector<64x128xbf16>
    %cst_191 = arith.constant dense<0.000000e+00> : vector<2x128xf32>
    %372 = tpu.matmul %366, %371, %cst_191 {dimension_numbers = #tpu.dot_dimension_numbers<[1], [0], [0], [1], [0, 0, 1, 1], [], []>} : vector<2x64xbf16>, vector<64x128xbf16>, vector<2x128xf32> -> vector<2x128xf32>
    %373 = arith.addf %370, %372 : vector<2x128xf32>
    %c0_192 = arith.constant 0 : index
    %c0_193 = arith.constant 0 : index
    %374 = vector.load %arg17[%c0_192, %c0_193] : memref<2x32xf32, #tpu.memory_space<vmem>>, vector<2x32xf32>
    %375 = vector.extract_strided_slice %373 {offsets = [0, 0], sizes = [2, 96], strides = [1, 1]} : vector<2x128xf32> to vector<2x96xf32>
    %376 = arith.negf %375 : vector<2x96xf32>
    %377 = math.exp %376 : vector<2x96xf32>
    %cst_194 = arith.constant 1.000000e+00 : f32
    %378 = vector.broadcast %cst_194 : f32 to vector<2x96xf32>
    %379 = arith.addf %378, %377 : vector<2x96xf32>
    %380 = arith.divf %378, %379 : vector<2x96xf32>
    %381 = vector.extract_strided_slice %380 {offsets = [0, 0], sizes = [2, 32], strides = [1, 1]} : vector<2x96xf32> to vector<2x32xf32>
    %382 = vector.extract_strided_slice %380 {offsets = [0, 32], sizes = [2, 32], strides = [1, 1]} : vector<2x96xf32> to vector<2x32xf32>
    %383 = vector.extract_strided_slice %380 {offsets = [0, 64], sizes = [2, 32], strides = [1, 1]} : vector<2x96xf32> to vector<2x32xf32>
    %384 = vector.extract_strided_slice %373 {offsets = [0, 96], sizes = [2, 32], strides = [1, 1]} : vector<2x128xf32> to vector<2x32xf32>
    %385 = math.tanh %384 : vector<2x32xf32>
    %386 = arith.mulf %382, %374 : vector<2x32xf32>
    %387 = arith.mulf %381, %385 : vector<2x32xf32>
    %388 = arith.addf %386, %387 : vector<2x32xf32>
    %389 = math.tanh %388 : vector<2x32xf32>
    %390 = arith.mulf %383, %389 : vector<2x32xf32>
    %c0_195 = arith.constant 0 : index
    %c0_196 = arith.constant 0 : index
    %391 = vector.load %arg16[%c0_195, %c0_196] : memref<2x32xf32, #tpu.memory_space<vmem>>, vector<2x32xf32>
    tpu.vector_store %arg16[%c0_195, %c0_196], %390 {strides = array<i32>} : memref<2x32xf32, #tpu.memory_space<vmem>>, vector<2x32xf32>,
    %c0_197 = arith.constant 0 : index
    %c0_198 = arith.constant 0 : index
    %392 = vector.load %arg17[%c0_197, %c0_198] : memref<2x32xf32, #tpu.memory_space<vmem>>, vector<2x32xf32>
    tpu.vector_store %arg17[%c0_197, %c0_198], %388 {strides = array<i32>} : memref<2x32xf32, #tpu.memory_space<vmem>>, vector<2x32xf32>,
    %393 = arith.truncf %390 : vector<2x32xf32> to vector<2x32xbf16>
    %c0_199 = arith.constant 0 : index
    %c0_200 = arith.constant 0 : index
    %394 = vector.load %arg8[%c0_199, %c0_200] : memref<32x64xbf16, #tpu.memory_space<vmem>>, vector<32x64xbf16>
    %cst_201 = arith.constant dense<0.000000e+00> : vector<2x64xf32>
    %395 = tpu.matmul %393, %394, %cst_201 {dimension_numbers = #tpu.dot_dimension_numbers<[1], [0], [0], [1], [0, 0, 1, 1], [], []>} : vector<2x32xbf16>, vector<32x64xbf16>, vector<2x64xf32> -> vector<2x64xf32>
    %396 = vector.extract_strided_slice %395 {offsets = [0, 0], sizes = [2, 32], strides = [1, 1]} : vector<2x64xf32> to vector<2x32xf32>
    %c0_202 = arith.constant 0 : index
    %c0_203 = arith.constant 0 : index
    %c0_204 = arith.constant 0 : index
    %397 = vector.load %arg2[%c0_202, %c0_203, %c0_204] : memref<2x6x32xf32, #tpu.memory_space<vmem>>, vector<2x6x32xf32>
    %c0_205 = arith.constant 0 : index
    %c0_206 = arith.constant 0 : index
    %c0_207 = arith.constant 0 : index
    %398 = vector.load %arg4[%c0_205, %c0_206, %c0_207] : memref<2x6x32xbf16, #tpu.memory_space<vmem>>, vector<2x6x32xbf16>
    %c0_208 = arith.constant 0 : index
    %c0_209 = arith.constant 0 : index
    %399 = vector.load %arg9[%c0_208, %c0_209] : memref<1x32xf32, #tpu.memory_space<vmem>>, vector<1x32xf32>
    %400 = vector.shape_cast %399 : vector<1x32xf32> to vector<1x1x32xf32>
    %c0_210 = arith.constant 0 : index
    %c0_211 = arith.constant 0 : index
    %401 = vector.load %arg6[%c0_210, %c0_211] : memref<2x6xf32, #tpu.memory_space<vmem>>, vector<2x6xf32>
    %402 = vector.shape_cast %396 : vector<2x32xf32> to vector<2x1x32xf32>
    %403 = vector.broadcast %402 : vector<2x1x32xf32> to vector<2x6x32xf32>
    %404 = arith.addf %403, %397 : vector<2x6x32xf32>
    %405 = math.tanh %404 : vector<2x6x32xf32>
    %406 = vector.broadcast %400 : vector<1x1x32xf32> to vector<2x6x32xf32>
    %407 = arith.mulf %405, %406 : vector<2x6x32xf32>
    %cst_212 = arith.constant dense<0.000000e+00> : vector<2x6xf32>
    %408 = vector.multi_reduction <add>, %407, %cst_212 [2] : vector<2x6x32xf32> to vector<2x6xf32>
    %409 = arith.addf %408, %401 : vector<2x6xf32>
    %cst_213 = arith.constant dense<0xFF800000> : vector<2xf32>
    %410 = vector.multi_reduction <maximumf>, %409, %cst_213 [1] : vector<2x6xf32> to vector<2xf32>
    %cst_214 = arith.constant 0xFF800000 : f32
    %411 = vector.broadcast %cst_214 : f32 to vector<2xf32>
    %412 = arith.maximumf %411, %410 : vector<2xf32>
    %413 = vector.shape_cast %412 : vector<2xf32> to vector<2x1xf32>
    %414 = vector.broadcast %413 : vector<2x1xf32> to vector<2x6xf32>
    %415 = arith.subf %409, %414 : vector<2x6xf32>
    %416 = math.exp %415 : vector<2x6xf32>
    %cst_215 = arith.constant dense<0.000000e+00> : vector<2xf32>
    %417 = vector.multi_reduction <add>, %416, %cst_215 [1] : vector<2x6xf32> to vector<2xf32>
    %418 = vector.shape_cast %417 : vector<2xf32> to vector<2x1xf32>
    %419 = vector.broadcast %418 : vector<2x1xf32> to vector<2x6xf32>
    %420 = arith.divf %416, %419 : vector<2x6xf32>
    %421 = vector.shape_cast %420 : vector<2x6xf32> to vector<2x6x1xf32>
    %422 = arith.extf %398 : vector<2x6x32xbf16> to vector<2x6x32xf32>
    %423 = vector.broadcast %421 : vector<2x6x1xf32> to vector<2x6x32xf32>
    %424 = arith.mulf %423, %422 : vector<2x6x32xf32>
    %cst_216 = arith.constant dense<0.000000e+00> : vector<2x32xf32>
    %425 = vector.multi_reduction <add>, %424, %cst_216 [1] : vector<2x6x32xf32> to vector<2x32xf32>
    %426 = vector.extract_strided_slice %395 {offsets = [0, 32], sizes = [2, 32], strides = [1, 1]} : vector<2x64xf32> to vector<2x32xf32>
    %c0_217 = arith.constant 0 : index
    %c0_218 = arith.constant 0 : index
    %c0_219 = arith.constant 0 : index
    %427 = vector.load %arg3[%c0_217, %c0_218, %c0_219] : memref<2x8x32xf32, #tpu.memory_space<vmem>>, vector<2x8x32xf32>
    %c0_220 = arith.constant 0 : index
    %c0_221 = arith.constant 0 : index
    %c0_222 = arith.constant 0 : index
    %428 = vector.load %arg5[%c0_220, %c0_221, %c0_222] : memref<2x8x64xbf16, #tpu.memory_space<vmem>>, vector<2x8x64xbf16>
    %c0_223 = arith.constant 0 : index
    %c0_224 = arith.constant 0 : index
    %429 = vector.load %arg10[%c0_223, %c0_224] : memref<1x32xf32, #tpu.memory_space<vmem>>, vector<1x32xf32>
    %430 = vector.shape_cast %429 : vector<1x32xf32> to vector<1x1x32xf32>
    %431 = vector.shape_cast %426 : vector<2x32xf32> to vector<2x1x32xf32>
    %432 = vector.broadcast %431 : vector<2x1x32xf32> to vector<2x8x32xf32>
    %433 = arith.addf %432, %427 : vector<2x8x32xf32>
    %434 = math.tanh %433 : vector<2x8x32xf32>
    %435 = vector.broadcast %430 : vector<1x1x32xf32> to vector<2x8x32xf32>
    %436 = arith.mulf %434, %435 : vector<2x8x32xf32>
    %cst_225 = arith.constant dense<0.000000e+00> : vector<2x8xf32>
    %437 = vector.multi_reduction <add>, %436, %cst_225 [2] : vector<2x8x32xf32> to vector<2x8xf32>
    %cst_226 = arith.constant dense<0xFF800000> : vector<2xf32>
    %438 = vector.multi_reduction <maximumf>, %437, %cst_226 [1] : vector<2x8xf32> to vector<2xf32>
    %cst_227 = arith.constant 0xFF800000 : f32
    %439 = vector.broadcast %cst_227 : f32 to vector<2xf32>
    %440 = arith.maximumf %439, %438 : vector<2xf32>
    %441 = vector.shape_cast %440 : vector<2xf32> to vector<2x1xf32>
    %442 = vector.broadcast %441 : vector<2x1xf32> to vector<2x8xf32>
    %443 = arith.subf %437, %442 : vector<2x8xf32>
    %444 = math.exp %443 : vector<2x8xf32>
    %cst_228 = arith.constant dense<0.000000e+00> : vector<2xf32>
    %445 = vector.multi_reduction <add>, %444, %cst_228 [1] : vector<2x8xf32> to vector<2xf32>
    %446 = vector.shape_cast %445 : vector<2xf32> to vector<2x1xf32>
    %447 = vector.broadcast %446 : vector<2x1xf32> to vector<2x8xf32>
    %448 = arith.divf %444, %447 : vector<2x8xf32>
    %449 = vector.shape_cast %448 : vector<2x8xf32> to vector<2x8x1xf32>
    %450 = arith.extf %428 : vector<2x8x64xbf16> to vector<2x8x64xf32>
    %451 = vector.broadcast %449 : vector<2x8x1xf32> to vector<2x8x64xf32>
    %452 = arith.mulf %451, %450 : vector<2x8x64xf32>
    %cst_229 = arith.constant dense<0.000000e+00> : vector<2x64xf32>
    %453 = vector.multi_reduction <add>, %452, %cst_229 [1] : vector<2x8x64xf32> to vector<2x64xf32>
    %454 = tpu.concatenate %425, %453, %390, %363 in 1 : vector<2x32xf32>, vector<2x64xf32>, vector<2x32xf32>, vector<2x32xf32> -> vector<2x160xf32>
    %455 = arith.truncf %454 : vector<2x160xf32> to vector<2x160xbf16>
    %c0_230 = arith.constant 0 : index
    %c0_231 = arith.constant 0 : index
    %456 = vector.load %arg11[%c0_230, %c0_231] : memref<160x128xbf16, #tpu.memory_space<vmem>>, vector<160x128xbf16>
    %cst_232 = arith.constant dense<0.000000e+00> : vector<2x128xf32>
    %457 = tpu.matmul %455, %456, %cst_232 {dimension_numbers = #tpu.dot_dimension_numbers<[1], [0], [0], [1], [0, 0, 1, 1], [], []>} : vector<2x160xbf16>, vector<160x128xbf16>, vector<2x128xf32> -> vector<2x128xf32>
    %c0_233 = arith.constant 0 : index
    %c0_234 = arith.constant 0 : index
    %458 = vector.load %arg12[%c0_233, %c0_234] : memref<1x128xf32, #tpu.memory_space<vmem>>, vector<1x128xf32>
    %459 = vector.broadcast %458 : vector<1x128xf32> to vector<2x128xf32>
    %460 = arith.addf %457, %459 : vector<2x128xf32>
    %c0_235 = arith.constant 0 : index
    %c0_236 = arith.constant 0 : index
    %461 = vector.load %arg15[%c0_235, %c0_236] : memref<2x32xf32, #tpu.memory_space<vmem>>, vector<2x32xf32>
    %462 = vector.extract_strided_slice %460 {offsets = [0, 0], sizes = [2, 96], strides = [1, 1]} : vector<2x128xf32> to vector<2x96xf32>
    %463 = arith.negf %462 : vector<2x96xf32>
    %464 = math.exp %463 : vector<2x96xf32>
    %cst_237 = arith.constant 1.000000e+00 : f32
    %465 = vector.broadcast %cst_237 : f32 to vector<2x96xf32>
    %466 = arith.addf %465, %464 : vector<2x96xf32>
    %467 = arith.divf %465, %466 : vector<2x96xf32>
    %468 = vector.extract_strided_slice %467 {offsets = [0, 0], sizes = [2, 32], strides = [1, 1]} : vector<2x96xf32> to vector<2x32xf32>
    %469 = vector.extract_strided_slice %467 {offsets = [0, 32], sizes = [2, 32], strides = [1, 1]} : vector<2x96xf32> to vector<2x32xf32>
    %470 = vector.extract_strided_slice %467 {offsets = [0, 64], sizes = [2, 32], strides = [1, 1]} : vector<2x96xf32> to vector<2x32xf32>
    %471 = vector.extract_strided_slice %460 {offsets = [0, 96], sizes = [2, 32], strides = [1, 1]} : vector<2x128xf32> to vector<2x32xf32>
    %472 = math.tanh %471 : vector<2x32xf32>
    %473 = arith.mulf %469, %461 : vector<2x32xf32>
    %474 = arith.mulf %468, %472 : vector<2x32xf32>
    %475 = arith.addf %473, %474 : vector<2x32xf32>
    %476 = math.tanh %475 : vector<2x32xf32>
    %477 = arith.mulf %470, %476 : vector<2x32xf32>
    %c0_238 = arith.constant 0 : index
    %c0_239 = arith.constant 0 : index
    %478 = vector.load %arg14[%c0_238, %c0_239] : memref<2x32xf32, #tpu.memory_space<vmem>>, vector<2x32xf32>
    tpu.vector_store %arg14[%c0_238, %c0_239], %477 {strides = array<i32>} : memref<2x32xf32, #tpu.memory_space<vmem>>, vector<2x32xf32>,
    %c0_240 = arith.constant 0 : index
    %c0_241 = arith.constant 0 : index
    %479 = vector.load %arg15[%c0_240, %c0_241] : memref<2x32xf32, #tpu.memory_space<vmem>>, vector<2x32xf32>
    tpu.vector_store %arg15[%c0_240, %c0_241], %475 {strides = array<i32>} : memref<2x32xf32, #tpu.memory_space<vmem>>, vector<2x32xf32>,
    %c2_i32_242 = arith.constant 2 : i32
    %480 = arith.muli %c3_i32, %c2_i32_242 : i32
    %481 = arith.index_cast %480 : i32 to index
    %c0_243 = arith.constant 0 : index
    %482 = vector.load %arg13[%481, %c0_243] : memref<8x32xf32, #tpu.memory_space<vmem>>, vector<2x32xf32>
    tpu.vector_store %arg13[%481, %c0_243], %477 {strides = array<i32>} : memref<8x32xf32, #tpu.memory_space<vmem>>, vector<2x32xf32>,
    %c4_i32 = arith.constant 4 : i32
    return
  }
  func.func @transform_0(%arg0: i32) -> (i32, i32, i32) {
    %c0_i32 = arith.constant 0 : i32
    %c0_i32_0 = arith.constant 0 : i32
    %c0_i32_1 = arith.constant 0 : i32
    return %arg0, %c0_i32, %c0_i32_0 : i32, i32, i32
  }
  func.func @transform_1(%arg0: i32) -> (i32, i32, i32) {
    %c0_i32 = arith.constant 0 : i32
    %c0_i32_0 = arith.constant 0 : i32
    %c0_i32_1 = arith.constant 0 : i32
    %c0_i32_2 = arith.constant 0 : i32
    return %c0_i32, %c0_i32_0, %c0_i32_1 : i32, i32, i32
  }
  func.func @transform_2(%arg0: i32) -> (i32, i32, i32) {
    %c0_i32 = arith.constant 0 : i32
    %c0_i32_0 = arith.constant 0 : i32
    %c0_i32_1 = arith.constant 0 : i32
    %c0_i32_2 = arith.constant 0 : i32
    return %c0_i32, %c0_i32_0, %c0_i32_1 : i32, i32, i32
  }
  func.func @transform_3(%arg0: i32) -> (i32, i32, i32) {
    %c0_i32 = arith.constant 0 : i32
    %c0_i32_0 = arith.constant 0 : i32
    %c0_i32_1 = arith.constant 0 : i32
    %c0_i32_2 = arith.constant 0 : i32
    return %c0_i32, %c0_i32_0, %c0_i32_1 : i32, i32, i32
  }
  func.func @transform_4(%arg0: i32) -> (i32, i32, i32) {
    %c0_i32 = arith.constant 0 : i32
    %c0_i32_0 = arith.constant 0 : i32
    %c0_i32_1 = arith.constant 0 : i32
    %c0_i32_2 = arith.constant 0 : i32
    return %c0_i32, %c0_i32_0, %c0_i32_1 : i32, i32, i32
  }
  func.func @transform_5(%arg0: i32) -> (i32, i32) {
    %c0_i32 = arith.constant 0 : i32
    %c0_i32_0 = arith.constant 0 : i32
    %c0_i32_1 = arith.constant 0 : i32
    return %c0_i32, %c0_i32_0 : i32, i32
  }
  func.func @transform_6(%arg0: i32) -> (i32, i32) {
    %c0_i32 = arith.constant 0 : i32
    %c0_i32_0 = arith.constant 0 : i32
    %c0_i32_1 = arith.constant 0 : i32
    return %c0_i32, %c0_i32_0 : i32, i32
  }
  func.func @transform_7(%arg0: i32) -> (i32, i32) {
    %c0_i32 = arith.constant 0 : i32
    %c0_i32_0 = arith.constant 0 : i32
    %c0_i32_1 = arith.constant 0 : i32
    return %c0_i32, %c0_i32_0 : i32, i32
  }
  func.func @transform_8(%arg0: i32) -> (i32, i32) {
    %c0_i32 = arith.constant 0 : i32
    %c0_i32_0 = arith.constant 0 : i32
    %c0_i32_1 = arith.constant 0 : i32
    return %c0_i32, %c0_i32_0 : i32, i32
  }
  func.func @transform_9(%arg0: i32) -> (i32, i32) {
    %c0_i32 = arith.constant 0 : i32
    %c0_i32_0 = arith.constant 0 : i32
    %c0_i32_1 = arith.constant 0 : i32
    return %c0_i32, %c0_i32_0 : i32, i32
  }
  func.func @transform_10(%arg0: i32) -> (i32, i32) {
    %c0_i32 = arith.constant 0 : i32
    %c0_i32_0 = arith.constant 0 : i32
    %c0_i32_1 = arith.constant 0 : i32
    return %c0_i32, %c0_i32_0 : i32, i32
  }
  func.func @transform_11(%arg0: i32) -> (i32, i32) {
    %c0_i32 = arith.constant 0 : i32
    %c0_i32_0 = arith.constant 0 : i32
    %c0_i32_1 = arith.constant 0 : i32
    return %c0_i32, %c0_i32_0 : i32, i32
  }
  func.func @transform_12(%arg0: i32) -> (i32, i32) {
    %c0_i32 = arith.constant 0 : i32
    %c0_i32_0 = arith.constant 0 : i32
    return %arg0, %c0_i32 : i32, i32
  }
}

</mosaic_0001>

<llo_original>
// kernel: tpu_custom_call.1
$region0: #{tpu_custom_call.1}
  #allocation0 [shape = 'u32[]', space=smem, size = 0x4, offset = 0x4, fixed_abs, tag = 'smem constant byte address 0x4 - core index']
  #allocation1 [shape = 'u32[144,128]{1,0:T(1,128)}', space=vmem, size = 0x12000, scoped, tag = 'internal scratch']
  #allocation2 [shape = 'f32[2,32]{1,0:T(2,128)}', space=vmem, size = 0x400, scoped, tag = 'scratch operand']
  #allocation3 [shape = 'f32[2,32]{1,0:T(2,128)}', space=vmem, size = 0x400, scoped, tag = 'scratch operand']
  #allocation4 [shape = 'f32[2,32]{1,0:T(2,128)}', space=vmem, size = 0x400, scoped, tag = 'scratch operand']
  #allocation5 [shape = 'f32[2,32]{1,0:T(2,128)}', space=vmem, size = 0x400, scoped, tag = 'scratch operand']
  %s0 = inlined_call_operand.hbm [shape: bf16[8,2,128], index: 0, kind: input, shape index: {}]
  %s1 = inlined_call_operand.vmem [shape: f32[2,6,32], index: 1, kind: input, shape index: {}]
  %s2 = inlined_call_operand.vmem [shape: f32[2,8,32], index: 2, kind: input, shape index: {}]
  %s3 = inlined_call_operand.vmem [shape: bf16[2,6,32], index: 3, kind: input, shape index: {}]
  %s4 = inlined_call_operand.hbm [shape: bf16[2,8,64], index: 4, kind: input, shape index: {}]
  %s5 = inlined_call_operand.hbm [shape: f32[2,6], index: 5, kind: input, shape index: {}]
  %s6 = inlined_call_operand.vmem [shape: bf16[64,128], index: 6, kind: input, shape index: {}]
  %s7 = inlined_call_operand.vmem [shape: bf16[32,64], index: 7, kind: input, shape index: {}]
  %s8 = inlined_call_operand.vmem [shape: f32[1,32], index: 8, kind: input, shape index: {}]
  %s9 = inlined_call_operand.vmem [shape: f32[1,32], index: 9, kind: input, shape index: {}]
  %s10 = inlined_call_operand.hbm [shape: bf16[160,128], index: 10, kind: input, shape index: {}]
  %s11 = inlined_call_operand.vmem [shape: f32[1,128], index: 11, kind: input, shape index: {}]
  %s12 = inlined_call_operand.hbm [shape: f32[16,32], index: 12, kind: output, shape index: {}]
  %s13 = sld [smem:[#allocation0]]
  $region101: #{tpu_custom_call.1} parent=0
    _
  %s15 = ssub.s32 1, %s13
  %s16 = scalar_select 0, %s15, %s13
  $region1: #{tpu_custom_call.1} parent=0
    #allocation6 [shape = 'u8[4096]{0}', space=vmem, size = 0x1000, scoped, tag = 'input window, operand 0']
    #allocation7 [shape = 's32[2]{0}', space=sflag, size = 0x8, scoped, tag = 'scoped memory for tpu_custom_call.1']
    #allocation8 [shape = 's32[2]{0}', space=sflag, size = 0x8, scoped, tag = 'scoped memory for tpu_custom_call.1']
    #allocation9 [shape = 'u8[4096]{0}', space=vmem, size = 0x1000, scoped, tag = 'input window, operand 4, single buffered']
    #allocation10 [shape = 's32[1]{0}', space=sflag, size = 0x4, scoped, tag = 'scoped memory for tpu_custom_call.1']
    #allocation11 [shape = 'u8[1024]{0}', space=vmem, size = 0x400, scoped, tag = 'input window, operand 5, single buffered']
    #allocation12 [shape = 'u8[40960]{0}', space=vmem, size = 0xa000, scoped, tag = 'input window, operand 10, single buffered']
    #allocation13 [shape = 's32[1]{0}', space=sflag, size = 0x4, scoped, tag = 'scoped memory for tpu_custom_call.1']
    #allocation14 [shape = 'u8[8192]{0}', space=vmem, size = 0x2000, scoped, tag = 'output window, operand 0']
    %17 = vsyncpa [#allocation7], 0
    %s18 = scalar_lea.sflag [#allocation7], 1
    %19 = vsyncpa %s18, 0
    %20 = vsyncpa [#allocation10], 0
    %21 = vsyncpa [#allocation13], 0
    %22 = vsyncpa [#allocation8], 0
    %s23 = scalar_lea.sflag [#allocation8], 1
    %24 = vsyncpa %s23, 0
    loop: start=0, step=1, limit=4
    $region2: #{tpu_custom_call.1} parent=1 // loop_pre_header
      _
    $region3: #{tpu_custom_call.1} parent=1 // loop_header
      %s26 = sphi 0, %s30
      %p27 = scmp.ge.s32.totalorder %s26, 4
      %s36 = sphi 0, %s38
      %s39 = sphi 0, %s36
      %s40 = sphi 0, %s39
      %s56 = sphi 0, %s40
      %s60 = sphi 0, %s60
      %s62 = sphi 0, %s60
      %s63 = sphi 0, %s62
      %s77 = sphi 0, %s63
      %s81 = sphi 0, %s81
      %s83 = sphi 0, %s81
      %s84 = sphi 0, %s83
      %s98 = sphi 0, %s84
      %s102 = sphi 0, %s102
      %s104 = sphi 0, %s102
      %s105 = sphi 0, %s104
      %s119 = sphi 0, %s105
      %s123 = sphi 0, %s123
      %s125 = sphi 0, %s123
      %s126 = sphi 0, %s125
      %s140 = sphi 0, %s126
      %s144 = sphi 0, %s144
      %s146 = sphi 0, %s144
      %s147 = sphi 0, %s146
      %s161 = sphi 0, %s147
      %s165 = sphi 0, %s165
      %s167 = sphi 0, %s165
      %s168 = sphi 0, %s167
      %s182 = sphi 0, %s168
      %s186 = sphi 0, %s186
      %s188 = sphi 0, %s186
      %s189 = sphi 0, %s188
      %s203 = sphi 0, %s189
      %s207 = sphi 0, %s207
      %s209 = sphi 0, %s207
      %s210 = sphi 0, %s209
      %s224 = sphi 0, %s210
      %s228 = sphi 0, %s228
      %s230 = sphi 0, %s228
      %s231 = sphi 0, %s230
      %s245 = sphi 0, %s231
      %s249 = sphi 0, %s249
      %s251 = sphi 0, %s249
      %s252 = sphi 0, %s251
      %s266 = sphi 0, %s252
      %s270 = sphi 0, %s270
      %s272 = sphi 0, %s270
      %s273 = sphi 0, %s272
      %s287 = sphi 0, %s273
      %s293 = sphi 0, %s295
      %s296 = sphi 0, %s293
      %s297 = sphi 0, %s296
      %s313 = sphi 0, %s297
    $region4: #{tpu_custom_call.1} parent=1 // loop_header_branch
      %29 = sbr.rel (%p27) target = $region8
    $region5: #{tpu_custom_call.1} parent=1 // loop_body
      %s31 = ssub.s32 %s26, 1
      %s32 = ssub.s32 %s26, 2
      %s33 = sadd.s32 %s26, 1
      %s34 = ssub.s32 %s26, %s33
      %p35 = scmp.eq.s32.totalorder %s34, 0
      %s37 = sadd.s32 %s36, 1
      %s38 = scalar_select %p35, %s36, %s37
      %p41 = pneg %p35
      %p42 = scmp.eq.s32.totalorder %s26, 1
      %p43 = por %p41, %p42
      %p44 = scmp.ne.s32.totalorder %s36, %s39
      %p45 = scmp.eq.s32.totalorder %s26, 0
      %p46 = por %p44, %p45
      %p47 = scmp.ne.s32.totalorder %s36, %s39
      %p48 = scmp.eq.s32.totalorder %s31, 1
      %p49 = por %p47, %p48
      %p50 = scmp.ne.s32.totalorder %s39, %s40
      %p51 = scmp.eq.s32.totalorder %s31, 0
      %p52 = por %p50, %p51
      %p53 = scmp.ne.s32.totalorder %s39, %s40
      %p54 = scmp.eq.s32.totalorder %s32, 1
      %p55 = por %p53, %p54
      %p57 = scmp.ne.s32.totalorder %s40, %s56
      %p58 = scmp.eq.s32.totalorder %s32, 0
      %p59 = por %p57, %p58
      %s61 = sadd.s32 %s60, 1
      %p64 = scmp.eq.s32.totalorder %s26, 1
      %p65 = scmp.ne.s32.totalorder %s60, %s62
      %p66 = scmp.eq.s32.totalorder %s26, 0
      %p67 = por %p65, %p66
      %p68 = scmp.ne.s32.totalorder %s60, %s62
      %p69 = scmp.eq.s32.totalorder %s31, 1
      %p70 = por %p68, %p69
      %p71 = scmp.ne.s32.totalorder %s62, %s63
      %p72 = scmp.eq.s32.totalorder %s31, 0
      %p73 = por %p71, %p72
      %p74 = scmp.ne.s32.totalorder %s62, %s63
      %p75 = scmp.eq.s32.totalorder %s32, 1
      %p76 = por %p74, %p75
      %p78 = scmp.ne.s32.totalorder %s63, %s77
      %p79 = scmp.eq.s32.totalorder %s32, 0
      %p80 = por %p78, %p79
      %s82 = sadd.s32 %s81, 1
      %p85 = scmp.eq.s32.totalorder %s26, 1
      %p86 = scmp.ne.s32.totalorder %s81, %s83
      %p87 = scmp.eq.s32.totalorder %s26, 0
      %p88 = por %p86, %p87
      %p89 = scmp.ne.s32.totalorder %s81, %s83
      %p90 = scmp.eq.s32.totalorder %s31, 1
      %p91 = por %p89, %p90
      %p92 = scmp.ne.s32.totalorder %s83, %s84
      %p93 = scmp.eq.s32.totalorder %s31, 0
      %p94 = por %p92, %p93
      %p95 = scmp.ne.s32.totalorder %s83, %s84
      %p96 = scmp.eq.s32.totalorder %s32, 1
      %p97 = por %p95, %p96
      %p99 = scmp.ne.s32.totalorder %s84, %s98
      %p100 = scmp.eq.s32.totalorder %s32, 0
      %p101 = por %p99, %p100
      %s103 = sadd.s32 %s102, 1
      %p106 = scmp.eq.s32.totalorder %s26, 1
      %p107 = scmp.ne.s32.totalorder %s102, %s104
      %p108 = scmp.eq.s32.totalorder %s26, 0
      %p109 = por %p107, %p108
      %p110 = scmp.ne.s32.totalorder %s102, %s104
      %p111 = scmp.eq.s32.totalorder %s31, 1
      %p112 = por %p110, %p111
      %p113 = scmp.ne.s32.totalorder %s104, %s105
      %p114 = scmp.eq.s32.totalorder %s31, 0
      %p115 = por %p113, %p114
      %p116 = scmp.ne.s32.totalorder %s104, %s105
      %p117 = scmp.eq.s32.totalorder %s32, 1
      %p118 = por %p116, %p117
      %p120 = scmp.ne.s32.totalorder %s105, %s119
      %p121 = scmp.eq.s32.totalorder %s32, 0
      %p122 = por %p120, %p121
      %s124 = sadd.s32 %s123, 1
      %p127 = scmp.eq.s32.totalorder %s26, 1
      %p128 = scmp.ne.s32.totalorder %s123, %s125
      %p129 = scmp.eq.s32.totalorder %s26, 0
      %p130 = por %p128, %p129
      %p131 = scmp.ne.s32.totalorder %s123, %s125
      %p132 = scmp.eq.s32.totalorder %s31, 1
      %p133 = por %p131, %p132
      %p134 = scmp.ne.s32.totalorder %s125, %s126
      %p135 = scmp.eq.s32.totalorder %s31, 0
      %p136 = por %p134, %p135
      %p137 = scmp.ne.s32.totalorder %s125, %s126
      %p138 = scmp.eq.s32.totalorder %s32, 1
      %p139 = por %p137, %p138
      %p141 = scmp.ne.s32.totalorder %s126, %s140
      %p142 = scmp.eq.s32.totalorder %s32, 0
      %p143 = por %p141, %p142
      %s145 = sadd.s32 %s144, 1
      %p148 = scmp.eq.s32.totalorder %s26, 1
      %p149 = scmp.ne.s32.totalorder %s144, %s146
      %p150 = scmp.eq.s32.totalorder %s26, 0
      %p151 = por %p149, %p150
      %p152 = scmp.ne.s32.totalorder %s144, %s146
      %p153 = scmp.eq.s32.totalorder %s31, 1
      %p154 = por %p152, %p153
      %p155 = scmp.ne.s32.totalorder %s146, %s147
      %p156 = scmp.eq.s32.totalorder %s31, 0
      %p157 = por %p155, %p156
      %p158 = scmp.ne.s32.totalorder %s146, %s147
      %p159 = scmp.eq.s32.totalorder %s32, 1
      %p160 = por %p158, %p159
      %p162 = scmp.ne.s32.totalorder %s147, %s161
      %p163 = scmp.eq.s32.totalorder %s32, 0
      %p164 = por %p162, %p163
      %s166 = sadd.s32 %s165, 1
      %p169 = scmp.eq.s32.totalorder %s26, 1
      %p170 = scmp.ne.s32.totalorder %s165, %s167
      %p171 = scmp.eq.s32.totalorder %s26, 0
      %p172 = por %p170, %p171
      %p173 = scmp.ne.s32.totalorder %s165, %s167
      %p174 = scmp.eq.s32.totalorder %s31, 1
      %p175 = por %p173, %p174
      %p176 = scmp.ne.s32.totalorder %s167, %s168
      %p177 = scmp.eq.s32.totalorder %s31, 0
      %p178 = por %p176, %p177
      %p179 = scmp.ne.s32.totalorder %s167, %s168
      %p180 = scmp.eq.s32.totalorder %s32, 1
      %p181 = por %p179, %p180
      %p183 = scmp.ne.s32.totalorder %s168, %s182
      %p184 = scmp.eq.s32.totalorder %s32, 0
      %p185 = por %p183, %p184
      %s187 = sadd.s32 %s186, 1
      %p190 = scmp.eq.s32.totalorder %s26, 1
      %p191 = scmp.ne.s32.totalorder %s186, %s188
      %p192 = scmp.eq.s32.totalorder %s26, 0
      %p193 = por %p191, %p192
      %p194 = scmp.ne.s32.totalorder %s186, %s188
      %p195 = scmp.eq.s32.totalorder %s31, 1
      %p196 = por %p194, %p195
      %p197 = scmp.ne.s32.totalorder %s188, %s189
      %p198 = scmp.eq.s32.totalorder %s31, 0
      %p199 = por %p197, %p198
      %p200 = scmp.ne.s32.totalorder %s188, %s189
      %p201 = scmp.eq.s32.totalorder %s32, 1
      %p202 = por %p200, %p201
      %p204 = scmp.ne.s32.totalorder %s189, %s203
      %p205 = scmp.eq.s32.totalorder %s32, 0
      %p206 = por %p204, %p205
      %s208 = sadd.s32 %s207, 1
      %p211 = scmp.eq.s32.totalorder %s26, 1
      %p212 = scmp.ne.s32.totalorder %s207, %s209
      %p213 = scmp.eq.s32.totalorder %s26, 0
      %p214 = por %p212, %p213
      %p215 = scmp.ne.s32.totalorder %s207, %s209
      %p216 = scmp.eq.s32.totalorder %s31, 1
      %p217 = por %p215, %p216
      %p218 = scmp.ne.s32.totalorder %s209, %s210
      %p219 = scmp.eq.s32.totalorder %s31, 0
      %p220 = por %p218, %p219
      %p221 = scmp.ne.s32.totalorder %s209, %s210
      %p222 = scmp.eq.s32.totalorder %s32, 1
      %p223 = por %p221, %p222
      %p225 = scmp.ne.s32.totalorder %s210, %s224
      %p226 = scmp.eq.s32.totalorder %s32, 0
      %p227 = por %p225, %p226
      %s229 = sadd.s32 %s228, 1
      %p232 = scmp.eq.s32.totalorder %s26, 1
      %p233 = scmp.ne.s32.totalorder %s228, %s230
      %p234 = scmp.eq.s32.totalorder %s26, 0
      %p235 = por %p233, %p234
      %p236 = scmp.ne.s32.totalorder %s228, %s230
      %p237 = scmp.eq.s32.totalorder %s31, 1
      %p238 = por %p236, %p237
      %p239 = scmp.ne.s32.totalorder %s230, %s231
      %p240 = scmp.eq.s32.totalorder %s31, 0
      %p241 = por %p239, %p240
      %p242 = scmp.ne.s32.totalorder %s230, %s231
      %p243 = scmp.eq.s32.totalorder %s32, 1
      %p244 = por %p242, %p243
      %p246 = scmp.ne.s32.totalorder %s231, %s245
      %p247 = scmp.eq.s32.totalorder %s32, 0
      %p248 = por %p246, %p247
      %s250 = sadd.s32 %s249, 1
      %p253 = scmp.eq.s32.totalorder %s26, 1
      %p254 = scmp.ne.s32.totalorder %s249, %s251
      %p255 = scmp.eq.s32.totalorder %s26, 0
      %p256 = por %p254, %p255
      %p257 = scmp.ne.s32.totalorder %s249, %s251
      %p258 = scmp.eq.s32.totalorder %s31, 1
      %p259 = por %p257, %p258
      %p260 = scmp.ne.s32.totalorder %s251, %s252
      %p261 = scmp.eq.s32.totalorder %s31, 0
      %p262 = por %p260, %p261
      %p263 = scmp.ne.s32.totalorder %s251, %s252
      %p264 = scmp.eq.s32.totalorder %s32, 1
      %p265 = por %p263, %p264
      %p267 = scmp.ne.s32.totalorder %s252, %s266
      %p268 = scmp.eq.s32.totalorder %s32, 0
      %p269 = por %p267, %p268
      %s271 = sadd.s32 %s270, 1
      %p274 = scmp.eq.s32.totalorder %s26, 1
      %p275 = scmp.ne.s32.totalorder %s270, %s272
      %p276 = scmp.eq.s32.totalorder %s26, 0
      %p277 = por %p275, %p276
      %p278 = scmp.ne.s32.totalorder %s270, %s272
      %p279 = scmp.eq.s32.totalorder %s31, 1
      %p280 = por %p278, %p279
      %p281 = scmp.ne.s32.totalorder %s272, %s273
      %p282 = scmp.eq.s32.totalorder %s31, 0
      %p283 = por %p281, %p282
      %p284 = scmp.ne.s32.totalorder %s272, %s273
      %p285 = scmp.eq.s32.totalorder %s32, 1
      %p286 = por %p284, %p285
      %p288 = scmp.ne.s32.totalorder %s273, %s287
      %p289 = scmp.eq.s32.totalorder %s32, 0
      %p290 = por %p288, %p289
      %s291 = ssub.s32 %s26, %s33
      %p292 = scmp.eq.s32.totalorder %s291, 0
      %s294 = sadd.s32 %s293, 1
      %s295 = scalar_select %p292, %s293, %s294
      %p298 = pneg %p292
      %p299 = scmp.eq.s32.totalorder %s26, 1
      %p300 = por %p298, %p299
      %p301 = scmp.ne.s32.totalorder %s293, %s296
      %p302 = scmp.eq.s32.totalorder %s26, 0
      %p303 = por %p301, %p302
      %p304 = scmp.ne.s32.totalorder %s293, %s296
      %p305 = scmp.eq.s32.totalorder %s31, 1
      %p306 = por %p304, %p305
      %p307 = scmp.ne.s32.totalorder %s296, %s297
      %p308 = scmp.eq.s32.totalorder %s31, 0
      %p309 = por %p307, %p308
      %p310 = scmp.ne.s32.totalorder %s296, %s297
      %p311 = scmp.eq.s32.totalorder %s32, 1
      %p312 = por %p310, %p311
      %p314 = scmp.ne.s32.totalorder %s297, %s313
      %p315 = scmp.eq.s32.totalorder %s32, 0
      %p316 = por %p314, %p315
      %p317 = scmp.le.s32.totalorder 1, %s26
      %p318 = scmp.lt.s32.totalorder %s26, 3
      %p319 = pnand %p317, %p318
      %p320 = pneg %p319
      // Predicated region
      $region9: #{tpu_custom_call.1} parent=5 // pred_check
        _
      $region10: #{tpu_custom_call.1} parent=5 // pred_check_branch
        %322 = sbr.rel (%p319) target = $region12
      $region11: #{tpu_custom_call.1} parent=5 // pred_region
        %s323 = ssub.s32 %s26, 1
        // Predicated region
        $region13: #{tpu_custom_call.1} parent=11 // pred_check
          %p324 = pneg %p73
        $region14: #{tpu_custom_call.1} parent=11 // pred_check_branch
          %326 = sbr.rel (%p324) target = $region16
        $region15: #{tpu_custom_call.1} parent=11 // pred_region
          _
        $region16: #{tpu_custom_call.1} parent=11 // pred_fallthru
          _
        // Predicated region
        $region17: #{tpu_custom_call.1} parent=11 // pred_check
          %p327 = pneg %p94
        $region18: #{tpu_custom_call.1} parent=11 // pred_check_branch
          %329 = sbr.rel (%p327) target = $region20
        $region19: #{tpu_custom_call.1} parent=11 // pred_region
          _
        $region20: #{tpu_custom_call.1} parent=11 // pred_fallthru
          _
        // Predicated region
        $region21: #{tpu_custom_call.1} parent=11 // pred_check
          %p330 = pneg %p115
        $region22: #{tpu_custom_call.1} parent=11 // pred_check_branch
          %332 = sbr.rel (%p330) target = $region24
        $region23: #{tpu_custom_call.1} parent=11 // pred_region
          _
        $region24: #{tpu_custom_call.1} parent=11 // pred_fallthru
          _
        // Predicated region
        $region25: #{tpu_custom_call.1} parent=11 // pred_check
          %p333 = pneg %p136
        $region26: #{tpu_custom_call.1} parent=11 // pred_check_branch
          %335 = sbr.rel (%p333) target = $region28
        $region27: #{tpu_custom_call.1} parent=11 // pred_region
          %s337 = ssub.s32 128, 128
          %338 = vsyncadd [#allocation10], %s337
          %s339 = sshll.u32 [#allocation9], 4
          %s340 = int_to_ptr.vmem [resolvable:$true] %s339
          %345 = dma.hbm_to_vmem [thread:$0]  %s4, 128, %s340, [#allocation10], 64, 64, 4
        $region28: #{tpu_custom_call.1} parent=11 // pred_fallthru
          _
        // Predicated region
        $region29: #{tpu_custom_call.1} parent=11 // pred_check
          %p346 = pneg %p157
        $region30: #{tpu_custom_call.1} parent=11 // pred_check_branch
          %348 = sbr.rel (%p346) target = $region32
        $region31: #{tpu_custom_call.1} parent=11 // pred_region
          %s350 = ssub.s32 32, 32
          %351 = vsyncadd [#allocation10], %s350
          %s353 = sshll.u32 [#allocation11], 4
          %s354 = int_to_ptr.vmem [resolvable:$true] %s353
          %356 = dma.hbm_to_vmem [thread:$0]  %s5, 32, %s354, [#allocation10]
        $region32: #{tpu_custom_call.1} parent=11 // pred_fallthru
          _
        // Predicated region
        $region33: #{tpu_custom_call.1} parent=11 // pred_check
          %p357 = pneg %p178
        $region34: #{tpu_custom_call.1} parent=11 // pred_check_branch
          %359 = sbr.rel (%p357) target = $region36
        $region35: #{tpu_custom_call.1} parent=11 // pred_region
          _
        $region36: #{tpu_custom_call.1} parent=11 // pred_fallthru
          _
        // Predicated region
        $region37: #{tpu_custom_call.1} parent=11 // pred_check
          %p360 = pneg %p199
        $region38: #{tpu_custom_call.1} parent=11 // pred_check_branch
          %362 = sbr.rel (%p360) target = $region40
        $region39: #{tpu_custom_call.1} parent=11 // pred_region
          _
        $region40: #{tpu_custom_call.1} parent=11 // pred_fallthru
          _
        // Predicated region
        $region41: #{tpu_custom_call.1} parent=11 // pred_check
          %p363 = pneg %p220
        $region42: #{tpu_custom_call.1} parent=11 // pred_check_branch
          %365 = sbr.rel (%p363) target = $region44
        $region43: #{tpu_custom_call.1} parent=11 // pred_region
          _
        $region44: #{tpu_custom_call.1} parent=11 // pred_fallthru
          _
        // Predicated region
        $region45: #{tpu_custom_call.1} parent=11 // pred_check
          %p366 = pneg %p241
        $region46: #{tpu_custom_call.1} parent=11 // pred_check_branch
          %368 = sbr.rel (%p366) target = $region48
        $region47: #{tpu_custom_call.1} parent=11 // pred_region
          _
        $region48: #{tpu_custom_call.1} parent=11 // pred_fallthru
          _
        // Predicated region
        $region49: #{tpu_custom_call.1} parent=11 // pred_check
          %p369 = pneg %p262
        $region50: #{tpu_custom_call.1} parent=11 // pred_check_branch
          %371 = sbr.rel (%p369) target = $region52
        $region51: #{tpu_custom_call.1} parent=11 // pred_region
          %s373 = ssub.s32 1280, 1280
          %374 = vsyncadd [#allocation13], %s373
          %s375 = sshll.u32 [#allocation12], 4
          %s376 = int_to_ptr.vmem [resolvable:$true] %s375
          %381 = dma.hbm_to_vmem [thread:$0]  %s10, 1280, %s376, [#allocation13], 64, 64, 4
        $region52: #{tpu_custom_call.1} parent=11 // pred_fallthru
          _
        // Predicated region
        $region53: #{tpu_custom_call.1} parent=11 // pred_check
          %p382 = pneg %p283
        $region54: #{tpu_custom_call.1} parent=11 // pred_check_branch
          %384 = sbr.rel (%p382) target = $region56
        $region55: #{tpu_custom_call.1} parent=11 // pred_region
          _
        $region56: #{tpu_custom_call.1} parent=11 // pred_fallthru
          _
      $region12: #{tpu_custom_call.1} parent=5 // pred_fallthru
        _
      %p385 = scmp.lt.s32.totalorder %s26, 2
      // Predicated region
      $region57: #{tpu_custom_call.1} parent=5 // pred_check
        %p386 = pneg %p385
      $region58: #{tpu_custom_call.1} parent=5 // pred_check_branch
        %388 = sbr.rel (%p386) target = $region60
      $region59: #{tpu_custom_call.1} parent=5 // pred_region
        // Predicated region
        $region61: #{tpu_custom_call.1} parent=59 // pred_check
          %p389 = pneg %p46
        $region62: #{tpu_custom_call.1} parent=59 // pred_check_branch
          %391 = sbr.rel (%p389) target = $region64
        $region63: #{tpu_custom_call.1} parent=59 // pred_region
          %s392 = sand.u32 %s36, 1
          %s393 = scalar_lea.sflag [#allocation7], %s392
          %s394 = sand.u32 %s36, 1
          %s395 = smul.addr %s394, 4
          %s396 = scalar_lea.vmem [#allocation6], %s395
          %s397 = smul.u32 4, %s26
          %s399 = ssub.s32 64, 64
          %400 = vsyncadd %s393, %s399
          %s401 = smul.addr %s397, 16
          %s402 = scalar_lea.hbm %s0, %s401
          %s403 = sshll.u32 %s396, 4
          %s404 = int_to_ptr.vmem [resolvable:$true] %s403
          %409 = dma.hbm_to_vmem [thread:$0]  %s402, 64, %s404, %s393, 16, 16, 1
        $region64: #{tpu_custom_call.1} parent=59 // pred_fallthru
          _
      $region60: #{tpu_custom_call.1} parent=5 // pred_fallthru
        _
      %p410 = scmp.le.s32.totalorder 1, %s26
      %p411 = scmp.lt.s32.totalorder %s26, 3
      %p412 = pnand %p410, %p411
      %p413 = pneg %p412
      // Predicated region
      $region65: #{tpu_custom_call.1} parent=5 // pred_check
        _
      $region66: #{tpu_custom_call.1} parent=5 // pred_check_branch
        %415 = sbr.rel (%p412) target = $region68
      $region67: #{tpu_custom_call.1} parent=5 // pred_region
        %s416 = ssub.s32 %s26, 1
        %s417 = sand.u32 %s39, 1
        %s418 = scalar_lea.sflag [#allocation7], %s417
        %s419 = sand.u32 %s39, 1
        %s420 = smul.addr %s419, 4
        %s421 = scalar_lea.vmem [#allocation6], %s420
        // Predicated region
        $region69: #{tpu_custom_call.1} parent=67 // pred_check
          %p422 = pneg %p52
        $region70: #{tpu_custom_call.1} parent=67 // pred_check_branch
          %424 = sbr.rel (%p422) target = $region72
        $region71: #{tpu_custom_call.1} parent=67 // pred_region
          %425 = dma.done %s418, 64
        $region72: #{tpu_custom_call.1} parent=67 // pred_fallthru
          _
        // Predicated region
        $region73: #{tpu_custom_call.1} parent=67 // pred_check
          %p426 = pneg %p136
        $region74: #{tpu_custom_call.1} parent=67 // pred_check_branch
          %428 = sbr.rel (%p426) target = $region76
        $region75: #{tpu_custom_call.1} parent=67 // pred_region
          %429 = dma.done [#allocation10], 128
        $region76: #{tpu_custom_call.1} parent=67 // pred_fallthru
          _
        // Predicated region
        $region77: #{tpu_custom_call.1} parent=67 // pred_check
          %p430 = pneg %p157
        $region78: #{tpu_custom_call.1} parent=67 // pred_check_branch
          %432 = sbr.rel (%p430) target = $region80
        $region79: #{tpu_custom_call.1} parent=67 // pred_region
          %433 = dma.done [#allocation10], 32
        $region80: #{tpu_custom_call.1} parent=67 // pred_fallthru
          _
        // Predicated region
        $region81: #{tpu_custom_call.1} parent=67 // pred_check
          %p434 = pneg %p262
        $region82: #{tpu_custom_call.1} parent=67 // pred_check_branch
          %436 = sbr.rel (%p434) target = $region84
        $region83: #{tpu_custom_call.1} parent=67 // pred_region
          %437 = dma.done [#allocation13], 1280
        $region84: #{tpu_custom_call.1} parent=67 // pred_fallthru
          _
        %s438 = sand.u32 %s39, 1
        %s439 = scalar_lea.sflag [#allocation7], %s438
        %s440 = sand.u32 %s39, 1
        %s441 = smul.addr %s440, 4
        %s442 = scalar_lea.vmem [#allocation6], %s441
        %p443 = pneg %p52
        %p444 = pneg %p49
        %p445 = pneg %p73
        %p446 = pneg %p70
        %p447 = pneg %p94
        %p448 = pneg %p91
        %p449 = pneg %p115
        %p450 = pneg %p112
        %p451 = pneg %p136
        %p452 = pneg %p133
        %p453 = pneg %p157
        %p454 = pneg %p154
        %p455 = pneg %p178
        %p456 = pneg %p175
        %p457 = pneg %p199
        %p458 = pneg %p196
        %p459 = pneg %p220
        %p460 = pneg %p217
        %p461 = pneg %p241
        %p462 = pneg %p238
        %p463 = pneg %p262
        %p464 = pneg %p259
        %p465 = pneg %p283
        %p466 = pneg %p280
        %p467 = pneg %p309
        %p468 = pneg %p306
        %s469 = sand.u32 %s296, 1
        %s470 = scalar_lea.sflag [#allocation8], %s469
        %s471 = sand.u32 %s296, 1
        %s472 = smul.addr %s471, 8
        %s473 = scalar_lea.vmem [#allocation14], %s472
        %s474 = smul.u32 4, %s31
        %p476 = scmp.eq.s32.totalorder %s31, 0
        // Predicated region
        $region85: #{tpu_custom_call.1} parent=67 // pred_check
          %p477 = pneg %p476
        $region86: #{tpu_custom_call.1} parent=67 // pred_check_branch
          %479 = sbr.rel (%p477) target = $region88
        $region87: #{tpu_custom_call.1} parent=67 // pred_region
          %vm480 = vcmask 254976
          %481 = vst.msk [vmem:[#allocation2] sm:$0x3] %vm480, 0.0
          %482 = vst.msk [vmem:[#allocation3] sm:$0x3] %vm480, 0.0
          %483 = vst.msk [vmem:[#allocation4] sm:$0x3] %vm480, 0.0
          %484 = vst.msk [vmem:[#allocation5] sm:$0x3] %vm480, 0.0
        $region88: #{tpu_custom_call.1} parent=67 // pred_fallthru
          _
        %v485 = vld [vmem:[#allocation2] sm:$0x3]
        %v486 = vld [vmem:[#allocation4] sm:$0x3]
        %488 = vrot.lane.b32.xlu0 %v486, 32
        %v489 = vpop.permute.xlu0 %488
        %vm491 = vcmask 261120
        %v492 = vsel %vm491, %v485, %v489
        %v493 = vpack.c.bf16 %v492, %v492
        %v494 = vld [vmem:[%s421] sm:$0x1]
        %v495 = vunpack.c.l.bf16 %v494
        %v496 = vld [vmem:[%s6] sm:$0xf]
        %v497 = vld [vmem:[%s6 + $0x4] sm:$0xf]
        %v498 = vld [vmem:[%s6 + $0x8] sm:$0xf]
        %v499 = vld [vmem:[%s6 + $0xc] sm:$0xf]
        %v500 = vld [vmem:[%s6 + $0x10] sm:$0xf]
        %v501 = vld [vmem:[%s6 + $0x14] sm:$0xf]
        %v502 = vld [vmem:[%s6 + $0x18] sm:$0xf]
        %v503 = vld [vmem:[%s6 + $0x1c] sm:$0xf]
        %v512 = vunpack.c.l.b16 %v496
        %v513 = vunpack.c.l.b16 %v497
        %v514 = vunpack.c.l.b16 %v498
        %v515 = vunpack.c.l.b16 %v499
        %v516 = vunpack.c.l.b16 %v500
        %v517 = vunpack.c.l.b16 %v501
        %v518 = vunpack.c.l.b16 %v502
        %v519 = vunpack.c.l.b16 %v503
        %v520 = vpack.c.b16 %v513, %v512
        %v521 = vpack.c.b16 %v515, %v514
        %v522 = vpack.c.b16 %v517, %v516
        %v523 = vpack.c.b16 %v519, %v518
        %vm528 = vcmask 523264
        %v530 = vsel %vm528, %v493, 0
        %532 = vmatprep.subr.bf16.mxu0 0
        %533 = vmatpush1.bf16.msra.mxu0 %v520
        %534 = vmatprep.subr.bf16.mxu0 0
        %535 = vmatpush1.bf16.msra.mxu0 %v521
        %536 = vmatprep.subr.bf16.mxu0 0
        %537 = vmatpush1.bf16.msra.mxu0 %v522
        %538 = vmatprep.subr.bf16.mxu0 0
        %539 = vmatpush1.bf16.msra.mxu0 %v523
        %540 = vmatprep.subr.bf16.mxu0 0
        %541 = vmatpush1.bf16.msra.mxu0 0
        %542 = vmatprep.subr.bf16.mxu0 0
        %543 = vmatpush1.bf16.msra.mxu0 0
        %544 = vmatprep.subr.bf16.mxu0 0
        %545 = vmatpush1.bf16.msra.mxu0 0
        %546 = vmatprep.subr.bf16.mxu0 0
        %547 = vmatpush1.bf16.msra.mxu0 0
        %548 = vmatprep.subr.bf16.mxu0 0
        %549 = vmatpush1.bf16.msra.mxu0 0
        %550 = vmatprep.subr.bf16.mxu0 0
        %551 = vmatpush1.bf16.msra.mxu0 0
        %552 = vmatprep.subr.bf16.mxu0 0
        %553 = vmatpush1.bf16.msra.mxu0 0
        %554 = vmatprep.subr.bf16.mxu0 0
        %555 = vmatpush1.bf16.msra.mxu0 0
        %556 = vmatprep.subr.bf16.mxu0 0
        %557 = vmatpush1.bf16.msra.mxu0 0
        %558 = vmatprep.subr.bf16.mxu0 0
        %559 = vmatpush1.bf16.msra.mxu0 0
        %560 = vmatprep.subr.bf16.mxu0 0
        %561 = vmatpush1.bf16.msra.mxu0 0
        %562 = vmatprep.subr.bf16.mxu0 0
        %563 = vmatpush1.bf16.msra.mxu0 0
        %564 = vmatprep.mubr.bf16.mxu0 0
        %565 = vmatmul.mubr.bf16.gmra.mrb[0].mxu0 %v530
        %v566 = vpop.f32.mrb[0].mxu0
        %v567 = vadd.f32 0.0, %v566
        %v568 = vpop.f32.mrb[0].mxu0
        %v569 = vpop.f32.mrb[0].mxu0
        %v570 = vpop.f32.mrb[0].mxu0
        %571 = vdwg.mxu0
        %v572 = vadd.f32 %v495, %v567
        %v573 = vld [vmem:[#allocation5] sm:$0x3]
        %v574 = vxor.u32 %v572, 2147483648
        %v575 = vmul.f32 %v574, 1.442695
        %v576 = vpow.pop %v575
        %v577 = vadd.f32 %v576, 1.0
        %v578 = vrcp.pop %v577
        %v579 = vmul.f32 1.0, %v578
        %v580 = vtanh.pop %v572
        %v583 = vunpack.c.l.s4 1983009808
        %v584 = vunpack.c.0.s8 %v583
        %v585 = vlaneseq
        %v586 = vshrl.u32 %v585, 7
        %v587 = vsub.s32 %v584, %v586
        %v588 = vrot.slane %v573, %v587
        %589 = vrot.lane.b32.xlu0 %v588, 32
        %v590 = vpop.permute.xlu0 %589
        %v592 = vmul.f32 %v579, %v590
        %594 = vrot.lane.b32.xlu0 %v580, 32
        %v595 = vpop.permute.xlu0 %594
        %v597 = vmul.f32 %v579, %v595
        %599 = vrot.lane.b32.xlu0 %v597, 32
        %v600 = vpop.permute.xlu0 %599
        %v602 = vadd.f32 %v592, %v600
        %v603 = vtanh.pop %v602
        %605 = vrot.lane.b32.xlu0 %v603, 32
        %v606 = vpop.permute.xlu0 %605
        %v608 = vmul.f32 %v579, %v606
        %v611 = vunpack.c.l.s4 1983009808
        %v612 = vunpack.c.0.s8 %v611
        %v613 = vlaneseq
        %v614 = vshrl.u32 %v613, 7
        %v615 = vsub.s32 %v612, %v614
        %v616 = vrot.slane %v608, %v615
        %617 = vrot.lane.b32.xlu0 %v616, 64
        %v618 = vpop.permute.xlu0 %617
        %vm620 = vcmask 254976
        %621 = vst.msk [vmem:[#allocation4] sm:$0x3] %vm620, %v618
        %v624 = vunpack.c.l.s4 1983009808
        %v625 = vunpack.c.0.s8 %v624
        %v626 = vlaneseq
        %v627 = vshrl.u32 %v626, 7
        %v628 = vsub.s32 %v625, %v627
        %v629 = vrot.slane %v602, %v628
        %630 = vrot.lane.b32.xlu0 %v629, 96
        %v631 = vpop.permute.xlu0 %630
        %633 = vst.msk [vmem:[#allocation5] sm:$0x3] %vm620, %v631
        %v634 = vpack.c.bf16 %v608, %v608
        %v635 = vld [vmem:[%s7] sm:$0xf]
        %v636 = vld [vmem:[%s7 + $0x4] sm:$0xf]
        %v637 = vld [vmem:[%s7 + $0x8] sm:$0xf]
        %v638 = vld [vmem:[%s7 + $0xc] sm:$0xf]
        %640 = vrot.lane.b32.xlu0 %v634, 64
        %v641 = vpop.permute.xlu0 %640
        %v646 = vunpack.c.l.b16 %v635
        %v647 = vunpack.c.l.b16 %v636
        %v648 = vunpack.c.l.b16 %v637
        %v649 = vunpack.c.l.b16 %v638
        %v650 = vpack.c.b16 %v647, %v646
        %v651 = vpack.c.b16 %v649, %v648
        %v655 = vsel %vm491, %v641, 0
        %657 = vmatprep.subr.bf16.mxu0 0
        %658 = vmatpush1.bf16.msra.mxu0 %v650
        %659 = vmatprep.subr.bf16.mxu0 0
        %660 = vmatpush1.bf16.msra.mxu0 %v651
        %661 = vmatprep.subr.bf16.mxu0 0
        %662 = vmatpush1.bf16.msra.mxu0 0
        %663 = vmatprep.subr.bf16.mxu0 0
        %664 = vmatpush1.bf16.msra.mxu0 0
        %665 = vmatprep.subr.bf16.mxu0 0
        %666 = vmatpush1.bf16.msra.mxu0 0
        %667 = vmatprep.subr.bf16.mxu0 0
        %668 = vmatpush1.bf16.msra.mxu0 0
        %669 = vmatprep.subr.bf16.mxu0 0
        %670 = vmatpush1.bf16.msra.mxu0 0
        %671 = vmatprep.subr.bf16.mxu0 0
        %672 = vmatpush1.bf16.msra.mxu0 0
        %673 = vmatprep.subr.bf16.mxu0 0
        %674 = vmatpush1.bf16.msra.mxu0 0
        %675 = vmatprep.subr.bf16.mxu0 0
        %676 = vmatpush1.bf16.msra.mxu0 0
        %677 = vmatprep.subr.bf16.mxu0 0
        %678 = vmatpush1.bf16.msra.mxu0 0
        %679 = vmatprep.subr.bf16.mxu0 0
        %680 = vmatpush1.bf16.msra.mxu0 0
        %681 = vmatprep.subr.bf16.mxu0 0
        %682 = vmatpush1.bf16.msra.mxu0 0
        %683 = vmatprep.subr.bf16.mxu0 0
        %684 = vmatpush1.bf16.msra.mxu0 0
        %685 = vmatprep.subr.bf16.mxu0 0
        %686 = vmatpush1.bf16.msra.mxu0 0
        %687 = vmatprep.subr.bf16.mxu0 0
        %688 = vmatpush1.bf16.msra.mxu0 0
        %689 = vmatprep.mubr.bf16.mxu0 0
        %690 = vmatmul.mubr.bf16.gmra.mrb[0].mxu0 %v655
        %v691 = vpop.f32.mrb[0].mxu0
        %v692 = vadd.f32 0.0, %v691
        %v693 = vpop.f32.mrb[0].mxu0
        %v694 = vpop.f32.mrb[0].mxu0
        %v695 = vpop.f32.mrb[0].mxu0
        %696 = vdwg.mxu0
        %v697 = vld [vmem:[%s1] sm:$0x3f]
        %v698 = vld [vmem:[%s1 + $0x8] sm:$0x3f]
        %v699 = vld [vmem:[%s3] sm:$0x7]
        %v700 = vld [vmem:[%s3 + $0x4] sm:$0x7]
        %v701 = vld [vmem:[%s8] sm:$0x1]
        %v702 = vld [vmem:[#allocation11] sm:$0x3]
        %v705 = vunpack.c.l.s4 1966171168
        %v706 = vunpack.c.0.s8 %v705
        %v707 = vlaneseq
        %v708 = vshrl.u32 %v707, 7
        %v709 = vsub.s32 %v706, %v708
        %v710 = vrot.slane %v692, %v709
        %v711 = vcombine.high %v710, %v710
        %v713 = vunpack.c.l.s4 1966171168
        %v714 = vunpack.c.0.s8 %v713
        %v715 = vlaneseq
        %v716 = vshrl.u32 %v715, 7
        %v717 = vsub.s32 %v714, %v716
        %v718 = vrot.slane %v710, %v717
        %v720 = vunpack.c.l.s4 1966171168
        %v721 = vunpack.c.0.s8 %v720
        %v722 = vlaneseq
        %v723 = vshrl.u32 %v722, 7
        %v724 = vsub.s32 %v721, %v723
        %v725 = vrot.slane %v711, %v724
        %v726 = vlaneseq
        %v727 = vshrl.u32 %v726, 7
        %v728 = vsub.s32 0, %v727
        %v729 = vrot.slane %v718, %v728
        %v730 = vlaneseq
        %v731 = vshrl.u32 %v730, 7
        %v732 = vsub.s32 0, %v731
        %v733 = vrot.slane %v725, %v732
        %v736 = vadd.f32 %v729, %v697
        %v737 = vadd.f32 %v733, %v698
        %v738 = vtanh.pop %v736
        %v739 = vtanh.pop %v737
        %v741 = vlaneseq
        %v742 = vshrl.u32 %v741, 7
        %v743 = vsub.s32 0, %v742
        %v744 = vrot.slane %v701, %v743
        %v746 = vmul.f32 %v738, %v744
        %v747 = vmul.f32 %v739, %v744
        %vm748 = vcmask 259072
        %v749 = vsel %vm748, %v746, 0.0
        %750 = vadd.xlane.f32.xlu0 %v749
        %v751 = vpop.xlane.xlu0 %750
        %v752 = vsel %vm748, %v747, 0.0
        %753 = vadd.xlane.f32.xlu0 %v752
        %v754 = vpop.xlane.xlu0 %753
        %v756 = vlaneseq
        %v757 = vshrl.u32 %v756, 7
        %v758 = vsub.s32 0, %v757
        %v759 = vrot.slane %v702, %v758
        %761 = vbcast.lane.b32.xlu0 %v759, 256
        %v762 = vpop.permute.xlu0 %761
        %v763 = vlaneseq
        %v764 = vshrl.u32 %v763, 7
        %v765 = vsub.s32 1, %v764
        %v766 = vrot.slane %v702, %v765
        %768 = vbcast.lane.b32.xlu0 %v766, 256
        %v769 = vpop.permute.xlu0 %768
        %v772 = vadd.f32 %v751, %v762
        %v773 = vadd.f32 %v754, %v769
        %776 = vset.pattern.permute.xlu0 0
        %777 = vperm.xlu0 %776, %v772
        %v778 = vpop.permute.xlu0 %777
        %779 = vset.pattern.permute.xlu0 0
        %780 = vperm.xlu0 %779, %v773
        %v781 = vpop.permute.xlu0 %780
        %v782 = vlaneseq
        %v783 = vand.u32 %v782, 127
        %v784 = vlaneseq
        %v785 = vshrl.u32 %v784, 7
        %v786 = vsub.s32 %v783, %v785
        %v787 = vrot.slane %v778, %v786
        %v788 = vlaneseq
        %v789 = vshrl.u32 %v788, 7
        %v790 = vsub.s32 %v783, %v789
        %v791 = vrot.slane %v781, %v790
        %vm792 = vcmask 1041409
        %v793 = vsel %vm792, %v791, %v787
        %vm795 = vcmask 41984
        %v796 = vsel %vm795, %v793, -inf
        %797 = vmax.xlane.f32.xlu0 %v796
        %v798 = vpop.xlane.xlu0 %797
        %v800 = vlaneseq
        %v801 = vshrl.u32 %v800, 7
        %v802 = vsub.s32 0, %v801
        %v803 = vrot.slane %v798, %v802
        %v804 = vlaneseq
        %v805 = vshrl.u32 %v804, 7
        %v806 = vsub.s32 1, %v805
        %v807 = vrot.slane %v798, %v806
        %v810 = vsub.f32 %v772, %v803
        %v811 = vsub.f32 %v773, %v807
        %v812 = vmul.f32 %v810, 1.442695
        %v813 = vpow.pop %v812
        %v814 = vmul.f32 %v811, 1.442695
        %v815 = vpow.pop %v814
        %818 = vset.pattern.permute.xlu0 0
        %819 = vperm.xlu0 %818, %v813
        %v820 = vpop.permute.xlu0 %819
        %821 = vset.pattern.permute.xlu0 0
        %822 = vperm.xlu0 %821, %v815
        %v823 = vpop.permute.xlu0 %822
        %v824 = vlaneseq
        %v825 = vshrl.u32 %v824, 7
        %v826 = vsub.s32 %v783, %v825
        %v827 = vrot.slane %v820, %v826
        %v828 = vlaneseq
        %v829 = vshrl.u32 %v828, 7
        %v830 = vsub.s32 %v783, %v829
        %v831 = vrot.slane %v823, %v830
        %v832 = vsel %vm792, %v831, %v827
        %v834 = vsel %vm795, %v832, 0.0
        %835 = vadd.xlane.f32.xlu0 %v834
        %v836 = vpop.xlane.xlu0 %835
        %v838 = vlaneseq
        %v839 = vshrl.u32 %v838, 7
        %v840 = vsub.s32 0, %v839
        %v841 = vrot.slane %v836, %v840
        %v842 = vlaneseq
        %v843 = vshrl.u32 %v842, 7
        %v844 = vsub.s32 1, %v843
        %v845 = vrot.slane %v836, %v844
        %v848 = vrcp.pop %v841
        %v849 = vmul.f32 %v813, %v848
        %v850 = vrcp.pop %v845
        %v851 = vmul.f32 %v815, %v850
        %v852 = vunpack.c.l.bf16 %v699
        %v853 = vunpack.c.l.bf16 %v700
        %855 = vset.pattern.permute.xlu0 0
        %856 = vperm.xlu0 %855, %v849
        %v857 = vpop.permute.xlu0 %856
        %860 = vset.pattern.permute.xlu0 0
        %861 = vperm.xlu0 %860, %v851
        %v862 = vpop.permute.xlu0 %861
        %v864 = vmul.f32 %v857, %v852
        %v865 = vmul.f32 %v862, %v853
        %v866 = vsel %vm748, %v864, 0.0
        %v867 = vrot.slane %v866, 4
        %v868 = vadd.f32 %v866, %v867
        %v869 = vrot.slane %v868, 2
        %v870 = vadd.f32 %v868, %v869
        %v871 = vrot.slane %v870, 1
        %v872 = vadd.f32 %v870, %v871
        %v873 = vsel %vm748, %v865, 0.0
        %v874 = vrot.slane %v873, 4
        %v875 = vadd.f32 %v873, %v874
        %v876 = vrot.slane %v875, 2
        %v877 = vadd.f32 %v875, %v876
        %v878 = vrot.slane %v877, 1
        %v879 = vadd.f32 %v877, %v878
        %v880 = vld [vmem:[%s2] sm:$0xff]
        %v881 = vld [vmem:[%s2 + $0x8] sm:$0xff]
        %v882 = vld [vmem:[#allocation9] sm:$0xf]
        %v883 = vld [vmem:[#allocation9 + $0x4] sm:$0xf]
        %v884 = vld [vmem:[%s9] sm:$0x1]
        %887 = vrot.lane.b32.xlu0 %v880, 32
        %v888 = vpop.permute.xlu0 %887
        %889 = vrot.lane.b32.xlu0 %v881, 32
        %v890 = vpop.permute.xlu0 %889
        %v893 = vadd.f32 %v729, %v888
        %v894 = vadd.f32 %v733, %v890
        %v895 = vtanh.pop %v893
        %v896 = vtanh.pop %v894
        %v898 = vlaneseq
        %v899 = vshrl.u32 %v898, 7
        %v900 = vsub.s32 0, %v899
        %v901 = vrot.slane %v884, %v900
        %902 = vrot.lane.b32.xlu0 %v901, 32
        %v903 = vpop.permute.xlu0 %902
        %v905 = vmul.f32 %v895, %v903
        %v906 = vmul.f32 %v896, %v903
        %909 = vrot.lane.b32.xlu0 %v905, 96
        %v910 = vpop.permute.xlu0 %909
        %911 = vrot.lane.b32.xlu0 %v906, 96
        %v912 = vpop.permute.xlu0 %911
        %v915 = vsel %vm491, %v910, 0.0
        %916 = vadd.xlane.f32.xlu0 %v915
        %v917 = vpop.xlane.xlu0 %916
        %v918 = vsel %vm491, %v912, 0.0
        %919 = vadd.xlane.f32.xlu0 %v918
        %v920 = vpop.xlane.xlu0 %919
        %v923 = vlaneseq
        %v924 = vshrl.u32 %v923, 7
        %v925 = vsub.s32 %v783, %v924
        %v926 = vrot.slane %v917, %v925
        %v927 = vlaneseq
        %v928 = vshrl.u32 %v927, 7
        %v929 = vsub.s32 %v783, %v928
        %v930 = vrot.slane %v920, %v929
        %v931 = vsel %vm792, %v930, %v926
        %vm933 = vcmask 58368
        %v934 = vsel %vm933, %v931, -inf
        %935 = vmax.xlane.f32.xlu0 %v934
        %v936 = vpop.xlane.xlu0 %935
        %v938 = vlaneseq
        %v939 = vshrl.u32 %v938, 7
        %v940 = vsub.s32 0, %v939
        %v941 = vrot.slane %v936, %v940
        %v942 = vlaneseq
        %v943 = vshrl.u32 %v942, 7
        %v944 = vsub.s32 1, %v943
        %v945 = vrot.slane %v936, %v944
        %v948 = vsub.f32 %v917, %v941
        %v949 = vsub.f32 %v920, %v945
        %v950 = vmul.f32 %v948, 1.442695
        %v951 = vpow.pop %v950
        %v952 = vmul.f32 %v949, 1.442695
        %v953 = vpow.pop %v952
        %956 = vset.pattern.permute.xlu0 0
        %957 = vperm.xlu0 %956, %v951
        %v958 = vpop.permute.xlu0 %957
        %959 = vset.pattern.permute.xlu0 0
        %960 = vperm.xlu0 %959, %v953
        %v961 = vpop.permute.xlu0 %960
        %v962 = vlaneseq
        %v963 = vshrl.u32 %v962, 7
        %v964 = vsub.s32 %v783, %v963
        %v965 = vrot.slane %v958, %v964
        %v966 = vlaneseq
        %v967 = vshrl.u32 %v966, 7
        %v968 = vsub.s32 %v783, %v967
        %v969 = vrot.slane %v961, %v968
        %v970 = vsel %vm792, %v969, %v965
        %v972 = vsel %vm933, %v970, 0.0
        %973 = vadd.xlane.f32.xlu0 %v972
        %v974 = vpop.xlane.xlu0 %973
        %v976 = vlaneseq
        %v977 = vshrl.u32 %v976, 7
        %v978 = vsub.s32 0, %v977
        %v979 = vrot.slane %v974, %v978
        %v980 = vlaneseq
        %v981 = vshrl.u32 %v980, 7
        %v982 = vsub.s32 1, %v981
        %v983 = vrot.slane %v974, %v982
        %v986 = vrcp.pop %v979
        %v987 = vmul.f32 %v951, %v986
        %v988 = vrcp.pop %v983
        %v989 = vmul.f32 %v953, %v988
        %v990 = vunpack.c.l.bf16 %v882
        %v991 = vunpack.c.l.bf16 %v883
        %993 = vset.pattern.permute.xlu0 0
        %994 = vperm.xlu0 %993, %v987
        %v995 = vpop.permute.xlu0 %994
        %998 = vset.pattern.permute.xlu0 0
        %999 = vperm.xlu0 %998, %v989
        %v1000 = vpop.permute.xlu0 %999
        %v1002 = vmul.f32 %v995, %v990
        %v1003 = vmul.f32 %v1000, %v991
        %v1004 = vsel %vm528, %v1002, 0.0
        %v1005 = vrot.slane %v1004, 4
        %v1006 = vadd.f32 %v1004, %v1005
        %v1007 = vrot.slane %v1006, 2
        %v1008 = vadd.f32 %v1006, %v1007
        %v1009 = vrot.slane %v1008, 1
        %v1010 = vadd.f32 %v1008, %v1009
        %v1011 = vsel %vm528, %v1003, 0.0
        %v1012 = vrot.slane %v1011, 4
        %v1013 = vadd.f32 %v1011, %v1012
        %v1014 = vrot.slane %v1013, 2
        %v1015 = vadd.f32 %v1013, %v1014
        %v1016 = vrot.slane %v1015, 1
        %v1017 = vadd.f32 %v1015, %v1016
        %v1020 = vsel %vm792, %v879, %v872
        %v1024 = vsel %vm792, %v1017, %v1010
        %1025 = vrot.lane.b32.xlu0 %v1024, 32
        %v1026 = vpop.permute.xlu0 %1025
        %1028 = vrot.lane.b32.xlu0 %v616, 32
        %v1029 = vpop.permute.xlu0 %1028
        %v1031 = vsel %vm491, %v1020, %v1026
        %vm1032 = vcmask 785408
        %v1033 = vsel %vm1032, %v1031, %v1029
        %v1034 = vpack.c.bf16 %v1033, %v1033
        %v1035 = vpack.c.bf16 %v485, %v485
        %v1036 = vld [vmem:[#allocation12] sm:$0xf]
        %v1037 = vld [vmem:[#allocation12 + $0x4] sm:$0xf]
        %v1038 = vld [vmem:[#allocation12 + $0x8] sm:$0xf]
        %v1039 = vld [vmem:[#allocation12 + $0xc] sm:$0xf]
        %v1040 = vld [vmem:[#allocation12 + $0x10] sm:$0xf]
        %v1041 = vld [vmem:[#allocation12 + $0x14] sm:$0xf]
        %v1042 = vld [vmem:[#allocation12 + $0x18] sm:$0xf]
        %v1043 = vld [vmem:[#allocation12 + $0x1c] sm:$0xf]
        %v1044 = vld [vmem:[#allocation12 + $0x20] sm:$0xf]
        %v1045 = vld [vmem:[#allocation12 + $0x24] sm:$0xf]
        %v1046 = vld [vmem:[#allocation12 + $0x28] sm:$0xf]
        %v1047 = vld [vmem:[#allocation12 + $0x2c] sm:$0xf]
        %v1048 = vld [vmem:[#allocation12 + $0x30] sm:$0xf]
        %v1049 = vld [vmem:[#allocation12 + $0x34] sm:$0xf]
        %v1050 = vld [vmem:[#allocation12 + $0x38] sm:$0xf]
        %v1051 = vld [vmem:[#allocation12 + $0x3c] sm:$0xf]
        %v1052 = vld [vmem:[#allocation12 + $0x40] sm:$0xf]
        %v1053 = vld [vmem:[#allocation12 + $0x44] sm:$0xf]
        %v1054 = vld [vmem:[#allocation12 + $0x48] sm:$0xf]
        %v1055 = vld [vmem:[#allocation12 + $0x4c] sm:$0xf]
        %v1056 = vld [vmem:[%s11] sm:$0x1]
        %v1058 = vlaneseq
        %v1059 = vshrl.u32 %v1058, 7
        %v1060 = vsub.s32 0, %v1059
        %v1061 = vrot.slane %v1056, %v1060
        %v1083 = vunpack.c.l.b16 %v1036
        %v1084 = vunpack.c.l.b16 %v1037
        %v1085 = vunpack.c.l.b16 %v1038
        %v1086 = vunpack.c.l.b16 %v1039
        %v1087 = vunpack.c.l.b16 %v1040
        %v1088 = vunpack.c.l.b16 %v1041
        %v1089 = vunpack.c.l.b16 %v1042
        %v1090 = vunpack.c.l.b16 %v1043
        %v1091 = vunpack.c.l.b16 %v1044
        %v1092 = vunpack.c.l.b16 %v1045
        %v1093 = vunpack.c.l.b16 %v1046
        %v1094 = vunpack.c.l.b16 %v1047
        %v1095 = vunpack.c.l.b16 %v1048
        %v1096 = vunpack.c.l.b16 %v1049
        %v1097 = vunpack.c.l.b16 %v1050
        %v1098 = vunpack.c.l.b16 %v1051
        %v1099 = vunpack.c.l.b16 %v1052
        %v1100 = vunpack.c.l.b16 %v1053
        %v1101 = vunpack.c.l.b16 %v1054
        %v1102 = vunpack.c.l.b16 %v1055
        %v1103 = vpack.c.b16 %v1084, %v1083
        %v1104 = vpack.c.b16 %v1086, %v1085
        %v1105 = vpack.c.b16 %v1088, %v1087
        %v1106 = vpack.c.b16 %v1090, %v1089
        %v1107 = vpack.c.b16 %v1092, %v1091
        %v1108 = vpack.c.b16 %v1094, %v1093
        %v1109 = vpack.c.b16 %v1096, %v1095
        %v1110 = vpack.c.b16 %v1098, %v1097
        %v1111 = vpack.c.b16 %v1100, %v1099
        %v1112 = vpack.c.b16 %v1102, %v1101
        %v1124 = vsel %vm491, %v1035, 0
        %1126 = vmatprep.subr.bf16.mxu0 0
        %1127 = vmatpush1.bf16.msra.mxu0 %v1103
        %1128 = vmatprep.subr.bf16.mxu0 0
        %1129 = vmatpush1.bf16.msra.mxu0 %v1104
        %1130 = vmatprep.subr.bf16.mxu0 0
        %1131 = vmatpush1.bf16.msra.mxu0 %v1105
        %1132 = vmatprep.subr.bf16.mxu0 0
        %1133 = vmatpush1.bf16.msra.mxu0 %v1106
        %1134 = vmatprep.subr.bf16.mxu0 0
        %1135 = vmatpush1.bf16.msra.mxu0 %v1107
        %1136 = vmatprep.subr.bf16.mxu0 0
        %1137 = vmatpush1.bf16.msra.mxu0 %v1108
        %1138 = vmatprep.subr.bf16.mxu0 0
        %1139 = vmatpush1.bf16.msra.mxu0 %v1109
        %1140 = vmatprep.subr.bf16.mxu0 0
        %1141 = vmatpush1.bf16.msra.mxu0 %v1110
        %1142 = vmatprep.subr.bf16.mxu0 0
        %1143 = vmatpush1.bf16.msra.mxu0 %v1111
        %1144 = vmatprep.subr.bf16.mxu0 0
        %1145 = vmatpush1.bf16.msra.mxu0 %v1112
        %1146 = vmatprep.subr.bf16.mxu0 0
        %1147 = vmatpush1.bf16.msra.mxu0 0
        %1148 = vmatprep.subr.bf16.mxu0 0
        %1149 = vmatpush1.bf16.msra.mxu0 0
        %1150 = vmatprep.subr.bf16.mxu0 0
        %1151 = vmatpush1.bf16.msra.mxu0 0
        %1152 = vmatprep.subr.bf16.mxu0 0
        %1153 = vmatpush1.bf16.msra.mxu0 0
        %1154 = vmatprep.subr.bf16.mxu0 0
        %1155 = vmatpush1.bf16.msra.mxu0 0
        %1156 = vmatprep.subr.bf16.mxu0 0
        %1157 = vmatpush1.bf16.msra.mxu0 0
        %1158 = vmatprep.mubr.bf16.mxu0 %v1124
        %1159 = vmatmul.mubr.bf16.gmra.mrb[0].mxu0 %v1034
        %v1160 = vpop.f32.mrb[0].mxu0
        %v1161 = vadd.f32 %v1061, %v1160
        %v1162 = vpop.f32.mrb[0].mxu0
        %v1163 = vpop.f32.mrb[0].mxu0
        %v1164 = vpop.f32.mrb[0].mxu0
        %1165 = vdwg.mxu0
        %v1166 = vld [vmem:[#allocation3] sm:$0x3]
        %v1167 = vxor.u32 %v1161, 2147483648
        %v1168 = vmul.f32 %v1167, 1.442695
        %v1169 = vpow.pop %v1168
        %v1170 = vadd.f32 %v1169, 1.0
        %v1171 = vrcp.pop %v1170
        %v1172 = vmul.f32 1.0, %v1171
        %v1173 = vtanh.pop %v1161
        %1175 = vrot.lane.b32.xlu0 %v1166, 32
        %v1176 = vpop.permute.xlu0 %1175
        %v1178 = vmul.f32 %v1172, %v1176
        %1180 = vrot.lane.b32.xlu0 %v1173, 32
        %v1181 = vpop.permute.xlu0 %1180
        %v1183 = vmul.f32 %v1172, %v1181
        %1185 = vrot.lane.b32.xlu0 %v1183, 32
        %v1186 = vpop.permute.xlu0 %1185
        %v1188 = vadd.f32 %v1178, %v1186
        %v1189 = vtanh.pop %v1188
        %1191 = vrot.lane.b32.xlu0 %v1189, 32
        %v1192 = vpop.permute.xlu0 %1191
        %v1194 = vmul.f32 %v1172, %v1192
        %1196 = vrot.lane.b32.xlu0 %v1194, 64
        %v1197 = vpop.permute.xlu0 %1196
        %1199 = vst.msk [vmem:[#allocation2] sm:$0x3] %vm620, %v1197
        %1201 = vrot.lane.b32.xlu0 %v1188, 96
        %v1202 = vpop.permute.xlu0 %1201
        %1204 = vst.msk [vmem:[#allocation3] sm:$0x3] %vm620, %v1202
        %1205 = vst.msk [vmem:[%s473] sm:$0x3] %vm620, %v1197
        %v1206 = vld [vmem:[#allocation2] sm:$0x3]
        %v1207 = vld [vmem:[#allocation4] sm:$0x3]
        %1209 = vrot.lane.b32.xlu0 %v1207, 32
        %v1210 = vpop.permute.xlu0 %1209
        %v1212 = vsel %vm491, %v1206, %v1210
        %v1213 = vpack.c.bf16 %v1212, %v1212
        %s1214 = scalar_lea.vmem %s421, 1 [#allocation6]
        %v1215 = vld [vmem:[%s1214] sm:$0x1]
        %v1216 = vunpack.c.l.bf16 %v1215
        %v1217 = vld [vmem:[%s6] sm:$0xf]
        %v1218 = vld [vmem:[%s6 + $0x4] sm:$0xf]
        %v1219 = vld [vmem:[%s6 + $0x8] sm:$0xf]
        %v1220 = vld [vmem:[%s6 + $0xc] sm:$0xf]
        %v1221 = vld [vmem:[%s6 + $0x10] sm:$0xf]
        %v1222 = vld [vmem:[%s6 + $0x14] sm:$0xf]
        %v1223 = vld [vmem:[%s6 + $0x18] sm:$0xf]
        %v1224 = vld [vmem:[%s6 + $0x1c] sm:$0xf]
        %v1233 = vunpack.c.l.b16 %v1217
        %v1234 = vunpack.c.l.b16 %v1218
        %v1235 = vunpack.c.l.b16 %v1219
        %v1236 = vunpack.c.l.b16 %v1220
        %v1237 = vunpack.c.l.b16 %v1221
        %v1238 = vunpack.c.l.b16 %v1222
        %v1239 = vunpack.c.l.b16 %v1223
        %v1240 = vunpack.c.l.b16 %v1224
        %v1241 = vpack.c.b16 %v1234, %v1233
        %v1242 = vpack.c.b16 %v1236, %v1235
        %v1243 = vpack.c.b16 %v1238, %v1237
        %v1244 = vpack.c.b16 %v1240, %v1239
        %v1250 = vsel %vm528, %v1213, 0
        %1252 = vmatprep.subr.bf16.mxu0 0
        %1253 = vmatpush1.bf16.msra.mxu0 %v1241
        %1254 = vmatprep.subr.bf16.mxu0 0
        %1255 = vmatpush1.bf16.msra.mxu0 %v1242
        %1256 = vmatprep.subr.bf16.mxu0 0
        %1257 = vmatpush1.bf16.msra.mxu0 %v1243
        %1258 = vmatprep.subr.bf16.mxu0 0
        %1259 = vmatpush1.bf16.msra.mxu0 %v1244
        %1260 = vmatprep.subr.bf16.mxu0 0
        %1261 = vmatpush1.bf16.msra.mxu0 0
        %1262 = vmatprep.subr.bf16.mxu0 0
        %1263 = vmatpush1.bf16.msra.mxu0 0
        %1264 = vmatprep.subr.bf16.mxu0 0
        %1265 = vmatpush1.bf16.msra.mxu0 0
        %1266 = vmatprep.subr.bf16.mxu0 0
        %1267 = vmatpush1.bf16.msra.mxu0 0
        %1268 = vmatprep.subr.bf16.mxu0 0
        %1269 = vmatpush1.bf16.msra.mxu0 0
        %1270 = vmatprep.subr.bf16.mxu0 0
        %1271 = vmatpush1.bf16.msra.mxu0 0
        %1272 = vmatprep.subr.bf16.mxu0 0
        %1273 = vmatpush1.bf16.msra.mxu0 0
        %1274 = vmatprep.subr.bf16.mxu0 0
        %1275 = vmatpush1.bf16.msra.mxu0 0
        %1276 = vmatprep.subr.bf16.mxu0 0
        %1277 = vmatpush1.bf16.msra.mxu0 0
        %1278 = vmatprep.subr.bf16.mxu0 0
        %1279 = vmatpush1.bf16.msra.mxu0 0
        %1280 = vmatprep.subr.bf16.mxu0 0
        %1281 = vmatpush1.bf16.msra.mxu0 0
        %1282 = vmatprep.subr.bf16.mxu0 0
        %1283 = vmatpush1.bf16.msra.mxu0 0
        %1284 = vmatprep.mubr.bf16.mxu0 0
        %1285 = vmatmul.mubr.bf16.gmra.mrb[0].mxu0 %v1250
        %v1286 = vpop.f32.mrb[0].mxu0
        %v1287 = vadd.f32 0.0, %v1286
        %v1288 = vpop.f32.mrb[0].mxu0
        %v1289 = vpop.f32.mrb[0].mxu0
        %v1290 = vpop.f32.mrb[0].mxu0
        %1291 = vdwg.mxu0
        %v1292 = vadd.f32 %v1216, %v1287
        %v1293 = vld [vmem:[#allocation5] sm:$0x3]
        %v1294 = vxor.u32 %v1292, 2147483648
        %v1295 = vmul.f32 %v1294, 1.442695
        %v1296 = vpow.pop %v1295
        %v1297 = vadd.f32 %v1296, 1.0
        %v1298 = vrcp.pop %v1297
        %v1299 = vmul.f32 1.0, %v1298
        %v1300 = vtanh.pop %v1292
        %v1303 = vunpack.c.l.s4 1983009808
        %v1304 = vunpack.c.0.s8 %v1303
        %v1305 = vlaneseq
        %v1306 = vshrl.u32 %v1305, 7
        %v1307 = vsub.s32 %v1304, %v1306
        %v1308 = vrot.slane %v1293, %v1307
        %1309 = vrot.lane.b32.xlu0 %v1308, 32
        %v1310 = vpop.permute.xlu0 %1309
        %v1312 = vmul.f32 %v1299, %v1310
        %1314 = vrot.lane.b32.xlu0 %v1300, 32
        %v1315 = vpop.permute.xlu0 %1314
        %v1317 = vmul.f32 %v1299, %v1315
        %1319 = vrot.lane.b32.xlu0 %v1317, 32
        %v1320 = vpop.permute.xlu0 %1319
        %v1322 = vadd.f32 %v1312, %v1320
        %v1323 = vtanh.pop %v1322
        %1325 = vrot.lane.b32.xlu0 %v1323, 32
        %v1326 = vpop.permute.xlu0 %1325
        %v1328 = vmul.f32 %v1299, %v1326
        %v1331 = vunpack.c.l.s4 1983009808
        %v1332 = vunpack.c.0.s8 %v1331
        %v1333 = vlaneseq
        %v1334 = vshrl.u32 %v1333, 7
        %v1335 = vsub.s32 %v1332, %v1334
        %v1336 = vrot.slane %v1328, %v1335
        %1337 = vrot.lane.b32.xlu0 %v1336, 64
        %v1338 = vpop.permute.xlu0 %1337
        %1340 = vst.msk [vmem:[#allocation4] sm:$0x3] %vm620, %v1338
        %v1343 = vunpack.c.l.s4 1983009808
        %v1344 = vunpack.c.0.s8 %v1343
        %v1345 = vlaneseq
        %v1346 = vshrl.u32 %v1345, 7
        %v1347 = vsub.s32 %v1344, %v1346
        %v1348 = vrot.slane %v1322, %v1347
        %1349 = vrot.lane.b32.xlu0 %v1348, 96
        %v1350 = vpop.permute.xlu0 %1349
        %1352 = vst.msk [vmem:[#allocation5] sm:$0x3] %vm620, %v1350
        %v1353 = vpack.c.bf16 %v1328, %v1328
        %v1354 = vld [vmem:[%s7] sm:$0xf]
        %v1355 = vld [vmem:[%s7 + $0x4] sm:$0xf]
        %v1356 = vld [vmem:[%s7 + $0x8] sm:$0xf]
        %v1357 = vld [vmem:[%s7 + $0xc] sm:$0xf]
        %1359 = vrot.lane.b32.xlu0 %v1353, 64
        %v1360 = vpop.permute.xlu0 %1359
        %v1365 = vunpack.c.l.b16 %v1354
        %v1366 = vunpack.c.l.b16 %v1355
        %v1367 = vunpack.c.l.b16 %v1356
        %v1368 = vunpack.c.l.b16 %v1357
        %v1369 = vpack.c.b16 %v1366, %v1365
        %v1370 = vpack.c.b16 %v1368, %v1367
        %v1374 = vsel %vm491, %v1360, 0
        %1376 = vmatprep.subr.bf16.mxu0 0
        %1377 = vmatpush1.bf16.msra.mxu0 %v1369
        %1378 = vmatprep.subr.bf16.mxu0 0
        %1379 = vmatpush1.bf16.msra.mxu0 %v1370
        %1380 = vmatprep.subr.bf16.mxu0 0
        %1381 = vmatpush1.bf16.msra.mxu0 0
        %1382 = vmatprep.subr.bf16.mxu0 0
        %1383 = vmatpush1.bf16.msra.mxu0 0
        %1384 = vmatprep.subr.bf16.mxu0 0
        %1385 = vmatpush1.bf16.msra.mxu0 0
        %1386 = vmatprep.subr.bf16.mxu0 0
        %1387 = vmatpush1.bf16.msra.mxu0 0
        %1388 = vmatprep.subr.bf16.mxu0 0
        %1389 = vmatpush1.bf16.msra.mxu0 0
        %1390 = vmatprep.subr.bf16.mxu0 0
        %1391 = vmatpush1.bf16.msra.mxu0 0
        %1392 = vmatprep.subr.bf16.mxu0 0
        %1393 = vmatpush1.bf16.msra.mxu0 0
        %1394 = vmatprep.subr.bf16.mxu0 0
        %1395 = vmatpush1.bf16.msra.mxu0 0
        %1396 = vmatprep.subr.bf16.mxu0 0
        %1397 = vmatpush1.bf16.msra.mxu0 0
        %1398 = vmatprep.subr.bf16.mxu0 0
        %1399 = vmatpush1.bf16.msra.mxu0 0
        %1400 = vmatprep.subr.bf16.mxu0 0
        %1401 = vmatpush1.bf16.msra.mxu0 0
        %1402 = vmatprep.subr.bf16.mxu0 0
        %1403 = vmatpush1.bf16.msra.mxu0 0
        %1404 = vmatprep.subr.bf16.mxu0 0
        %1405 = vmatpush1.bf16.msra.mxu0 0
        %1406 = vmatprep.subr.bf16.mxu0 0
        %1407 = vmatpush1.bf16.msra.mxu0 0
        %1408 = vmatprep.mubr.bf16.mxu0 0
        %1409 = vmatmul.mubr.bf16.gmra.mrb[0].mxu0 %v1374
        %v1410 = vpop.f32.mrb[0].mxu0
        %v1411 = vadd.f32 0.0, %v1410
        %v1412 = vpop.f32.mrb[0].mxu0
        %v1413 = vpop.f32.mrb[0].mxu0
        %v1414 = vpop.f32.mrb[0].mxu0
        %1415 = vdwg.mxu0
        %v1416 = vld [vmem:[%s1] sm:$0x3f]
        %v1417 = vld [vmem:[%s1 + $0x8] sm:$0x3f]
        %v1418 = vld [vmem:[%s3] sm:$0x7]
        %v1419 = vld [vmem:[%s3 + $0x4] sm:$0x7]
        %v1420 = vld [vmem:[%s8] sm:$0x1]
        %v1421 = vld [vmem:[#allocation11] sm:$0x3]
        %v1424 = vunpack.c.l.s4 1966171168
        %v1425 = vunpack.c.0.s8 %v1424
        %v1426 = vlaneseq
        %v1427 = vshrl.u32 %v1426, 7
        %v1428 = vsub.s32 %v1425, %v1427
        %v1429 = vrot.slane %v1411, %v1428
        %v1430 = vcombine.high %v1429, %v1429
        %v1432 = vunpack.c.l.s4 1966171168
        %v1433 = vunpack.c.0.s8 %v1432
        %v1434 = vlaneseq
        %v1435 = vshrl.u32 %v1434, 7
        %v1436 = vsub.s32 %v1433, %v1435
        %v1437 = vrot.slane %v1429, %v1436
        %v1439 = vunpack.c.l.s4 1966171168
        %v1440 = vunpack.c.0.s8 %v1439
        %v1441 = vlaneseq
        %v1442 = vshrl.u32 %v1441, 7
        %v1443 = vsub.s32 %v1440, %v1442
        %v1444 = vrot.slane %v1430, %v1443
        %v1445 = vlaneseq
        %v1446 = vshrl.u32 %v1445, 7
        %v1447 = vsub.s32 0, %v1446
        %v1448 = vrot.slane %v1437, %v1447
        %v1449 = vlaneseq
        %v1450 = vshrl.u32 %v1449, 7
        %v1451 = vsub.s32 0, %v1450
        %v1452 = vrot.slane %v1444, %v1451
        %v1455 = vadd.f32 %v1448, %v1416
        %v1456 = vadd.f32 %v1452, %v1417
        %v1457 = vtanh.pop %v1455
        %v1458 = vtanh.pop %v1456
        %v1460 = vlaneseq
        %v1461 = vshrl.u32 %v1460, 7
        %v1462 = vsub.s32 0, %v1461
        %v1463 = vrot.slane %v1420, %v1462
        %v1465 = vmul.f32 %v1457, %v1463
        %v1466 = vmul.f32 %v1458, %v1463
        %v1467 = vsel %vm748, %v1465, 0.0
        %1468 = vadd.xlane.f32.xlu0 %v1467
        %v1469 = vpop.xlane.xlu0 %1468
        %v1470 = vsel %vm748, %v1466, 0.0
        %1471 = vadd.xlane.f32.xlu0 %v1470
        %v1472 = vpop.xlane.xlu0 %1471
        %v1474 = vlaneseq
        %v1475 = vshrl.u32 %v1474, 7
        %v1476 = vsub.s32 0, %v1475
        %v1477 = vrot.slane %v1421, %v1476
        %1479 = vbcast.lane.b32.xlu0 %v1477, 256
        %v1480 = vpop.permute.xlu0 %1479
        %v1481 = vlaneseq
        %v1482 = vshrl.u32 %v1481, 7
        %v1483 = vsub.s32 1, %v1482
        %v1484 = vrot.slane %v1421, %v1483
        %1486 = vbcast.lane.b32.xlu0 %v1484, 256
        %v1487 = vpop.permute.xlu0 %1486
        %v1490 = vadd.f32 %v1469, %v1480
        %v1491 = vadd.f32 %v1472, %v1487
        %1494 = vset.pattern.permute.xlu0 0
        %1495 = vperm.xlu0 %1494, %v1490
        %v1496 = vpop.permute.xlu0 %1495
        %1497 = vset.pattern.permute.xlu0 0
        %1498 = vperm.xlu0 %1497, %v1491
        %v1499 = vpop.permute.xlu0 %1498
        %v1500 = vlaneseq
        %v1501 = vshrl.u32 %v1500, 7
        %v1502 = vsub.s32 %v783, %v1501
        %v1503 = vrot.slane %v1496, %v1502
        %v1504 = vlaneseq
        %v1505 = vshrl.u32 %v1504, 7
        %v1506 = vsub.s32 %v783, %v1505
        %v1507 = vrot.slane %v1499, %v1506
        %v1508 = vsel %vm792, %v1507, %v1503
        %v1510 = vsel %vm795, %v1508, -inf
        %1511 = vmax.xlane.f32.xlu0 %v1510
        %v1512 = vpop.xlane.xlu0 %1511
        %v1514 = vlaneseq
        %v1515 = vshrl.u32 %v1514, 7
        %v1516 = vsub.s32 0, %v1515
        %v1517 = vrot.slane %v1512, %v1516
        %v1518 = vlaneseq
        %v1519 = vshrl.u32 %v1518, 7
        %v1520 = vsub.s32 1, %v1519
        %v1521 = vrot.slane %v1512, %v1520
        %v1524 = vsub.f32 %v1490, %v1517
        %v1525 = vsub.f32 %v1491, %v1521
        %v1526 = vmul.f32 %v1524, 1.442695
        %v1527 = vpow.pop %v1526
        %v1528 = vmul.f32 %v1525, 1.442695
        %v1529 = vpow.pop %v1528
        %1532 = vset.pattern.permute.xlu0 0
        %1533 = vperm.xlu0 %1532, %v1527
        %v1534 = vpop.permute.xlu0 %1533
        %1535 = vset.pattern.permute.xlu0 0
        %1536 = vperm.xlu0 %1535, %v1529
        %v1537 = vpop.permute.xlu0 %1536
        %v1538 = vlaneseq
        %v1539 = vshrl.u32 %v1538, 7
        %v1540 = vsub.s32 %v783, %v1539
        %v1541 = vrot.slane %v1534, %v1540
        %v1542 = vlaneseq
        %v1543 = vshrl.u32 %v1542, 7
        %v1544 = vsub.s32 %v783, %v1543
        %v1545 = vrot.slane %v1537, %v1544
        %v1546 = vsel %vm792, %v1545, %v1541
        %v1548 = vsel %vm795, %v1546, 0.0
        %1549 = vadd.xlane.f32.xlu0 %v1548
        %v1550 = vpop.xlane.xlu0 %1549
        %v1552 = vlaneseq
        %v1553 = vshrl.u32 %v1552, 7
        %v1554 = vsub.s32 0, %v1553
        %v1555 = vrot.slane %v1550, %v1554
        %v1556 = vlaneseq
        %v1557 = vshrl.u32 %v1556, 7
        %v1558 = vsub.s32 1, %v1557
        %v1559 = vrot.slane %v1550, %v1558
        %v1562 = vrcp.pop %v1555
        %v1563 = vmul.f32 %v1527, %v1562
        %v1564 = vrcp.pop %v1559
        %v1565 = vmul.f32 %v1529, %v1564
        %v1566 = vunpack.c.l.bf16 %v1418
        %v1567 = vunpack.c.l.bf16 %v1419
        %1569 = vset.pattern.permute.xlu0 0
        %1570 = vperm.xlu0 %1569, %v1563
        %v1571 = vpop.permute.xlu0 %1570
        %1574 = vset.pattern.permute.xlu0 0
        %1575 = vperm.xlu0 %1574, %v1565
        %v1576 = vpop.permute.xlu0 %1575
        %v1578 = vmul.f32 %v1571, %v1566
        %v1579 = vmul.f32 %v1576, %v1567
        %v1580 = vsel %vm748, %v1578, 0.0
        %v1581 = vrot.slane %v1580, 4
        %v1582 = vadd.f32 %v1580, %v1581
        %v1583 = vrot.slane %v1582, 2
        %v1584 = vadd.f32 %v1582, %v1583
        %v1585 = vrot.slane %v1584, 1
        %v1586 = vadd.f32 %v1584, %v1585
        %v1587 = vsel %vm748, %v1579, 0.0
        %v1588 = vrot.slane %v1587, 4
        %v1589 = vadd.f32 %v1587, %v1588
        %v1590 = vrot.slane %v1589, 2
        %v1591 = vadd.f32 %v1589, %v1590
        %v1592 = vrot.slane %v1591, 1
        %v1593 = vadd.f32 %v1591, %v1592
        %v1594 = vld [vmem:[%s2] sm:$0xff]
        %v1595 = vld [vmem:[%s2 + $0x8] sm:$0xff]
        %v1596 = vld [vmem:[#allocation9] sm:$0xf]
        %v1597 = vld [vmem:[#allocation9 + $0x4] sm:$0xf]
        %v1598 = vld [vmem:[%s9] sm:$0x1]
        %1601 = vrot.lane.b32.xlu0 %v1594, 32
        %v1602 = vpop.permute.xlu0 %1601
        %1603 = vrot.lane.b32.xlu0 %v1595, 32
        %v1604 = vpop.permute.xlu0 %1603
        %v1607 = vadd.f32 %v1448, %v1602
        %v1608 = vadd.f32 %v1452, %v1604
        %v1609 = vtanh.pop %v1607
        %v1610 = vtanh.pop %v1608
        %v1612 = vlaneseq
        %v1613 = vshrl.u32 %v1612, 7
        %v1614 = vsub.s32 0, %v1613
        %v1615 = vrot.slane %v1598, %v1614
        %1616 = vrot.lane.b32.xlu0 %v1615, 32
        %v1617 = vpop.permute.xlu0 %1616
        %v1619 = vmul.f32 %v1609, %v1617
        %v1620 = vmul.f32 %v1610, %v1617
        %1623 = vrot.lane.b32.xlu0 %v1619, 96
        %v1624 = vpop.permute.xlu0 %1623
        %1625 = vrot.lane.b32.xlu0 %v1620, 96
        %v1626 = vpop.permute.xlu0 %1625
        %v1629 = vsel %vm491, %v1624, 0.0
        %1630 = vadd.xlane.f32.xlu0 %v1629
        %v1631 = vpop.xlane.xlu0 %1630
        %v1632 = vsel %vm491, %v1626, 0.0
        %1633 = vadd.xlane.f32.xlu0 %v1632
        %v1634 = vpop.xlane.xlu0 %1633
        %v1637 = vlaneseq
        %v1638 = vshrl.u32 %v1637, 7
        %v1639 = vsub.s32 %v783, %v1638
        %v1640 = vrot.slane %v1631, %v1639
        %v1641 = vlaneseq
        %v1642 = vshrl.u32 %v1641, 7
        %v1643 = vsub.s32 %v783, %v1642
        %v1644 = vrot.slane %v1634, %v1643
        %v1645 = vsel %vm792, %v1644, %v1640
        %v1647 = vsel %vm933, %v1645, -inf
        %1648 = vmax.xlane.f32.xlu0 %v1647
        %v1649 = vpop.xlane.xlu0 %1648
        %v1651 = vlaneseq
        %v1652 = vshrl.u32 %v1651, 7
        %v1653 = vsub.s32 0, %v1652
        %v1654 = vrot.slane %v1649, %v1653
        %v1655 = vlaneseq
        %v1656 = vshrl.u32 %v1655, 7
        %v1657 = vsub.s32 1, %v1656
        %v1658 = vrot.slane %v1649, %v1657
        %v1661 = vsub.f32 %v1631, %v1654
        %v1662 = vsub.f32 %v1634, %v1658
        %v1663 = vmul.f32 %v1661, 1.442695
        %v1664 = vpow.pop %v1663
        %v1665 = vmul.f32 %v1662, 1.442695
        %v1666 = vpow.pop %v1665
        %1669 = vset.pattern.permute.xlu0 0
        %1670 = vperm.xlu0 %1669, %v1664
        %v1671 = vpop.permute.xlu0 %1670
        %1672 = vset.pattern.permute.xlu0 0
        %1673 = vperm.xlu0 %1672, %v1666
        %v1674 = vpop.permute.xlu0 %1673
        %v1675 = vlaneseq
        %v1676 = vshrl.u32 %v1675, 7
        %v1677 = vsub.s32 %v783, %v1676
        %v1678 = vrot.slane %v1671, %v1677
        %v1679 = vlaneseq
        %v1680 = vshrl.u32 %v1679, 7
        %v1681 = vsub.s32 %v783, %v1680
        %v1682 = vrot.slane %v1674, %v1681
        %v1683 = vsel %vm792, %v1682, %v1678
        %v1685 = vsel %vm933, %v1683, 0.0
        %1686 = vadd.xlane.f32.xlu0 %v1685
        %v1687 = vpop.xlane.xlu0 %1686
        %v1689 = vlaneseq
        %v1690 = vshrl.u32 %v1689, 7
        %v1691 = vsub.s32 0, %v1690
        %v1692 = vrot.slane %v1687, %v1691
        %v1693 = vlaneseq
        %v1694 = vshrl.u32 %v1693, 7
        %v1695 = vsub.s32 1, %v1694
        %v1696 = vrot.slane %v1687, %v1695
        %v1699 = vrcp.pop %v1692
        %v1700 = vmul.f32 %v1664, %v1699
        %v1701 = vrcp.pop %v1696
        %v1702 = vmul.f32 %v1666, %v1701
        %v1703 = vunpack.c.l.bf16 %v1596
        %v1704 = vunpack.c.l.bf16 %v1597
        %1706 = vset.pattern.permute.xlu0 0
        %1707 = vperm.xlu0 %1706, %v1700
        %v1708 = vpop.permute.xlu0 %1707
        %1711 = vset.pattern.permute.xlu0 0
        %1712 = vperm.xlu0 %1711, %v1702
        %v1713 = vpop.permute.xlu0 %1712
        %v1715 = vmul.f32 %v1708, %v1703
        %v1716 = vmul.f32 %v1713, %v1704
        %v1717 = vsel %vm528, %v1715, 0.0
        %v1718 = vrot.slane %v1717, 4
        %v1719 = vadd.f32 %v1717, %v1718
        %v1720 = vrot.slane %v1719, 2
        %v1721 = vadd.f32 %v1719, %v1720
        %v1722 = vrot.slane %v1721, 1
        %v1723 = vadd.f32 %v1721, %v1722
        %v1724 = vsel %vm528, %v1716, 0.0
        %v1725 = vrot.slane %v1724, 4
        %v1726 = vadd.f32 %v1724, %v1725
        %v1727 = vrot.slane %v1726, 2
        %v1728 = vadd.f32 %v1726, %v1727
        %v1729 = vrot.slane %v1728, 1
        %v1730 = vadd.f32 %v1728, %v1729
        %v1733 = vsel %vm792, %v1593, %v1586
        %v1737 = vsel %vm792, %v1730, %v1723
        %1738 = vrot.lane.b32.xlu0 %v1737, 32
        %v1739 = vpop.permute.xlu0 %1738
        %1741 = vrot.lane.b32.xlu0 %v1336, 32
        %v1742 = vpop.permute.xlu0 %1741
        %v1744 = vsel %vm491, %v1733, %v1739
        %v1745 = vsel %vm1032, %v1744, %v1742
        %v1746 = vpack.c.bf16 %v1745, %v1745
        %v1747 = vpack.c.bf16 %v1206, %v1206
        %v1748 = vld [vmem:[#allocation12] sm:$0xf]
        %v1749 = vld [vmem:[#allocation12 + $0x4] sm:$0xf]
        %v1750 = vld [vmem:[#allocation12 + $0x8] sm:$0xf]
        %v1751 = vld [vmem:[#allocation12 + $0xc] sm:$0xf]
        %v1752 = vld [vmem:[#allocation12 + $0x10] sm:$0xf]
        %v1753 = vld [vmem:[#allocation12 + $0x14] sm:$0xf]
        %v1754 = vld [vmem:[#allocation12 + $0x18] sm:$0xf]
        %v1755 = vld [vmem:[#allocation12 + $0x1c] sm:$0xf]
        %v1756 = vld [vmem:[#allocation12 + $0x20] sm:$0xf]
        %v1757 = vld [vmem:[#allocation12 + $0x24] sm:$0xf]
        %v1758 = vld [vmem:[#allocation12 + $0x28] sm:$0xf]
        %v1759 = vld [vmem:[#allocation12 + $0x2c] sm:$0xf]
        %v1760 = vld [vmem:[#allocation12 + $0x30] sm:$0xf]
        %v1761 = vld [vmem:[#allocation12 + $0x34] sm:$0xf]
        %v1762 = vld [vmem:[#allocation12 + $0x38] sm:$0xf]
        %v1763 = vld [vmem:[#allocation12 + $0x3c] sm:$0xf]
        %v1764 = vld [vmem:[#allocation12 + $0x40] sm:$0xf]
        %v1765 = vld [vmem:[#allocation12 + $0x44] sm:$0xf]
        %v1766 = vld [vmem:[#allocation12 + $0x48] sm:$0xf]
        %v1767 = vld [vmem:[#allocation12 + $0x4c] sm:$0xf]
        %v1768 = vld [vmem:[%s11] sm:$0x1]
        %v1770 = vlaneseq
        %v1771 = vshrl.u32 %v1770, 7
        %v1772 = vsub.s32 0, %v1771
        %v1773 = vrot.slane %v1768, %v1772
        %v1795 = vunpack.c.l.b16 %v1748
        %v1796 = vunpack.c.l.b16 %v1749
        %v1797 = vunpack.c.l.b16 %v1750
        %v1798 = vunpack.c.l.b16 %v1751
        %v1799 = vunpack.c.l.b16 %v1752
        %v1800 = vunpack.c.l.b16 %v1753
        %v1801 = vunpack.c.l.b16 %v1754
        %v1802 = vunpack.c.l.b16 %v1755
        %v1803 = vunpack.c.l.b16 %v1756
        %v1804 = vunpack.c.l.b16 %v1757
        %v1805 = vunpack.c.l.b16 %v1758
        %v1806 = vunpack.c.l.b16 %v1759
        %v1807 = vunpack.c.l.b16 %v1760
        %v1808 = vunpack.c.l.b16 %v1761
        %v1809 = vunpack.c.l.b16 %v1762
        %v1810 = vunpack.c.l.b16 %v1763
        %v1811 = vunpack.c.l.b16 %v1764
        %v1812 = vunpack.c.l.b16 %v1765
        %v1813 = vunpack.c.l.b16 %v1766
        %v1814 = vunpack.c.l.b16 %v1767
        %v1815 = vpack.c.b16 %v1796, %v1795
        %v1816 = vpack.c.b16 %v1798, %v1797
        %v1817 = vpack.c.b16 %v1800, %v1799
        %v1818 = vpack.c.b16 %v1802, %v1801
        %v1819 = vpack.c.b16 %v1804, %v1803
        %v1820 = vpack.c.b16 %v1806, %v1805
        %v1821 = vpack.c.b16 %v1808, %v1807
        %v1822 = vpack.c.b16 %v1810, %v1809
        %v1823 = vpack.c.b16 %v1812, %v1811
        %v1824 = vpack.c.b16 %v1814, %v1813
        %v1836 = vsel %vm491, %v1747, 0
        %1838 = vmatprep.subr.bf16.mxu0 0
        %1839 = vmatpush1.bf16.msra.mxu0 %v1815
        %1840 = vmatprep.subr.bf16.mxu0 0
        %1841 = vmatpush1.bf16.msra.mxu0 %v1816
        %1842 = vmatprep.subr.bf16.mxu0 0
        %1843 = vmatpush1.bf16.msra.mxu0 %v1817
        %1844 = vmatprep.subr.bf16.mxu0 0
        %1845 = vmatpush1.bf16.msra.mxu0 %v1818
        %1846 = vmatprep.subr.bf16.mxu0 0
        %1847 = vmatpush1.bf16.msra.mxu0 %v1819
        %1848 = vmatprep.subr.bf16.mxu0 0
        %1849 = vmatpush1.bf16.msra.mxu0 %v1820
        %1850 = vmatprep.subr.bf16.mxu0 0
        %1851 = vmatpush1.bf16.msra.mxu0 %v1821
        %1852 = vmatprep.subr.bf16.mxu0 0
        %1853 = vmatpush1.bf16.msra.mxu0 %v1822
        %1854 = vmatprep.subr.bf16.mxu0 0
        %1855 = vmatpush1.bf16.msra.mxu0 %v1823
        %1856 = vmatprep.subr.bf16.mxu0 0
        %1857 = vmatpush1.bf16.msra.mxu0 %v1824
        %1858 = vmatprep.subr.bf16.mxu0 0
        %1859 = vmatpush1.bf16.msra.mxu0 0
        %1860 = vmatprep.subr.bf16.mxu0 0
        %1861 = vmatpush1.bf16.msra.mxu0 0
        %1862 = vmatprep.subr.bf16.mxu0 0
        %1863 = vmatpush1.bf16.msra.mxu0 0
        %1864 = vmatprep.subr.bf16.mxu0 0
        %1865 = vmatpush1.bf16.msra.mxu0 0
        %1866 = vmatprep.subr.bf16.mxu0 0
        %1867 = vmatpush1.bf16.msra.mxu0 0
        %1868 = vmatprep.subr.bf16.mxu0 0
        %1869 = vmatpush1.bf16.msra.mxu0 0
        %1870 = vmatprep.mubr.bf16.mxu0 %v1836
        %1871 = vmatmul.mubr.bf16.gmra.mrb[0].mxu0 %v1746
        %v1872 = vpop.f32.mrb[0].mxu0
        %v1873 = vadd.f32 %v1773, %v1872
        %v1874 = vpop.f32.mrb[0].mxu0
        %v1875 = vpop.f32.mrb[0].mxu0
        %v1876 = vpop.f32.mrb[0].mxu0
        %1877 = vdwg.mxu0
        %v1878 = vld [vmem:[#allocation3] sm:$0x3]
        %v1879 = vxor.u32 %v1873, 2147483648
        %v1880 = vmul.f32 %v1879, 1.442695
        %v1881 = vpow.pop %v1880
        %v1882 = vadd.f32 %v1881, 1.0
        %v1883 = vrcp.pop %v1882
        %v1884 = vmul.f32 1.0, %v1883
        %v1885 = vtanh.pop %v1873
        %1887 = vrot.lane.b32.xlu0 %v1878, 32
        %v1888 = vpop.permute.xlu0 %1887
        %v1890 = vmul.f32 %v1884, %v1888
        %1892 = vrot.lane.b32.xlu0 %v1885, 32
        %v1893 = vpop.permute.xlu0 %1892
        %v1895 = vmul.f32 %v1884, %v1893
        %1897 = vrot.lane.b32.xlu0 %v1895, 32
        %v1898 = vpop.permute.xlu0 %1897
        %v1900 = vadd.f32 %v1890, %v1898
        %v1901 = vtanh.pop %v1900
        %1903 = vrot.lane.b32.xlu0 %v1901, 32
        %v1904 = vpop.permute.xlu0 %1903
        %v1906 = vmul.f32 %v1884, %v1904
        %1908 = vrot.lane.b32.xlu0 %v1906, 64
        %v1909 = vpop.permute.xlu0 %1908
        %1911 = vst.msk [vmem:[#allocation2] sm:$0x3] %vm620, %v1909
        %1913 = vrot.lane.b32.xlu0 %v1900, 96
        %v1914 = vpop.permute.xlu0 %1913
        %1916 = vst.msk [vmem:[#allocation3] sm:$0x3] %vm620, %v1914
        %1917 = vst.msk [vmem:[%s473 + $0x2] sm:$0x3] %vm620, %v1909
        %v1918 = vld [vmem:[#allocation2] sm:$0x3]
        %v1919 = vld [vmem:[#allocation4] sm:$0x3]
        %1921 = vrot.lane.b32.xlu0 %v1919, 32
        %v1922 = vpop.permute.xlu0 %1921
        %v1924 = vsel %vm491, %v1918, %v1922
        %v1925 = vpack.c.bf16 %v1924, %v1924
        %s1926 = scalar_lea.vmem %s421, 2 [#allocation6]
        %v1927 = vld [vmem:[%s1926] sm:$0x1]
        %v1928 = vunpack.c.l.bf16 %v1927
        %v1929 = vld [vmem:[%s6] sm:$0xf]
        %v1930 = vld [vmem:[%s6 + $0x4] sm:$0xf]
        %v1931 = vld [vmem:[%s6 + $0x8] sm:$0xf]
        %v1932 = vld [vmem:[%s6 + $0xc] sm:$0xf]
        %v1933 = vld [vmem:[%s6 + $0x10] sm:$0xf]
        %v1934 = vld [vmem:[%s6 + $0x14] sm:$0xf]
        %v1935 = vld [vmem:[%s6 + $0x18] sm:$0xf]
        %v1936 = vld [vmem:[%s6 + $0x1c] sm:$0xf]
        %v1945 = vunpack.c.l.b16 %v1929
        %v1946 = vunpack.c.l.b16 %v1930
        %v1947 = vunpack.c.l.b16 %v1931
        %v1948 = vunpack.c.l.b16 %v1932
        %v1949 = vunpack.c.l.b16 %v1933
        %v1950 = vunpack.c.l.b16 %v1934
        %v1951 = vunpack.c.l.b16 %v1935
        %v1952 = vunpack.c.l.b16 %v1936
        %v1953 = vpack.c.b16 %v1946, %v1945
        %v1954 = vpack.c.b16 %v1948, %v1947
        %v1955 = vpack.c.b16 %v1950, %v1949
        %v1956 = vpack.c.b16 %v1952, %v1951
        %v1962 = vsel %vm528, %v1925, 0
        %1964 = vmatprep.subr.bf16.mxu0 0
        %1965 = vmatpush1.bf16.msra.mxu0 %v1953
        %1966 = vmatprep.subr.bf16.mxu0 0
        %1967 = vmatpush1.bf16.msra.mxu0 %v1954
        %1968 = vmatprep.subr.bf16.mxu0 0
        %1969 = vmatpush1.bf16.msra.mxu0 %v1955
        %1970 = vmatprep.subr.bf16.mxu0 0
        %1971 = vmatpush1.bf16.msra.mxu0 %v1956
        %1972 = vmatprep.subr.bf16.mxu0 0
        %1973 = vmatpush1.bf16.msra.mxu0 0
        %1974 = vmatprep.subr.bf16.mxu0 0
        %1975 = vmatpush1.bf16.msra.mxu0 0
        %1976 = vmatprep.subr.bf16.mxu0 0
        %1977 = vmatpush1.bf16.msra.mxu0 0
        %1978 = vmatprep.subr.bf16.mxu0 0
        %1979 = vmatpush1.bf16.msra.mxu0 0
        %1980 = vmatprep.subr.bf16.mxu0 0
        %1981 = vmatpush1.bf16.msra.mxu0 0
        %1982 = vmatprep.subr.bf16.mxu0 0
        %1983 = vmatpush1.bf16.msra.mxu0 0
        %1984 = vmatprep.subr.bf16.mxu0 0
        %1985 = vmatpush1.bf16.msra.mxu0 0
        %1986 = vmatprep.subr.bf16.mxu0 0
        %1987 = vmatpush1.bf16.msra.mxu0 0
        %1988 = vmatprep.subr.bf16.mxu0 0
        %1989 = vmatpush1.bf16.msra.mxu0 0
        %1990 = vmatprep.subr.bf16.mxu0 0
        %1991 = vmatpush1.bf16.msra.mxu0 0
        %1992 = vmatprep.subr.bf16.mxu0 0
        %1993 = vmatpush1.bf16.msra.mxu0 0
        %1994 = vmatprep.subr.bf16.mxu0 0
        %1995 = vmatpush1.bf16.msra.mxu0 0
        %1996 = vmatprep.mubr.bf16.mxu0 0
        %1997 = vmatmul.mubr.bf16.gmra.mrb[0].mxu0 %v1962
        %v1998 = vpop.f32.mrb[0].mxu0
        %v1999 = vadd.f32 0.0, %v1998
        %v2000 = vpop.f32.mrb[0].mxu0
        %v2001 = vpop.f32.mrb[0].mxu0
        %v2002 = vpop.f32.mrb[0].mxu0
        %2003 = vdwg.mxu0
        %v2004 = vadd.f32 %v1928, %v1999
        %v2005 = vld [vmem:[#allocation5] sm:$0x3]
        %v2006 = vxor.u32 %v2004, 2147483648
        %v2007 = vmul.f32 %v2006, 1.442695
        %v2008 = vpow.pop %v2007
        %v2009 = vadd.f32 %v2008, 1.0
        %v2010 = vrcp.pop %v2009
        %v2011 = vmul.f32 1.0, %v2010
        %v2012 = vtanh.pop %v2004
        %v2015 = vunpack.c.l.s4 1983009808
        %v2016 = vunpack.c.0.s8 %v2015
        %v2017 = vlaneseq
        %v2018 = vshrl.u32 %v2017, 7
        %v2019 = vsub.s32 %v2016, %v2018
        %v2020 = vrot.slane %v2005, %v2019
        %2021 = vrot.lane.b32.xlu0 %v2020, 32
        %v2022 = vpop.permute.xlu0 %2021
        %v2024 = vmul.f32 %v2011, %v2022
        %2026 = vrot.lane.b32.xlu0 %v2012, 32
        %v2027 = vpop.permute.xlu0 %2026
        %v2029 = vmul.f32 %v2011, %v2027
        %2031 = vrot.lane.b32.xlu0 %v2029, 32
        %v2032 = vpop.permute.xlu0 %2031
        %v2034 = vadd.f32 %v2024, %v2032
        %v2035 = vtanh.pop %v2034
        %2037 = vrot.lane.b32.xlu0 %v2035, 32
        %v2038 = vpop.permute.xlu0 %2037
        %v2040 = vmul.f32 %v2011, %v2038
        %v2043 = vunpack.c.l.s4 1983009808
        %v2044 = vunpack.c.0.s8 %v2043
        %v2045 = vlaneseq
        %v2046 = vshrl.u32 %v2045, 7
        %v2047 = vsub.s32 %v2044, %v2046
        %v2048 = vrot.slane %v2040, %v2047
        %2049 = vrot.lane.b32.xlu0 %v2048, 64
        %v2050 = vpop.permute.xlu0 %2049
        %2052 = vst.msk [vmem:[#allocation4] sm:$0x3] %vm620, %v2050
        %v2055 = vunpack.c.l.s4 1983009808
        %v2056 = vunpack.c.0.s8 %v2055
        %v2057 = vlaneseq
        %v2058 = vshrl.u32 %v2057, 7
        %v2059 = vsub.s32 %v2056, %v2058
        %v2060 = vrot.slane %v2034, %v2059
        %2061 = vrot.lane.b32.xlu0 %v2060, 96
        %v2062 = vpop.permute.xlu0 %2061
        %2064 = vst.msk [vmem:[#allocation5] sm:$0x3] %vm620, %v2062
        %v2065 = vpack.c.bf16 %v2040, %v2040
        %v2066 = vld [vmem:[%s7] sm:$0xf]
        %v2067 = vld [vmem:[%s7 + $0x4] sm:$0xf]
        %v2068 = vld [vmem:[%s7 + $0x8] sm:$0xf]
        %v2069 = vld [vmem:[%s7 + $0xc] sm:$0xf]
        %2071 = vrot.lane.b32.xlu0 %v2065, 64
        %v2072 = vpop.permute.xlu0 %2071
        %v2077 = vunpack.c.l.b16 %v2066
        %v2078 = vunpack.c.l.b16 %v2067
        %v2079 = vunpack.c.l.b16 %v2068
        %v2080 = vunpack.c.l.b16 %v2069
        %v2081 = vpack.c.b16 %v2078, %v2077
        %v2082 = vpack.c.b16 %v2080, %v2079
        %v2086 = vsel %vm491, %v2072, 0
        %2088 = vmatprep.subr.bf16.mxu0 0
        %2089 = vmatpush1.bf16.msra.mxu0 %v2081
        %2090 = vmatprep.subr.bf16.mxu0 0
        %2091 = vmatpush1.bf16.msra.mxu0 %v2082
        %2092 = vmatprep.subr.bf16.mxu0 0
        %2093 = vmatpush1.bf16.msra.mxu0 0
        %2094 = vmatprep.subr.bf16.mxu0 0
        %2095 = vmatpush1.bf16.msra.mxu0 0
        %2096 = vmatprep.subr.bf16.mxu0 0
        %2097 = vmatpush1.bf16.msra.mxu0 0
        %2098 = vmatprep.subr.bf16.mxu0 0
        %2099 = vmatpush1.bf16.msra.mxu0 0
        %2100 = vmatprep.subr.bf16.mxu0 0
        %2101 = vmatpush1.bf16.msra.mxu0 0
        %2102 = vmatprep.subr.bf16.mxu0 0
        %2103 = vmatpush1.bf16.msra.mxu0 0
        %2104 = vmatprep.subr.bf16.mxu0 0
        %2105 = vmatpush1.bf16.msra.mxu0 0
        %2106 = vmatprep.subr.bf16.mxu0 0
        %2107 = vmatpush1.bf16.msra.mxu0 0
        %2108 = vmatprep.subr.bf16.mxu0 0
        %2109 = vmatpush1.bf16.msra.mxu0 0
        %2110 = vmatprep.subr.bf16.mxu0 0
        %2111 = vmatpush1.bf16.msra.mxu0 0
        %2112 = vmatprep.subr.bf16.mxu0 0
        %2113 = vmatpush1.bf16.msra.mxu0 0
        %2114 = vmatprep.subr.bf16.mxu0 0
        %2115 = vmatpush1.bf16.msra.mxu0 0
        %2116 = vmatprep.subr.bf16.mxu0 0
        %2117 = vmatpush1.bf16.msra.mxu0 0
        %2118 = vmatprep.subr.bf16.mxu0 0
        %2119 = vmatpush1.bf16.msra.mxu0 0
        %2120 = vmatprep.mubr.bf16.mxu0 0
        %2121 = vmatmul.mubr.bf16.gmra.mrb[0].mxu0 %v2086
        %v2122 = vpop.f32.mrb[0].mxu0
        %v2123 = vadd.f32 0.0, %v2122
        %v2124 = vpop.f32.mrb[0].mxu0
        %v2125 = vpop.f32.mrb[0].mxu0
        %v2126 = vpop.f32.mrb[0].mxu0
        %2127 = vdwg.mxu0
        %v2128 = vld [vmem:[%s1] sm:$0x3f]
        %v2129 = vld [vmem:[%s1 + $0x8] sm:$0x3f]
        %v2130 = vld [vmem:[%s3] sm:$0x7]
        %v2131 = vld [vmem:[%s3 + $0x4] sm:$0x7]
        %v2132 = vld [vmem:[%s8] sm:$0x1]
        %v2133 = vld [vmem:[#allocation11] sm:$0x3]
        %v2136 = vunpack.c.l.s4 1966171168
        %v2137 = vunpack.c.0.s8 %v2136
        %v2138 = vlaneseq
        %v2139 = vshrl.u32 %v2138, 7
        %v2140 = vsub.s32 %v2137, %v2139
        %v2141 = vrot.slane %v2123, %v2140
        %v2142 = vcombine.high %v2141, %v2141
        %v2144 = vunpack.c.l.s4 1966171168
        %v2145 = vunpack.c.0.s8 %v2144
        %v2146 = vlaneseq
        %v2147 = vshrl.u32 %v2146, 7
        %v2148 = vsub.s32 %v2145, %v2147
        %v2149 = vrot.slane %v2141, %v2148
        %v2151 = vunpack.c.l.s4 1966171168
        %v2152 = vunpack.c.0.s8 %v2151
        %v2153 = vlaneseq
        %v2154 = vshrl.u32 %v2153, 7
        %v2155 = vsub.s32 %v2152, %v2154
        %v2156 = vrot.slane %v2142, %v2155
        %v2157 = vlaneseq
        %v2158 = vshrl.u32 %v2157, 7
        %v2159 = vsub.s32 0, %v2158
        %v2160 = vrot.slane %v2149, %v2159
        %v2161 = vlaneseq
        %v2162 = vshrl.u32 %v2161, 7
        %v2163 = vsub.s32 0, %v2162
        %v2164 = vrot.slane %v2156, %v2163
        %v2167 = vadd.f32 %v2160, %v2128
        %v2168 = vadd.f32 %v2164, %v2129
        %v2169 = vtanh.pop %v2167
        %v2170 = vtanh.pop %v2168
        %v2172 = vlaneseq
        %v2173 = vshrl.u32 %v2172, 7
        %v2174 = vsub.s32 0, %v2173
        %v2175 = vrot.slane %v2132, %v2174
        %v2177 = vmul.f32 %v2169, %v2175
        %v2178 = vmul.f32 %v2170, %v2175
        %v2179 = vsel %vm748, %v2177, 0.0
        %2180 = vadd.xlane.f32.xlu0 %v2179
        %v2181 = vpop.xlane.xlu0 %2180
        %v2182 = vsel %vm748, %v2178, 0.0
        %2183 = vadd.xlane.f32.xlu0 %v2182
        %v2184 = vpop.xlane.xlu0 %2183
        %v2186 = vlaneseq
        %v2187 = vshrl.u32 %v2186, 7
        %v2188 = vsub.s32 0, %v2187
        %v2189 = vrot.slane %v2133, %v2188
        %2191 = vbcast.lane.b32.xlu0 %v2189, 256
        %v2192 = vpop.permute.xlu0 %2191
        %v2193 = vlaneseq
        %v2194 = vshrl.u32 %v2193, 7
        %v2195 = vsub.s32 1, %v2194
        %v2196 = vrot.slane %v2133, %v2195
        %2198 = vbcast.lane.b32.xlu0 %v2196, 256
        %v2199 = vpop.permute.xlu0 %2198
        %v2202 = vadd.f32 %v2181, %v2192
        %v2203 = vadd.f32 %v2184, %v2199
        %2206 = vset.pattern.permute.xlu0 0
        %2207 = vperm.xlu0 %2206, %v2202
        %v2208 = vpop.permute.xlu0 %2207
        %2209 = vset.pattern.permute.xlu0 0
        %2210 = vperm.xlu0 %2209, %v2203
        %v2211 = vpop.permute.xlu0 %2210
        %v2212 = vlaneseq
        %v2213 = vshrl.u32 %v2212, 7
        %v2214 = vsub.s32 %v783, %v2213
        %v2215 = vrot.slane %v2208, %v2214
        %v2216 = vlaneseq
        %v2217 = vshrl.u32 %v2216, 7
        %v2218 = vsub.s32 %v783, %v2217
        %v2219 = vrot.slane %v2211, %v2218
        %v2220 = vsel %vm792, %v2219, %v2215
        %v2222 = vsel %vm795, %v2220, -inf
        %2223 = vmax.xlane.f32.xlu0 %v2222
        %v2224 = vpop.xlane.xlu0 %2223
        %v2226 = vlaneseq
        %v2227 = vshrl.u32 %v2226, 7
        %v2228 = vsub.s32 0, %v2227
        %v2229 = vrot.slane %v2224, %v2228
        %v2230 = vlaneseq
        %v2231 = vshrl.u32 %v2230, 7
        %v2232 = vsub.s32 1, %v2231
        %v2233 = vrot.slane %v2224, %v2232
        %v2236 = vsub.f32 %v2202, %v2229
        %v2237 = vsub.f32 %v2203, %v2233
        %v2238 = vmul.f32 %v2236, 1.442695
        %v2239 = vpow.pop %v2238
        %v2240 = vmul.f32 %v2237, 1.442695
        %v2241 = vpow.pop %v2240
        %2244 = vset.pattern.permute.xlu0 0
        %2245 = vperm.xlu0 %2244, %v2239
        %v2246 = vpop.permute.xlu0 %2245
        %2247 = vset.pattern.permute.xlu0 0
        %2248 = vperm.xlu0 %2247, %v2241
        %v2249 = vpop.permute.xlu0 %2248
        %v2250 = vlaneseq
        %v2251 = vshrl.u32 %v2250, 7
        %v2252 = vsub.s32 %v783, %v2251
        %v2253 = vrot.slane %v2246, %v2252
        %v2254 = vlaneseq
        %v2255 = vshrl.u32 %v2254, 7
        %v2256 = vsub.s32 %v783, %v2255
        %v2257 = vrot.slane %v2249, %v2256
        %v2258 = vsel %vm792, %v2257, %v2253
        %v2260 = vsel %vm795, %v2258, 0.0
        %2261 = vadd.xlane.f32.xlu0 %v2260
        %v2262 = vpop.xlane.xlu0 %2261
        %v2264 = vlaneseq
        %v2265 = vshrl.u32 %v2264, 7
        %v2266 = vsub.s32 0, %v2265
        %v2267 = vrot.slane %v2262, %v2266
        %v2268 = vlaneseq
        %v2269 = vshrl.u32 %v2268, 7
        %v2270 = vsub.s32 1, %v2269
        %v2271 = vrot.slane %v2262, %v2270
        %v2274 = vrcp.pop %v2267
        %v2275 = vmul.f32 %v2239, %v2274
        %v2276 = vrcp.pop %v2271
        %v2277 = vmul.f32 %v2241, %v2276
        %v2278 = vunpack.c.l.bf16 %v2130
        %v2279 = vunpack.c.l.bf16 %v2131
        %2281 = vset.pattern.permute.xlu0 0
        %2282 = vperm.xlu0 %2281, %v2275
        %v2283 = vpop.permute.xlu0 %2282
        %2286 = vset.pattern.permute.xlu0 0
        %2287 = vperm.xlu0 %2286, %v2277
        %v2288 = vpop.permute.xlu0 %2287
        %v2290 = vmul.f32 %v2283, %v2278
        %v2291 = vmul.f32 %v2288, %v2279
        %v2292 = vsel %vm748, %v2290, 0.0
        %v2293 = vrot.slane %v2292, 4
        %v2294 = vadd.f32 %v2292, %v2293
        %v2295 = vrot.slane %v2294, 2
        %v2296 = vadd.f32 %v2294, %v2295
        %v2297 = vrot.slane %v2296, 1
        %v2298 = vadd.f32 %v2296, %v2297
        %v2299 = vsel %vm748, %v2291, 0.0
        %v2300 = vrot.slane %v2299, 4
        %v2301 = vadd.f32 %v2299, %v2300
        %v2302 = vrot.slane %v2301, 2
        %v2303 = vadd.f32 %v2301, %v2302
        %v2304 = vrot.slane %v2303, 1
        %v2305 = vadd.f32 %v2303, %v2304
        %v2306 = vld [vmem:[%s2] sm:$0xff]
        %v2307 = vld [vmem:[%s2 + $0x8] sm:$0xff]
        %v2308 = vld [vmem:[#allocation9] sm:$0xf]
        %v2309 = vld [vmem:[#allocation9 + $0x4] sm:$0xf]
        %v2310 = vld [vmem:[%s9] sm:$0x1]
        %2313 = vrot.lane.b32.xlu0 %v2306, 32
        %v2314 = vpop.permute.xlu0 %2313
        %2315 = vrot.lane.b32.xlu0 %v2307, 32
        %v2316 = vpop.permute.xlu0 %2315
        %v2319 = vadd.f32 %v2160, %v2314
        %v2320 = vadd.f32 %v2164, %v2316
        %v2321 = vtanh.pop %v2319
        %v2322 = vtanh.pop %v2320
        %v2324 = vlaneseq
        %v2325 = vshrl.u32 %v2324, 7
        %v2326 = vsub.s32 0, %v2325
        %v2327 = vrot.slane %v2310, %v2326
        %2328 = vrot.lane.b32.xlu0 %v2327, 32
        %v2329 = vpop.permute.xlu0 %2328
        %v2331 = vmul.f32 %v2321, %v2329
        %v2332 = vmul.f32 %v2322, %v2329
        %2335 = vrot.lane.b32.xlu0 %v2331, 96
        %v2336 = vpop.permute.xlu0 %2335
        %2337 = vrot.lane.b32.xlu0 %v2332, 96
        %v2338 = vpop.permute.xlu0 %2337
        %v2341 = vsel %vm491, %v2336, 0.0
        %2342 = vadd.xlane.f32.xlu0 %v2341
        %v2343 = vpop.xlane.xlu0 %2342
        %v2344 = vsel %vm491, %v2338, 0.0
        %2345 = vadd.xlane.f32.xlu0 %v2344
        %v2346 = vpop.xlane.xlu0 %2345
        %v2349 = vlaneseq
        %v2350 = vshrl.u32 %v2349, 7
        %v2351 = vsub.s32 %v783, %v2350
        %v2352 = vrot.slane %v2343, %v2351
        %v2353 = vlaneseq
        %v2354 = vshrl.u32 %v2353, 7
        %v2355 = vsub.s32 %v783, %v2354
        %v2356 = vrot.slane %v2346, %v2355
        %v2357 = vsel %vm792, %v2356, %v2352
        %v2359 = vsel %vm933, %v2357, -inf
        %2360 = vmax.xlane.f32.xlu0 %v2359
        %v2361 = vpop.xlane.xlu0 %2360
        %v2363 = vlaneseq
        %v2364 = vshrl.u32 %v2363, 7
        %v2365 = vsub.s32 0, %v2364
        %v2366 = vrot.slane %v2361, %v2365
        %v2367 = vlaneseq
        %v2368 = vshrl.u32 %v2367, 7
        %v2369 = vsub.s32 1, %v2368
        %v2370 = vrot.slane %v2361, %v2369
        %v2373 = vsub.f32 %v2343, %v2366
        %v2374 = vsub.f32 %v2346, %v2370
        %v2375 = vmul.f32 %v2373, 1.442695
        %v2376 = vpow.pop %v2375
        %v2377 = vmul.f32 %v2374, 1.442695
        %v2378 = vpow.pop %v2377
        %2381 = vset.pattern.permute.xlu0 0
        %2382 = vperm.xlu0 %2381, %v2376
        %v2383 = vpop.permute.xlu0 %2382
        %2384 = vset.pattern.permute.xlu0 0
        %2385 = vperm.xlu0 %2384, %v2378
        %v2386 = vpop.permute.xlu0 %2385
        %v2387 = vlaneseq
        %v2388 = vshrl.u32 %v2387, 7
        %v2389 = vsub.s32 %v783, %v2388
        %v2390 = vrot.slane %v2383, %v2389
        %v2391 = vlaneseq
        %v2392 = vshrl.u32 %v2391, 7
        %v2393 = vsub.s32 %v783, %v2392
        %v2394 = vrot.slane %v2386, %v2393
        %v2395 = vsel %vm792, %v2394, %v2390
        %v2397 = vsel %vm933, %v2395, 0.0
        %2398 = vadd.xlane.f32.xlu0 %v2397
        %v2399 = vpop.xlane.xlu0 %2398
        %v2401 = vlaneseq
        %v2402 = vshrl.u32 %v2401, 7
        %v2403 = vsub.s32 0, %v2402
        %v2404 = vrot.slane %v2399, %v2403
        %v2405 = vlaneseq
        %v2406 = vshrl.u32 %v2405, 7
        %v2407 = vsub.s32 1, %v2406
        %v2408 = vrot.slane %v2399, %v2407
        %v2411 = vrcp.pop %v2404
        %v2412 = vmul.f32 %v2376, %v2411
        %v2413 = vrcp.pop %v2408
        %v2414 = vmul.f32 %v2378, %v2413
        %v2415 = vunpack.c.l.bf16 %v2308
        %v2416 = vunpack.c.l.bf16 %v2309
        %2418 = vset.pattern.permute.xlu0 0
        %2419 = vperm.xlu0 %2418, %v2412
        %v2420 = vpop.permute.xlu0 %2419
        %2423 = vset.pattern.permute.xlu0 0
        %2424 = vperm.xlu0 %2423, %v2414
        %v2425 = vpop.permute.xlu0 %2424
        %v2427 = vmul.f32 %v2420, %v2415
        %v2428 = vmul.f32 %v2425, %v2416
        %v2429 = vsel %vm528, %v2427, 0.0
        %v2430 = vrot.slane %v2429, 4
        %v2431 = vadd.f32 %v2429, %v2430
        %v2432 = vrot.slane %v2431, 2
        %v2433 = vadd.f32 %v2431, %v2432
        %v2434 = vrot.slane %v2433, 1
        %v2435 = vadd.f32 %v2433, %v2434
        %v2436 = vsel %vm528, %v2428, 0.0
        %v2437 = vrot.slane %v2436, 4
        %v2438 = vadd.f32 %v2436, %v2437
        %v2439 = vrot.slane %v2438, 2
        %v2440 = vadd.f32 %v2438, %v2439
        %v2441 = vrot.slane %v2440, 1
        %v2442 = vadd.f32 %v2440, %v2441
        %v2445 = vsel %vm792, %v2305, %v2298
        %v2449 = vsel %vm792, %v2442, %v2435
        %2450 = vrot.lane.b32.xlu0 %v2449, 32
        %v2451 = vpop.permute.xlu0 %2450
        %2453 = vrot.lane.b32.xlu0 %v2048, 32
        %v2454 = vpop.permute.xlu0 %2453
        %v2456 = vsel %vm491, %v2445, %v2451
        %v2457 = vsel %vm1032, %v2456, %v2454
        %v2458 = vpack.c.bf16 %v2457, %v2457
        %v2459 = vpack.c.bf16 %v1918, %v1918
        %v2460 = vld [vmem:[#allocation12] sm:$0xf]
        %v2461 = vld [vmem:[#allocation12 + $0x4] sm:$0xf]
        %v2462 = vld [vmem:[#allocation12 + $0x8] sm:$0xf]
        %v2463 = vld [vmem:[#allocation12 + $0xc] sm:$0xf]
        %v2464 = vld [vmem:[#allocation12 + $0x10] sm:$0xf]
        %v2465 = vld [vmem:[#allocation12 + $0x14] sm:$0xf]
        %v2466 = vld [vmem:[#allocation12 + $0x18] sm:$0xf]
        %v2467 = vld [vmem:[#allocation12 + $0x1c] sm:$0xf]
        %v2468 = vld [vmem:[#allocation12 + $0x20] sm:$0xf]
        %v2469 = vld [vmem:[#allocation12 + $0x24] sm:$0xf]
        %v2470 = vld [vmem:[#allocation12 + $0x28] sm:$0xf]
        %v2471 = vld [vmem:[#allocation12 + $0x2c] sm:$0xf]
        %v2472 = vld [vmem:[#allocation12 + $0x30] sm:$0xf]
        %v2473 = vld [vmem:[#allocation12 + $0x34] sm:$0xf]
        %v2474 = vld [vmem:[#allocation12 + $0x38] sm:$0xf]
        %v2475 = vld [vmem:[#allocation12 + $0x3c] sm:$0xf]
        %v2476 = vld [vmem:[#allocation12 + $0x40] sm:$0xf]
        %v2477 = vld [vmem:[#allocation12 + $0x44] sm:$0xf]
        %v2478 = vld [vmem:[#allocation12 + $0x48] sm:$0xf]
        %v2479 = vld [vmem:[#allocation12 + $0x4c] sm:$0xf]
        %v2480 = vld [vmem:[%s11] sm:$0x1]
        %v2482 = vlaneseq
        %v2483 = vshrl.u32 %v2482, 7
        %v2484 = vsub.s32 0, %v2483
        %v2485 = vrot.slane %v2480, %v2484
        %v2507 = vunpack.c.l.b16 %v2460
        %v2508 = vunpack.c.l.b16 %v2461
        %v2509 = vunpack.c.l.b16 %v2462
        %v2510 = vunpack.c.l.b16 %v2463
        %v2511 = vunpack.c.l.b16 %v2464
        %v2512 = vunpack.c.l.b16 %v2465
        %v2513 = vunpack.c.l.b16 %v2466
        %v2514 = vunpack.c.l.b16 %v2467
        %v2515 = vunpack.c.l.b16 %v2468
        %v2516 = vunpack.c.l.b16 %v2469
        %v2517 = vunpack.c.l.b16 %v2470
        %v2518 = vunpack.c.l.b16 %v2471
        %v2519 = vunpack.c.l.b16 %v2472
        %v2520 = vunpack.c.l.b16 %v2473
        %v2521 = vunpack.c.l.b16 %v2474
        %v2522 = vunpack.c.l.b16 %v2475
        %v2523 = vunpack.c.l.b16 %v2476
        %v2524 = vunpack.c.l.b16 %v2477
        %v2525 = vunpack.c.l.b16 %v2478
        %v2526 = vunpack.c.l.b16 %v2479
        %v2527 = vpack.c.b16 %v2508, %v2507
        %v2528 = vpack.c.b16 %v2510, %v2509
        %v2529 = vpack.c.b16 %v2512, %v2511
        %v2530 = vpack.c.b16 %v2514, %v2513
        %v2531 = vpack.c.b16 %v2516, %v2515
        %v2532 = vpack.c.b16 %v2518, %v2517
        %v2533 = vpack.c.b16 %v2520, %v2519
        %v2534 = vpack.c.b16 %v2522, %v2521
        %v2535 = vpack.c.b16 %v2524, %v2523
        %v2536 = vpack.c.b16 %v2526, %v2525
        %v2548 = vsel %vm491, %v2459, 0
        %2550 = vmatprep.subr.bf16.mxu0 0
        %2551 = vmatpush1.bf16.msra.mxu0 %v2527
        %2552 = vmatprep.subr.bf16.mxu0 0
        %2553 = vmatpush1.bf16.msra.mxu0 %v2528
        %2554 = vmatprep.subr.bf16.mxu0 0
        %2555 = vmatpush1.bf16.msra.mxu0 %v2529
        %2556 = vmatprep.subr.bf16.mxu0 0
        %2557 = vmatpush1.bf16.msra.mxu0 %v2530
        %2558 = vmatprep.subr.bf16.mxu0 0
        %2559 = vmatpush1.bf16.msra.mxu0 %v2531
        %2560 = vmatprep.subr.bf16.mxu0 0
        %2561 = vmatpush1.bf16.msra.mxu0 %v2532
        %2562 = vmatprep.subr.bf16.mxu0 0
        %2563 = vmatpush1.bf16.msra.mxu0 %v2533
        %2564 = vmatprep.subr.bf16.mxu0 0
        %2565 = vmatpush1.bf16.msra.mxu0 %v2534
        %2566 = vmatprep.subr.bf16.mxu0 0
        %2567 = vmatpush1.bf16.msra.mxu0 %v2535
        %2568 = vmatprep.subr.bf16.mxu0 0
        %2569 = vmatpush1.bf16.msra.mxu0 %v2536
        %2570 = vmatprep.subr.bf16.mxu0 0
        %2571 = vmatpush1.bf16.msra.mxu0 0
        %2572 = vmatprep.subr.bf16.mxu0 0
        %2573 = vmatpush1.bf16.msra.mxu0 0
        %2574 = vmatprep.subr.bf16.mxu0 0
        %2575 = vmatpush1.bf16.msra.mxu0 0
        %2576 = vmatprep.subr.bf16.mxu0 0
        %2577 = vmatpush1.bf16.msra.mxu0 0
        %2578 = vmatprep.subr.bf16.mxu0 0
        %2579 = vmatpush1.bf16.msra.mxu0 0
        %2580 = vmatprep.subr.bf16.mxu0 0
        %2581 = vmatpush1.bf16.msra.mxu0 0
        %2582 = vmatprep.mubr.bf16.mxu0 %v2548
        %2583 = vmatmul.mubr.bf16.gmra.mrb[0].mxu0 %v2458
        %v2584 = vpop.f32.mrb[0].mxu0
        %v2585 = vadd.f32 %v2485, %v2584
        %v2586 = vpop.f32.mrb[0].mxu0
        %v2587 = vpop.f32.mrb[0].mxu0
        %v2588 = vpop.f32.mrb[0].mxu0
        %2589 = vdwg.mxu0
        %v2590 = vld [vmem:[#allocation3] sm:$0x3]
        %v2591 = vxor.u32 %v2585, 2147483648
        %v2592 = vmul.f32 %v2591, 1.442695
        %v2593 = vpow.pop %v2592
        %v2594 = vadd.f32 %v2593, 1.0
        %v2595 = vrcp.pop %v2594
        %v2596 = vmul.f32 1.0, %v2595
        %v2597 = vtanh.pop %v2585
        %2599 = vrot.lane.b32.xlu0 %v2590, 32
        %v2600 = vpop.permute.xlu0 %2599
        %v2602 = vmul.f32 %v2596, %v2600
        %2604 = vrot.lane.b32.xlu0 %v2597, 32
        %v2605 = vpop.permute.xlu0 %2604
        %v2607 = vmul.f32 %v2596, %v2605
        %2609 = vrot.lane.b32.xlu0 %v2607, 32
        %v2610 = vpop.permute.xlu0 %2609
        %v2612 = vadd.f32 %v2602, %v2610
        %v2613 = vtanh.pop %v2612
        %2615 = vrot.lane.b32.xlu0 %v2613, 32
        %v2616 = vpop.permute.xlu0 %2615
        %v2618 = vmul.f32 %v2596, %v2616
        %2620 = vrot.lane.b32.xlu0 %v2618, 64
        %v2621 = vpop.permute.xlu0 %2620
        %2623 = vst.msk [vmem:[#allocation2] sm:$0x3] %vm620, %v2621
        %2625 = vrot.lane.b32.xlu0 %v2612, 96
        %v2626 = vpop.permute.xlu0 %2625
        %2628 = vst.msk [vmem:[#allocation3] sm:$0x3] %vm620, %v2626
        %2629 = vst.msk [vmem:[%s473 + $0x4] sm:$0x3] %vm620, %v2621
        %v2630 = vld [vmem:[#allocation2] sm:$0x3]
        %v2631 = vld [vmem:[#allocation4] sm:$0x3]
        %2633 = vrot.lane.b32.xlu0 %v2631, 32
        %v2634 = vpop.permute.xlu0 %2633
        %v2636 = vsel %vm491, %v2630, %v2634
        %v2637 = vpack.c.bf16 %v2636, %v2636
        %s2638 = scalar_lea.vmem %s421, 3 [#allocation6]
        %v2639 = vld [vmem:[%s2638] sm:$0x1]
        %v2640 = vunpack.c.l.bf16 %v2639
        %v2641 = vld [vmem:[%s6] sm:$0xf]
        %v2642 = vld [vmem:[%s6 + $0x4] sm:$0xf]
        %v2643 = vld [vmem:[%s6 + $0x8] sm:$0xf]
        %v2644 = vld [vmem:[%s6 + $0xc] sm:$0xf]
        %v2645 = vld [vmem:[%s6 + $0x10] sm:$0xf]
        %v2646 = vld [vmem:[%s6 + $0x14] sm:$0xf]
        %v2647 = vld [vmem:[%s6 + $0x18] sm:$0xf]
        %v2648 = vld [vmem:[%s6 + $0x1c] sm:$0xf]
        %v2657 = vunpack.c.l.b16 %v2641
        %v2658 = vunpack.c.l.b16 %v2642
        %v2659 = vunpack.c.l.b16 %v2643
        %v2660 = vunpack.c.l.b16 %v2644
        %v2661 = vunpack.c.l.b16 %v2645
        %v2662 = vunpack.c.l.b16 %v2646
        %v2663 = vunpack.c.l.b16 %v2647
        %v2664 = vunpack.c.l.b16 %v2648
        %v2665 = vpack.c.b16 %v2658, %v2657
        %v2666 = vpack.c.b16 %v2660, %v2659
        %v2667 = vpack.c.b16 %v2662, %v2661
        %v2668 = vpack.c.b16 %v2664, %v2663
        %v2674 = vsel %vm528, %v2637, 0
        %2676 = vmatprep.subr.bf16.mxu0 0
        %2677 = vmatpush1.bf16.msra.mxu0 %v2665
        %2678 = vmatprep.subr.bf16.mxu0 0
        %2679 = vmatpush1.bf16.msra.mxu0 %v2666
        %2680 = vmatprep.subr.bf16.mxu0 0
        %2681 = vmatpush1.bf16.msra.mxu0 %v2667
        %2682 = vmatprep.subr.bf16.mxu0 0
        %2683 = vmatpush1.bf16.msra.mxu0 %v2668
        %2684 = vmatprep.subr.bf16.mxu0 0
        %2685 = vmatpush1.bf16.msra.mxu0 0
        %2686 = vmatprep.subr.bf16.mxu0 0
        %2687 = vmatpush1.bf16.msra.mxu0 0
        %2688 = vmatprep.subr.bf16.mxu0 0
        %2689 = vmatpush1.bf16.msra.mxu0 0
        %2690 = vmatprep.subr.bf16.mxu0 0
        %2691 = vmatpush1.bf16.msra.mxu0 0
        %2692 = vmatprep.subr.bf16.mxu0 0
        %2693 = vmatpush1.bf16.msra.mxu0 0
        %2694 = vmatprep.subr.bf16.mxu0 0
        %2695 = vmatpush1.bf16.msra.mxu0 0
        %2696 = vmatprep.subr.bf16.mxu0 0
        %2697 = vmatpush1.bf16.msra.mxu0 0
        %2698 = vmatprep.subr.bf16.mxu0 0
        %2699 = vmatpush1.bf16.msra.mxu0 0
        %2700 = vmatprep.subr.bf16.mxu0 0
        %2701 = vmatpush1.bf16.msra.mxu0 0
        %2702 = vmatprep.subr.bf16.mxu0 0
        %2703 = vmatpush1.bf16.msra.mxu0 0
        %2704 = vmatprep.subr.bf16.mxu0 0
        %2705 = vmatpush1.bf16.msra.mxu0 0
        %2706 = vmatprep.subr.bf16.mxu0 0
        %2707 = vmatpush1.bf16.msra.mxu0 0
        %2708 = vmatprep.mubr.bf16.mxu0 0
        %2709 = vmatmul.mubr.bf16.gmra.mrb[0].mxu0 %v2674
        %v2710 = vpop.f32.mrb[0].mxu0
        %v2711 = vadd.f32 0.0, %v2710
        %v2712 = vpop.f32.mrb[0].mxu0
        %v2713 = vpop.f32.mrb[0].mxu0
        %v2714 = vpop.f32.mrb[0].mxu0
        %2715 = vdwg.mxu0
        %v2716 = vadd.f32 %v2640, %v2711
        %v2717 = vld [vmem:[#allocation5] sm:$0x3]
        %v2718 = vxor.u32 %v2716, 2147483648
        %v2719 = vmul.f32 %v2718, 1.442695
        %v2720 = vpow.pop %v2719
        %v2721 = vadd.f32 %v2720, 1.0
        %v2722 = vrcp.pop %v2721
        %v2723 = vmul.f32 1.0, %v2722
        %v2724 = vtanh.pop %v2716
        %v2727 = vunpack.c.l.s4 1983009808
        %v2728 = vunpack.c.0.s8 %v2727
        %v2729 = vlaneseq
        %v2730 = vshrl.u32 %v2729, 7
        %v2731 = vsub.s32 %v2728, %v2730
        %v2732 = vrot.slane %v2717, %v2731
        %2733 = vrot.lane.b32.xlu0 %v2732, 32
        %v2734 = vpop.permute.xlu0 %2733
        %v2736 = vmul.f32 %v2723, %v2734
        %2738 = vrot.lane.b32.xlu0 %v2724, 32
        %v2739 = vpop.permute.xlu0 %2738
        %v2741 = vmul.f32 %v2723, %v2739
        %2743 = vrot.lane.b32.xlu0 %v2741, 32
        %v2744 = vpop.permute.xlu0 %2743
        %v2746 = vadd.f32 %v2736, %v2744
        %v2747 = vtanh.pop %v2746
        %2749 = vrot.lane.b32.xlu0 %v2747, 32
        %v2750 = vpop.permute.xlu0 %2749
        %v2752 = vmul.f32 %v2723, %v2750
        %v2755 = vunpack.c.l.s4 1983009808
        %v2756 = vunpack.c.0.s8 %v2755
        %v2757 = vlaneseq
        %v2758 = vshrl.u32 %v2757, 7
        %v2759 = vsub.s32 %v2756, %v2758
        %v2760 = vrot.slane %v2752, %v2759
        %2761 = vrot.lane.b32.xlu0 %v2760, 64
        %v2762 = vpop.permute.xlu0 %2761
        %2764 = vst.msk [vmem:[#allocation4] sm:$0x3] %vm620, %v2762
        %v2767 = vunpack.c.l.s4 1983009808
        %v2768 = vunpack.c.0.s8 %v2767
        %v2769 = vlaneseq
        %v2770 = vshrl.u32 %v2769, 7
        %v2771 = vsub.s32 %v2768, %v2770
        %v2772 = vrot.slane %v2746, %v2771
        %2773 = vrot.lane.b32.xlu0 %v2772, 96
        %v2774 = vpop.permute.xlu0 %2773
        %2776 = vst.msk [vmem:[#allocation5] sm:$0x3] %vm620, %v2774
        %v2777 = vpack.c.bf16 %v2752, %v2752
        %v2778 = vld [vmem:[%s7] sm:$0xf]
        %v2779 = vld [vmem:[%s7 + $0x4] sm:$0xf]
        %v2780 = vld [vmem:[%s7 + $0x8] sm:$0xf]
        %v2781 = vld [vmem:[%s7 + $0xc] sm:$0xf]
        %2783 = vrot.lane.b32.xlu0 %v2777, 64
        %v2784 = vpop.permute.xlu0 %2783
        %v2789 = vunpack.c.l.b16 %v2778
        %v2790 = vunpack.c.l.b16 %v2779
        %v2791 = vunpack.c.l.b16 %v2780
        %v2792 = vunpack.c.l.b16 %v2781
        %v2793 = vpack.c.b16 %v2790, %v2789
        %v2794 = vpack.c.b16 %v2792, %v2791
        %v2798 = vsel %vm491, %v2784, 0
        %2800 = vmatprep.subr.bf16.mxu0 0
        %2801 = vmatpush1.bf16.msra.mxu0 %v2793
        %2802 = vmatprep.subr.bf16.mxu0 0
        %2803 = vmatpush1.bf16.msra.mxu0 %v2794
        %2804 = vmatprep.subr.bf16.mxu0 0
        %2805 = vmatpush1.bf16.msra.mxu0 0
        %2806 = vmatprep.subr.bf16.mxu0 0
        %2807 = vmatpush1.bf16.msra.mxu0 0
        %2808 = vmatprep.subr.bf16.mxu0 0
        %2809 = vmatpush1.bf16.msra.mxu0 0
        %2810 = vmatprep.subr.bf16.mxu0 0
        %2811 = vmatpush1.bf16.msra.mxu0 0
        %2812 = vmatprep.subr.bf16.mxu0 0
        %2813 = vmatpush1.bf16.msra.mxu0 0
        %2814 = vmatprep.subr.bf16.mxu0 0
        %2815 = vmatpush1.bf16.msra.mxu0 0
        %2816 = vmatprep.subr.bf16.mxu0 0
        %2817 = vmatpush1.bf16.msra.mxu0 0
        %2818 = vmatprep.subr.bf16.mxu0 0
        %2819 = vmatpush1.bf16.msra.mxu0 0
        %2820 = vmatprep.subr.bf16.mxu0 0
        %2821 = vmatpush1.bf16.msra.mxu0 0
        %2822 = vmatprep.subr.bf16.mxu0 0
        %2823 = vmatpush1.bf16.msra.mxu0 0
        %2824 = vmatprep.subr.bf16.mxu0 0
        %2825 = vmatpush1.bf16.msra.mxu0 0
        %2826 = vmatprep.subr.bf16.mxu0 0
        %2827 = vmatpush1.bf16.msra.mxu0 0
        %2828 = vmatprep.subr.bf16.mxu0 0
        %2829 = vmatpush1.bf16.msra.mxu0 0
        %2830 = vmatprep.subr.bf16.mxu0 0
        %2831 = vmatpush1.bf16.msra.mxu0 0
        %2832 = vmatprep.mubr.bf16.mxu0 0
        %2833 = vmatmul.mubr.bf16.gmra.mrb[0].mxu0 %v2798
        %v2834 = vpop.f32.mrb[0].mxu0
        %v2835 = vadd.f32 0.0, %v2834
        %v2836 = vpop.f32.mrb[0].mxu0
        %v2837 = vpop.f32.mrb[0].mxu0
        %v2838 = vpop.f32.mrb[0].mxu0
        %2839 = vdwg.mxu0
        %v2840 = vld [vmem:[%s1] sm:$0x3f]
        %v2841 = vld [vmem:[%s1 + $0x8] sm:$0x3f]
        %v2842 = vld [vmem:[%s3] sm:$0x7]
        %v2843 = vld [vmem:[%s3 + $0x4] sm:$0x7]
        %v2844 = vld [vmem:[%s8] sm:$0x1]
        %v2845 = vld [vmem:[#allocation11] sm:$0x3]
        %v2848 = vunpack.c.l.s4 1966171168
        %v2849 = vunpack.c.0.s8 %v2848
        %v2850 = vlaneseq
        %v2851 = vshrl.u32 %v2850, 7
        %v2852 = vsub.s32 %v2849, %v2851
        %v2853 = vrot.slane %v2835, %v2852
        %v2854 = vcombine.high %v2853, %v2853
        %v2856 = vunpack.c.l.s4 1966171168
        %v2857 = vunpack.c.0.s8 %v2856
        %v2858 = vlaneseq
        %v2859 = vshrl.u32 %v2858, 7
        %v2860 = vsub.s32 %v2857, %v2859
        %v2861 = vrot.slane %v2853, %v2860
        %v2863 = vunpack.c.l.s4 1966171168
        %v2864 = vunpack.c.0.s8 %v2863
        %v2865 = vlaneseq
        %v2866 = vshrl.u32 %v2865, 7
        %v2867 = vsub.s32 %v2864, %v2866
        %v2868 = vrot.slane %v2854, %v2867
        %v2869 = vlaneseq
        %v2870 = vshrl.u32 %v2869, 7
        %v2871 = vsub.s32 0, %v2870
        %v2872 = vrot.slane %v2861, %v2871
        %v2873 = vlaneseq
        %v2874 = vshrl.u32 %v2873, 7
        %v2875 = vsub.s32 0, %v2874
        %v2876 = vrot.slane %v2868, %v2875
        %v2879 = vadd.f32 %v2872, %v2840
        %v2880 = vadd.f32 %v2876, %v2841
        %v2881 = vtanh.pop %v2879
        %v2882 = vtanh.pop %v2880
        %v2884 = vlaneseq
        %v2885 = vshrl.u32 %v2884, 7
        %v2886 = vsub.s32 0, %v2885
        %v2887 = vrot.slane %v2844, %v2886
        %v2889 = vmul.f32 %v2881, %v2887
        %v2890 = vmul.f32 %v2882, %v2887
        %v2891 = vsel %vm748, %v2889, 0.0
        %2892 = vadd.xlane.f32.xlu0 %v2891
        %v2893 = vpop.xlane.xlu0 %2892
        %v2894 = vsel %vm748, %v2890, 0.0
        %2895 = vadd.xlane.f32.xlu0 %v2894
        %v2896 = vpop.xlane.xlu0 %2895
        %v2898 = vlaneseq
        %v2899 = vshrl.u32 %v2898, 7
        %v2900 = vsub.s32 0, %v2899
        %v2901 = vrot.slane %v2845, %v2900
        %2903 = vbcast.lane.b32.xlu0 %v2901, 256
        %v2904 = vpop.permute.xlu0 %2903
        %v2905 = vlaneseq
        %v2906 = vshrl.u32 %v2905, 7
        %v2907 = vsub.s32 1, %v2906
        %v2908 = vrot.slane %v2845, %v2907
        %2910 = vbcast.lane.b32.xlu0 %v2908, 256
        %v2911 = vpop.permute.xlu0 %2910
        %v2914 = vadd.f32 %v2893, %v2904
        %v2915 = vadd.f32 %v2896, %v2911
        %2918 = vset.pattern.permute.xlu0 0
        %2919 = vperm.xlu0 %2918, %v2914
        %v2920 = vpop.permute.xlu0 %2919
        %2921 = vset.pattern.permute.xlu0 0
        %2922 = vperm.xlu0 %2921, %v2915
        %v2923 = vpop.permute.xlu0 %2922
        %v2924 = vlaneseq
        %v2925 = vshrl.u32 %v2924, 7
        %v2926 = vsub.s32 %v783, %v2925
        %v2927 = vrot.slane %v2920, %v2926
        %v2928 = vlaneseq
        %v2929 = vshrl.u32 %v2928, 7
        %v2930 = vsub.s32 %v783, %v2929
        %v2931 = vrot.slane %v2923, %v2930
        %v2932 = vsel %vm792, %v2931, %v2927
        %v2934 = vsel %vm795, %v2932, -inf
        %2935 = vmax.xlane.f32.xlu0 %v2934
        %v2936 = vpop.xlane.xlu0 %2935
        %v2938 = vlaneseq
        %v2939 = vshrl.u32 %v2938, 7
        %v2940 = vsub.s32 0, %v2939
        %v2941 = vrot.slane %v2936, %v2940
        %v2942 = vlaneseq
        %v2943 = vshrl.u32 %v2942, 7
        %v2944 = vsub.s32 1, %v2943
        %v2945 = vrot.slane %v2936, %v2944
        %v2948 = vsub.f32 %v2914, %v2941
        %v2949 = vsub.f32 %v2915, %v2945
        %v2950 = vmul.f32 %v2948, 1.442695
        %v2951 = vpow.pop %v2950
        %v2952 = vmul.f32 %v2949, 1.442695
        %v2953 = vpow.pop %v2952
        %2956 = vset.pattern.permute.xlu0 0
        %2957 = vperm.xlu0 %2956, %v2951
        %v2958 = vpop.permute.xlu0 %2957
        %2959 = vset.pattern.permute.xlu0 0
        %2960 = vperm.xlu0 %2959, %v2953
        %v2961 = vpop.permute.xlu0 %2960
        %v2962 = vlaneseq
        %v2963 = vshrl.u32 %v2962, 7
        %v2964 = vsub.s32 %v783, %v2963
        %v2965 = vrot.slane %v2958, %v2964
        %v2966 = vlaneseq
        %v2967 = vshrl.u32 %v2966, 7
        %v2968 = vsub.s32 %v783, %v2967
        %v2969 = vrot.slane %v2961, %v2968
        %v2970 = vsel %vm792, %v2969, %v2965
        %v2972 = vsel %vm795, %v2970, 0.0
        %2973 = vadd.xlane.f32.xlu0 %v2972
        %v2974 = vpop.xlane.xlu0 %2973
        %v2976 = vlaneseq
        %v2977 = vshrl.u32 %v2976, 7
        %v2978 = vsub.s32 0, %v2977
        %v2979 = vrot.slane %v2974, %v2978
        %v2980 = vlaneseq
        %v2981 = vshrl.u32 %v2980, 7
        %v2982 = vsub.s32 1, %v2981
        %v2983 = vrot.slane %v2974, %v2982
        %v2986 = vrcp.pop %v2979
        %v2987 = vmul.f32 %v2951, %v2986
        %v2988 = vrcp.pop %v2983
        %v2989 = vmul.f32 %v2953, %v2988
        %v2990 = vunpack.c.l.bf16 %v2842
        %v2991 = vunpack.c.l.bf16 %v2843
        %2993 = vset.pattern.permute.xlu0 0
        %2994 = vperm.xlu0 %2993, %v2987
        %v2995 = vpop.permute.xlu0 %2994
        %2998 = vset.pattern.permute.xlu0 0
        %2999 = vperm.xlu0 %2998, %v2989
        %v3000 = vpop.permute.xlu0 %2999
        %v3002 = vmul.f32 %v2995, %v2990
        %v3003 = vmul.f32 %v3000, %v2991
        %v3004 = vsel %vm748, %v3002, 0.0
        %v3005 = vrot.slane %v3004, 4
        %v3006 = vadd.f32 %v3004, %v3005
        %v3007 = vrot.slane %v3006, 2
        %v3008 = vadd.f32 %v3006, %v3007
        %v3009 = vrot.slane %v3008, 1
        %v3010 = vadd.f32 %v3008, %v3009
        %v3011 = vsel %vm748, %v3003, 0.0
        %v3012 = vrot.slane %v3011, 4
        %v3013 = vadd.f32 %v3011, %v3012
        %v3014 = vrot.slane %v3013, 2
        %v3015 = vadd.f32 %v3013, %v3014
        %v3016 = vrot.slane %v3015, 1
        %v3017 = vadd.f32 %v3015, %v3016
        %v3018 = vld [vmem:[%s2] sm:$0xff]
        %v3019 = vld [vmem:[%s2 + $0x8] sm:$0xff]
        %v3020 = vld [vmem:[#allocation9] sm:$0xf]
        %v3021 = vld [vmem:[#allocation9 + $0x4] sm:$0xf]
        %v3022 = vld [vmem:[%s9] sm:$0x1]
        %3025 = vrot.lane.b32.xlu0 %v3018, 32
        %v3026 = vpop.permute.xlu0 %3025
        %3027 = vrot.lane.b32.xlu0 %v3019, 32
        %v3028 = vpop.permute.xlu0 %3027
        %v3031 = vadd.f32 %v2872, %v3026
        %v3032 = vadd.f32 %v2876, %v3028
        %v3033 = vtanh.pop %v3031
        %v3034 = vtanh.pop %v3032
        %v3036 = vlaneseq
        %v3037 = vshrl.u32 %v3036, 7
        %v3038 = vsub.s32 0, %v3037
        %v3039 = vrot.slane %v3022, %v3038
        %3040 = vrot.lane.b32.xlu0 %v3039, 32
        %v3041 = vpop.permute.xlu0 %3040
        %v3043 = vmul.f32 %v3033, %v3041
        %v3044 = vmul.f32 %v3034, %v3041
        %3047 = vrot.lane.b32.xlu0 %v3043, 96
        %v3048 = vpop.permute.xlu0 %3047
        %3049 = vrot.lane.b32.xlu0 %v3044, 96
        %v3050 = vpop.permute.xlu0 %3049
        %v3053 = vsel %vm491, %v3048, 0.0
        %3054 = vadd.xlane.f32.xlu0 %v3053
        %v3055 = vpop.xlane.xlu0 %3054
        %v3056 = vsel %vm491, %v3050, 0.0
        %3057 = vadd.xlane.f32.xlu0 %v3056
        %v3058 = vpop.xlane.xlu0 %3057
        %v3061 = vlaneseq
        %v3062 = vshrl.u32 %v3061, 7
        %v3063 = vsub.s32 %v783, %v3062
        %v3064 = vrot.slane %v3055, %v3063
        %v3065 = vlaneseq
        %v3066 = vshrl.u32 %v3065, 7
        %v3067 = vsub.s32 %v783, %v3066
        %v3068 = vrot.slane %v3058, %v3067
        %v3069 = vsel %vm792, %v3068, %v3064
        %v3071 = vsel %vm933, %v3069, -inf
        %3072 = vmax.xlane.f32.xlu0 %v3071
        %v3073 = vpop.xlane.xlu0 %3072
        %v3075 = vlaneseq
        %v3076 = vshrl.u32 %v3075, 7
        %v3077 = vsub.s32 0, %v3076
        %v3078 = vrot.slane %v3073, %v3077
        %v3079 = vlaneseq
        %v3080 = vshrl.u32 %v3079, 7
        %v3081 = vsub.s32 1, %v3080
        %v3082 = vrot.slane %v3073, %v3081
        %v3085 = vsub.f32 %v3055, %v3078
        %v3086 = vsub.f32 %v3058, %v3082
        %v3087 = vmul.f32 %v3085, 1.442695
        %v3088 = vpow.pop %v3087
        %v3089 = vmul.f32 %v3086, 1.442695
        %v3090 = vpow.pop %v3089
        %3093 = vset.pattern.permute.xlu0 0
        %3094 = vperm.xlu0 %3093, %v3088
        %v3095 = vpop.permute.xlu0 %3094
        %3096 = vset.pattern.permute.xlu0 0
        %3097 = vperm.xlu0 %3096, %v3090
        %v3098 = vpop.permute.xlu0 %3097
        %v3099 = vlaneseq
        %v3100 = vshrl.u32 %v3099, 7
        %v3101 = vsub.s32 %v783, %v3100
        %v3102 = vrot.slane %v3095, %v3101
        %v3103 = vlaneseq
        %v3104 = vshrl.u32 %v3103, 7
        %v3105 = vsub.s32 %v783, %v3104
        %v3106 = vrot.slane %v3098, %v3105
        %v3107 = vsel %vm792, %v3106, %v3102
        %v3109 = vsel %vm933, %v3107, 0.0
        %3110 = vadd.xlane.f32.xlu0 %v3109
        %v3111 = vpop.xlane.xlu0 %3110
        %v3113 = vlaneseq
        %v3114 = vshrl.u32 %v3113, 7
        %v3115 = vsub.s32 0, %v3114
        %v3116 = vrot.slane %v3111, %v3115
        %v3117 = vlaneseq
        %v3118 = vshrl.u32 %v3117, 7
        %v3119 = vsub.s32 1, %v3118
        %v3120 = vrot.slane %v3111, %v3119
        %v3123 = vrcp.pop %v3116
        %v3124 = vmul.f32 %v3088, %v3123
        %v3125 = vrcp.pop %v3120
        %v3126 = vmul.f32 %v3090, %v3125
        %v3127 = vunpack.c.l.bf16 %v3020
        %v3128 = vunpack.c.l.bf16 %v3021
        %3130 = vset.pattern.permute.xlu0 0
        %3131 = vperm.xlu0 %3130, %v3124
        %v3132 = vpop.permute.xlu0 %3131
        %3135 = vset.pattern.permute.xlu0 0
        %3136 = vperm.xlu0 %3135, %v3126
        %v3137 = vpop.permute.xlu0 %3136
        %v3139 = vmul.f32 %v3132, %v3127
        %v3140 = vmul.f32 %v3137, %v3128
        %v3141 = vsel %vm528, %v3139, 0.0
        %v3142 = vrot.slane %v3141, 4
        %v3143 = vadd.f32 %v3141, %v3142
        %v3144 = vrot.slane %v3143, 2
        %v3145 = vadd.f32 %v3143, %v3144
        %v3146 = vrot.slane %v3145, 1
        %v3147 = vadd.f32 %v3145, %v3146
        %v3148 = vsel %vm528, %v3140, 0.0
        %v3149 = vrot.slane %v3148, 4
        %v3150 = vadd.f32 %v3148, %v3149
        %v3151 = vrot.slane %v3150, 2
        %v3152 = vadd.f32 %v3150, %v3151
        %v3153 = vrot.slane %v3152, 1
        %v3154 = vadd.f32 %v3152, %v3153
        %v3157 = vsel %vm792, %v3017, %v3010
        %v3161 = vsel %vm792, %v3154, %v3147
        %3162 = vrot.lane.b32.xlu0 %v3161, 32
        %v3163 = vpop.permute.xlu0 %3162
        %3165 = vrot.lane.b32.xlu0 %v2760, 32
        %v3166 = vpop.permute.xlu0 %3165
        %v3168 = vsel %vm491, %v3157, %v3163
        %v3169 = vsel %vm1032, %v3168, %v3166
        %v3170 = vpack.c.bf16 %v3169, %v3169
        %v3171 = vpack.c.bf16 %v2630, %v2630
        %v3172 = vld [vmem:[#allocation12] sm:$0xf]
        %v3173 = vld [vmem:[#allocation12 + $0x4] sm:$0xf]
        %v3174 = vld [vmem:[#allocation12 + $0x8] sm:$0xf]
        %v3175 = vld [vmem:[#allocation12 + $0xc] sm:$0xf]
        %v3176 = vld [vmem:[#allocation12 + $0x10] sm:$0xf]
        %v3177 = vld [vmem:[#allocation12 + $0x14] sm:$0xf]
        %v3178 = vld [vmem:[#allocation12 + $0x18] sm:$0xf]
        %v3179 = vld [vmem:[#allocation12 + $0x1c] sm:$0xf]
        %v3180 = vld [vmem:[#allocation12 + $0x20] sm:$0xf]
        %v3181 = vld [vmem:[#allocation12 + $0x24] sm:$0xf]
        %v3182 = vld [vmem:[#allocation12 + $0x28] sm:$0xf]
        %v3183 = vld [vmem:[#allocation12 + $0x2c] sm:$0xf]
        %v3184 = vld [vmem:[#allocation12 + $0x30] sm:$0xf]
        %v3185 = vld [vmem:[#allocation12 + $0x34] sm:$0xf]
        %v3186 = vld [vmem:[#allocation12 + $0x38] sm:$0xf]
        %v3187 = vld [vmem:[#allocation12 + $0x3c] sm:$0xf]
        %v3188 = vld [vmem:[#allocation12 + $0x40] sm:$0xf]
        %v3189 = vld [vmem:[#allocation12 + $0x44] sm:$0xf]
        %v3190 = vld [vmem:[#allocation12 + $0x48] sm:$0xf]
        %v3191 = vld [vmem:[#allocation12 + $0x4c] sm:$0xf]
        %v3192 = vld [vmem:[%s11] sm:$0x1]
        %v3194 = vlaneseq
        %v3195 = vshrl.u32 %v3194, 7
        %v3196 = vsub.s32 0, %v3195
        %v3197 = vrot.slane %v3192, %v3196
        %v3219 = vunpack.c.l.b16 %v3172
        %v3220 = vunpack.c.l.b16 %v3173
        %v3221 = vunpack.c.l.b16 %v3174
        %v3222 = vunpack.c.l.b16 %v3175
        %v3223 = vunpack.c.l.b16 %v3176
        %v3224 = vunpack.c.l.b16 %v3177
        %v3225 = vunpack.c.l.b16 %v3178
        %v3226 = vunpack.c.l.b16 %v3179
        %v3227 = vunpack.c.l.b16 %v3180
        %v3228 = vunpack.c.l.b16 %v3181
        %v3229 = vunpack.c.l.b16 %v3182
        %v3230 = vunpack.c.l.b16 %v3183
        %v3231 = vunpack.c.l.b16 %v3184
        %v3232 = vunpack.c.l.b16 %v3185
        %v3233 = vunpack.c.l.b16 %v3186
        %v3234 = vunpack.c.l.b16 %v3187
        %v3235 = vunpack.c.l.b16 %v3188
        %v3236 = vunpack.c.l.b16 %v3189
        %v3237 = vunpack.c.l.b16 %v3190
        %v3238 = vunpack.c.l.b16 %v3191
        %v3239 = vpack.c.b16 %v3220, %v3219
        %v3240 = vpack.c.b16 %v3222, %v3221
        %v3241 = vpack.c.b16 %v3224, %v3223
        %v3242 = vpack.c.b16 %v3226, %v3225
        %v3243 = vpack.c.b16 %v3228, %v3227
        %v3244 = vpack.c.b16 %v3230, %v3229
        %v3245 = vpack.c.b16 %v3232, %v3231
        %v3246 = vpack.c.b16 %v3234, %v3233
        %v3247 = vpack.c.b16 %v3236, %v3235
        %v3248 = vpack.c.b16 %v3238, %v3237
        %v3260 = vsel %vm491, %v3171, 0
        %3262 = vmatprep.subr.bf16.mxu0 0
        %3263 = vmatpush1.bf16.msra.mxu0 %v3239
        %3264 = vmatprep.subr.bf16.mxu0 0
        %3265 = vmatpush1.bf16.msra.mxu0 %v3240
        %3266 = vmatprep.subr.bf16.mxu0 0
        %3267 = vmatpush1.bf16.msra.mxu0 %v3241
        %3268 = vmatprep.subr.bf16.mxu0 0
        %3269 = vmatpush1.bf16.msra.mxu0 %v3242
        %3270 = vmatprep.subr.bf16.mxu0 0
        %3271 = vmatpush1.bf16.msra.mxu0 %v3243
        %3272 = vmatprep.subr.bf16.mxu0 0
        %3273 = vmatpush1.bf16.msra.mxu0 %v3244
        %3274 = vmatprep.subr.bf16.mxu0 0
        %3275 = vmatpush1.bf16.msra.mxu0 %v3245
        %3276 = vmatprep.subr.bf16.mxu0 0
        %3277 = vmatpush1.bf16.msra.mxu0 %v3246
        %3278 = vmatprep.subr.bf16.mxu0 0
        %3279 = vmatpush1.bf16.msra.mxu0 %v3247
        %3280 = vmatprep.subr.bf16.mxu0 0
        %3281 = vmatpush1.bf16.msra.mxu0 %v3248
        %3282 = vmatprep.subr.bf16.mxu0 0
        %3283 = vmatpush1.bf16.msra.mxu0 0
        %3284 = vmatprep.subr.bf16.mxu0 0
        %3285 = vmatpush1.bf16.msra.mxu0 0
        %3286 = vmatprep.subr.bf16.mxu0 0
        %3287 = vmatpush1.bf16.msra.mxu0 0
        %3288 = vmatprep.subr.bf16.mxu0 0
        %3289 = vmatpush1.bf16.msra.mxu0 0
        %3290 = vmatprep.subr.bf16.mxu0 0
        %3291 = vmatpush1.bf16.msra.mxu0 0
        %3292 = vmatprep.subr.bf16.mxu0 0
        %3293 = vmatpush1.bf16.msra.mxu0 0
        %3294 = vmatprep.mubr.bf16.mxu0 %v3260
        %3295 = vmatmul.mubr.bf16.gmra.mrb[0].mxu0 %v3170
        %v3296 = vpop.f32.mrb[0].mxu0
        %v3297 = vadd.f32 %v3197, %v3296
        %v3298 = vpop.f32.mrb[0].mxu0
        %v3299 = vpop.f32.mrb[0].mxu0
        %v3300 = vpop.f32.mrb[0].mxu0
        %3301 = vdwg.mxu0
        %v3302 = vld [vmem:[#allocation3] sm:$0x3]
        %v3303 = vxor.u32 %v3297, 2147483648
        %v3304 = vmul.f32 %v3303, 1.442695
        %v3305 = vpow.pop %v3304
        %v3306 = vadd.f32 %v3305, 1.0
        %v3307 = vrcp.pop %v3306
        %v3308 = vmul.f32 1.0, %v3307
        %v3309 = vtanh.pop %v3297
        %3311 = vrot.lane.b32.xlu0 %v3302, 32
        %v3312 = vpop.permute.xlu0 %3311
        %v3314 = vmul.f32 %v3308, %v3312
        %3316 = vrot.lane.b32.xlu0 %v3309, 32
        %v3317 = vpop.permute.xlu0 %3316
        %v3319 = vmul.f32 %v3308, %v3317
        %3321 = vrot.lane.b32.xlu0 %v3319, 32
        %v3322 = vpop.permute.xlu0 %3321
        %v3324 = vadd.f32 %v3314, %v3322
        %v3325 = vtanh.pop %v3324
        %3327 = vrot.lane.b32.xlu0 %v3325, 32
        %v3328 = vpop.permute.xlu0 %3327
        %v3330 = vmul.f32 %v3308, %v3328
        %3332 = vrot.lane.b32.xlu0 %v3330, 64
        %v3333 = vpop.permute.xlu0 %3332
        %3335 = vst.msk [vmem:[#allocation2] sm:$0x3] %vm620, %v3333
        %3337 = vrot.lane.b32.xlu0 %v3324, 96
        %v3338 = vpop.permute.xlu0 %3337
        %3340 = vst.msk [vmem:[#allocation3] sm:$0x3] %vm620, %v3338
        %3341 = vst.msk [vmem:[%s473 + $0x6] sm:$0x3] %vm620, %v3333
        %s3342 = sand.u32 %s296, 1
        %s3343 = scalar_lea.sflag [#allocation8], %s3342
        %s3344 = sand.u32 %s296, 1
        %s3345 = smul.addr %s3344, 8
        %s3346 = scalar_lea.vmem [#allocation14], %s3345
        // Predicated region
        $region89: #{tpu_custom_call.1} parent=67 // pred_check
          %p3347 = pneg %p306
        $region90: #{tpu_custom_call.1} parent=67 // pred_check_branch
          %3349 = sbr.rel (%p3347) target = $region92
        $region91: #{tpu_custom_call.1} parent=67 // pred_region
          %s3351 = ssub.s32 128, 128
          %3352 = vsyncadd %s3343, %s3351
          %s3353 = smul.addr %s31, 128
          %s3354 = scalar_lea.hbm %s12, %s3353
          %s3356 = sshll.u32 %s3346, 4
          %s3357 = int_to_ptr.vmem [resolvable:$true] %s3356
          %3359 = dma.vmem_to_hbm [thread:$0]  %s3357, 128, %s3354, %s3343
        $region92: #{tpu_custom_call.1} parent=67 // pred_fallthru
          _
      $region68: #{tpu_custom_call.1} parent=5 // pred_fallthru
        _
      %p3360 = scmp.le.s32.totalorder 2, %s26
      // Predicated region
      $region93: #{tpu_custom_call.1} parent=5 // pred_check
        %p3361 = pneg %p3360
      $region94: #{tpu_custom_call.1} parent=5 // pred_check_branch
        %3363 = sbr.rel (%p3361) target = $region96
      $region95: #{tpu_custom_call.1} parent=5 // pred_region
        %s3364 = ssub.s32 %s26, 2
        // Predicated region
        $region97: #{tpu_custom_call.1} parent=95 // pred_check
          %p3365 = pneg %p312
        $region98: #{tpu_custom_call.1} parent=95 // pred_check_branch
          %3367 = sbr.rel (%p3365) target = $region100
        $region99: #{tpu_custom_call.1} parent=95 // pred_region
          %s3368 = sand.u32 %s297, 1
          %s3369 = scalar_lea.sflag [#allocation8], %s3368
          %s3370 = sand.u32 %s297, 1
          %s3371 = smul.addr %s3370, 8
          %s3372 = scalar_lea.vmem [#allocation14], %s3371
          %3373 = dma.done %s3369, 128
        $region100: #{tpu_custom_call.1} parent=95 // pred_fallthru
          _
      $region96: #{tpu_custom_call.1} parent=5 // pred_fallthru
        _
    $region6: #{tpu_custom_call.1} parent=1 // loop_footer
      %s30 = sadd.s32 1, %s26
    $region7: #{tpu_custom_call.1} parent=1 // loop_footer_branch
      %25 = sbr.rel target = $region3
    $region8: #{tpu_custom_call.1} parent=1 // loop_exit
      _
    %3374 = vsyncpa [#allocation7], 1
    %s3375 = scalar_lea.sflag [#allocation7], 1
    %3376 = vsyncpa %s3375, 1
    %3377 = vsyncpa [#allocation10], 1
    %3378 = vsyncpa [#allocation13], 1
    %3379 = vsyncpa [#allocation8], 1
    %s3380 = scalar_lea.sflag [#allocation8], 1
    %3381 = vsyncpa %s3380, 1

</llo_original>
